<compile_context>
chip_gen: v5e
topology: v5e:2x2
jax: 0.10.0
libtpu: 0.0.40
codegen_flags: <defaults>
</compile_context>

<pallas_src>
import functools

import jax
import jax.numpy as jnp
from jax import lax
from jax.experimental import pallas as pl
from jax.experimental.pallas import tpu as pltpu


def lstm2_kernel(idx_ref,                 # scalar-prefetch (SMEM): (T*Bp,) int32 char indices
                 table_ref,               # (num_class, 4*Hp)  emb @ W_ih1 + b1 (precomposed)
                 whh1_ref,                # (Hp, 4*Hp)
                 w2_ref,                  # (2*Hp, 4*Hp)  [W_ih2 ; W_hh2] stacked
                 b2_ref,                  # (Bp, 4*Hp)    pre-broadcast merged bias
                 out_ref,                 # (Bp, Hp) output: h2 at last timestep
                 xg_ref,                  # scratch VMEM: (T*Bp, 4*Hp)
                 *, seq_len, bp, hp, unroll):
    n_rows = seq_len * bp

    # ---- Stage 1: fused embedding lookup + layer-1 input projection (+bias) ----------------
    # Gather one precomposed row per (t, b) into the xg scratch, off the recurrent path.
    def gather_row(k):
        idx = idx_ref[k]
        xg_ref[pl.ds(k, 1), :] = table_ref[pl.ds(idx, 1), :]

    if n_rows <= 512:
        # Small sequences: static unroll -> static store offsets.
        for k in range(n_rows):
            gather_row(k)
    else:
        def gather_body(k, carry):
            gather_row(k)
            return carry
        lax.fori_loop(0, n_rows, gather_body, 0)

    # ---- Stage 2: the 2-layer recurrence ----------------------------------------------------
    whh1 = whh1_ref[...]
    w2 = w2_ref[...]
    b2 = b2_ref[...]

    def gates(pre, c):
        # PyTorch gate order: i, f, g, o — each a full 128-lane-aligned slot (hp = 128k).
        i = jax.nn.sigmoid(pre[:, 0 * hp:1 * hp])
        f = jax.nn.sigmoid(pre[:, 1 * hp:2 * hp])
        g = jnp.tanh(pre[:, 2 * hp:3 * hp])
        o = jax.nn.sigmoid(pre[:, 3 * hp:4 * hp])
        c_new = f * c + i * g
        h_new = o * jnp.tanh(c_new)
        return h_new, c_new

    def step(t, carry):
        h1, c1, h2, c2 = carry
        base = pl.multiple_of(t * bp, bp)
        xg_t = xg_ref[pl.ds(base, bp), :]                      # (Bp, 4Hp): x@Wih1 + b1
        pre1 = xg_t + jnp.dot(h1, whh1, preferred_element_type=jnp.float32)
        h1, c1 = gates(pre1, c1)
        inp2 = jnp.concatenate([h1, h2], axis=1)               # (Bp, 2Hp)
        pre2 = b2 + jnp.dot(inp2, w2, preferred_element_type=jnp.float32)
        h2, c2 = gates(pre2, c2)
        return h1, c1, h2, c2

    z = jnp.zeros((bp, hp), jnp.float32)
    _, _, h2, _ = lax.fori_loop(0, seq_len, step, (z, z, z, z), unroll=unroll)
    out_ref[...] = h2.astype(out_ref.dtype)


def _round_up(x, m):
    return (x + m - 1) // m * m


def lstm_shakespeare_client_forward(x_idx, params):
    """x_idx: int32 (B, T) character indices. Returns (B, H) features (last-step top-layer h)."""
    emb = params["embedding"].astype(jnp.float32)        # (num_class, E)
    w_ih1, w_hh1, b1 = params["w_ih1_t"], params["w_hh1_t"], params["b1"]
    w_ih2, w_hh2, b2 = params["w_ih2_t"], params["w_hh2_t"], params["b2"]
    H = w_hh1.shape[0]
    B, T = x_idx.shape

    Hp = _round_up(H, 128)   # lane-align every gate slot
    Bp = _round_up(B, 8)     # f32 sublane count

    def pad_gates(w, rows_pad):
        # (rows, 4H) -> (rows_pad, 4Hp): pad each i/f/g/o slot from H to Hp lanes (zeros),
        # pad extra input rows with zeros.  Zero pads keep the padded h/c lanes exactly 0.
        rows = w.shape[0]
        w4 = w.reshape(rows, 4, H)
        w4 = jnp.pad(w4, ((0, rows_pad - rows), (0, 0), (0, Hp - H)))
        return w4.reshape(rows_pad, 4 * Hp)

    # Fuse embedding lookup + layer-1 input projection + layer-1 bias into one table.
    table = emb @ pad_gates(w_ih1, w_ih1.shape[0]) + pad_gates(b1, 1)   # (num_class, 4Hp)
    w_hh1_p = pad_gates(w_hh1, Hp)                                       # (Hp, 4Hp)
    w2_p = jnp.concatenate([pad_gates(w_ih2, Hp), pad_gates(w_hh2, Hp)], axis=0)  # (2Hp, 4Hp)
    b2_p = jnp.broadcast_to(pad_gates(b2, 1), (Bp, 4 * Hp))              # pre-broadcast bias

    idx = jnp.pad(x_idx.astype(jnp.int32), ((0, Bp - B), (0, 0)))        # (Bp, T)
    idx_flat = jnp.transpose(idx, (1, 0)).reshape(T * Bp)                # time-major flat

    kernel = functools.partial(lstm2_kernel, seq_len=T, bp=Bp, hp=Hp,
                               unroll=True if T <= 32 else 4)

    out = pl.pallas_call(
        kernel,
        out_shape=jax.ShapeDtypeStruct((Bp, Hp), jnp.float32),
        grid_spec=pltpu.PrefetchScalarGridSpec(
            num_scalar_prefetch=1,
            grid=(1,),
            in_specs=[
                pl.BlockSpec((table.shape[0], 4 * Hp), lambda i, idx: (0, 0)),  # fused emb table
                pl.BlockSpec((Hp, 4 * Hp), lambda i, idx: (0, 0)),              # W_hh1
                pl.BlockSpec((2 * Hp, 4 * Hp), lambda i, idx: (0, 0)),          # [W_ih2; W_hh2]
                pl.BlockSpec((Bp, 4 * Hp), lambda i, idx: (0, 0)),              # b2 broadcast
            ],
            out_specs=pl.BlockSpec((Bp, Hp), lambda i, idx: (0, 0)),
            scratch_shapes=[pltpu.VMEM((T * Bp, 4 * Hp), jnp.float32)],
        ),
        compiler_params=pltpu.CompilerParams(
            dimension_semantics=("arbitrary",)),
    )(idx_flat, table, w_hh1_p, w2_p, b2_p)

    return out[:B, :H]


def reference_forward(x_idx, params):
    """Pure-JAX reference (lax.scan) mirroring torch.nn.LSTM semantics (unpadded)."""
    emb = params["embedding"]
    H = params["w_hh1_t"].shape[0]
    x = jnp.take(emb, x_idx, axis=0)               # (B, T, E)
    B = x.shape[0]

    def cell(h, c, inp, wih_t, whh_t, b):
        gates = inp @ wih_t + h @ whh_t + b
        i = jax.nn.sigmoid(gates[:, 0 * H:1 * H])
        f = jax.nn.sigmoid(gates[:, 1 * H:2 * H])
        g = jnp.tanh(gates[:, 2 * H:3 * H])
        o = jax.nn.sigmoid(gates[:, 3 * H:4 * H])
        c_new = f * c + i * g
        h_new = o * jnp.tanh(c_new)
        return h_new, c_new

    def step(carry, x_t):
        h1, c1, h2, c2 = carry
        h1, c1 = cell(h1, c1, x_t, params["w_ih1_t"], params["w_hh1_t"], params["b1"])
        h2, c2 = cell(h2, c2, h1, params["w_ih2_t"], params["w_hh2_t"], params["b2"])
        return (h1, c1, h2, c2), h2

    z = jnp.zeros((B, H), jnp.float32)
    (_, _, h2, _), _ = jax.lax.scan(step, (z, z, z, z), jnp.transpose(x, (1, 0, 2)))
    return h2


def init_params(key, num_class=80, embedding_dim=8, hidden_size=32):
    """Deterministic synthetic parameters (PyTorch-style init ranges)."""
    H, E = hidden_size, embedding_dim
    k = 1.0 / jnp.sqrt(jnp.float32(H))
    keys = jax.random.split(key, 9)

    def u(kk, shape):
        return jax.random.uniform(kk, shape, jnp.float32, -k, k)

    params = {
        "embedding": jax.random.normal(keys[0], (num_class, E), jnp.float32),
        # Stored pre-transposed: (in_dim, 4H). Biases merged (b_ih + b_hh) -> (1, 4H).
        "w_ih1_t": u(keys[1], (E, 4 * H)),
        "w_hh1_t": u(keys[2], (H, 4 * H)),
        "b1": (u(keys[3], (1, 4 * H)) + u(keys[4], (1, 4 * H))),
        "w_ih2_t": u(keys[5], (H, 4 * H)),
        "w_hh2_t": u(keys[6], (H, 4 * H)),
        "b2": (u(keys[7], (1, 4 * H)) + u(keys[8], (1, 4 * H))),
    }
    return params


if __name__ == "__main__":
    key = jax.random.PRNGKey(0)
    k_param, k_data = jax.random.split(key)

    NUM_CLASS, EMB_DIM, HIDDEN = 80, 8, 32
    B, T = 4, 8

    params = init_params(k_param, NUM_CLASS, EMB_DIM, HIDDEN)
    x_idx = jax.random.randint(k_data, (B, T), 0, NUM_CLASS, dtype=jnp.int32)

    fwd = jax.jit(lstm_shakespeare_client_forward)
    out = jax.block_until_ready(fwd(x_idx, params))

    ref = jax.block_until_ready(reference_forward(x_idx, params))
    assert out.shape == (B, HIDDEN)
    assert jnp.allclose(out, ref, atol=1e-5, rtol=1e-4), "Pallas LSTM mismatch vs reference"

    print("KERNEL_OK")
</pallas_src>

<mosaic_0001>
module attributes {stable_mosaic.version = 11 : i64} {
  func.func @lstm2_kernel(%arg0: i32, %arg1: memref<64xi32, #tpu.memory_space<smem>>, %arg2: memref<80x512xf32, #tpu.memory_space<vmem>>, %arg3: memref<128x512xf32, #tpu.memory_space<vmem>>, %arg4: memref<256x512xf32, #tpu.memory_space<vmem>>, %arg5: memref<8x512xf32, #tpu.memory_space<vmem>>, %arg6: memref<8x128xf32, #tpu.memory_space<vmem>>, %arg7: memref<64x512xf32, #tpu.memory_space<vmem>>) attributes {dimension_semantics = [#tpu.dimension_semantics<arbitrary>], iteration_bounds = array<i64: 1>, scalar_prefetch = 1 : i64, scratch_operands = 1 : i64, tpu.core_type = #tpu.core_type<tc>, window_params = [{pipeline_mode = #tpu.pipeline_mode<synchronous>, transform_indices = @transform_0, window_bounds = array<i64: 80, 512>}, {pipeline_mode = #tpu.pipeline_mode<synchronous>, transform_indices = @transform_1, window_bounds = array<i64: 128, 512>}, {pipeline_mode = #tpu.pipeline_mode<synchronous>, transform_indices = @transform_2, window_bounds = array<i64: 256, 512>}, {pipeline_mode = #tpu.pipeline_mode<synchronous>, transform_indices = @transform_3, window_bounds = array<i64: 8, 512>}, {pipeline_mode = #tpu.pipeline_mode<synchronous>, transform_indices = @transform_4, window_bounds = array<i64: 8, 128>}]} {
    %c0 = arith.constant 0 : index
    %0 = memref.load %arg1[%c0] : memref<64xi32, #tpu.memory_space<smem>>
    %1 = arith.index_cast %0 : i32 to index
    %c0_0 = arith.constant 0 : index
    %2 = vector.load %arg2[%1, %c0_0] : memref<80x512xf32, #tpu.memory_space<vmem>>, vector<1x512xf32>
    %c0_1 = arith.constant 0 : index
    %c0_2 = arith.constant 0 : index
    %3 = vector.load %arg7[%c0_1, %c0_2] : memref<64x512xf32, #tpu.memory_space<vmem>>, vector<1x512xf32>
    tpu.vector_store %arg7[%c0_1, %c0_2], %2 {strides = array<i32>} : memref<64x512xf32, #tpu.memory_space<vmem>>, vector<1x512xf32>,
    %c1 = arith.constant 1 : index
    %4 = memref.load %arg1[%c1] : memref<64xi32, #tpu.memory_space<smem>>
    %5 = arith.index_cast %4 : i32 to index
    %c0_3 = arith.constant 0 : index
    %6 = vector.load %arg2[%5, %c0_3] : memref<80x512xf32, #tpu.memory_space<vmem>>, vector<1x512xf32>
    %c1_4 = arith.constant 1 : index
    %c0_5 = arith.constant 0 : index
    %7 = vector.load %arg7[%c1_4, %c0_5] : memref<64x512xf32, #tpu.memory_space<vmem>>, vector<1x512xf32>
    tpu.vector_store %arg7[%c1_4, %c0_5], %6 {strides = array<i32>} : memref<64x512xf32, #tpu.memory_space<vmem>>, vector<1x512xf32>,
    %c2 = arith.constant 2 : index
    %8 = memref.load %arg1[%c2] : memref<64xi32, #tpu.memory_space<smem>>
    %9 = arith.index_cast %8 : i32 to index
    %c0_6 = arith.constant 0 : index
    %10 = vector.load %arg2[%9, %c0_6] : memref<80x512xf32, #tpu.memory_space<vmem>>, vector<1x512xf32>
    %c2_7 = arith.constant 2 : index
    %c0_8 = arith.constant 0 : index
    %11 = vector.load %arg7[%c2_7, %c0_8] : memref<64x512xf32, #tpu.memory_space<vmem>>, vector<1x512xf32>
    tpu.vector_store %arg7[%c2_7, %c0_8], %10 {strides = array<i32>} : memref<64x512xf32, #tpu.memory_space<vmem>>, vector<1x512xf32>,
    %c3 = arith.constant 3 : index
    %12 = memref.load %arg1[%c3] : memref<64xi32, #tpu.memory_space<smem>>
    %13 = arith.index_cast %12 : i32 to index
    %c0_9 = arith.constant 0 : index
    %14 = vector.load %arg2[%13, %c0_9] : memref<80x512xf32, #tpu.memory_space<vmem>>, vector<1x512xf32>
    %c3_10 = arith.constant 3 : index
    %c0_11 = arith.constant 0 : index
    %15 = vector.load %arg7[%c3_10, %c0_11] : memref<64x512xf32, #tpu.memory_space<vmem>>, vector<1x512xf32>
    tpu.vector_store %arg7[%c3_10, %c0_11], %14 {strides = array<i32>} : memref<64x512xf32, #tpu.memory_space<vmem>>, vector<1x512xf32>,
    %c4 = arith.constant 4 : index
    %16 = memref.load %arg1[%c4] : memref<64xi32, #tpu.memory_space<smem>>
    %17 = arith.index_cast %16 : i32 to index
    %c0_12 = arith.constant 0 : index
    %18 = vector.load %arg2[%17, %c0_12] : memref<80x512xf32, #tpu.memory_space<vmem>>, vector<1x512xf32>
    %c4_13 = arith.constant 4 : index
    %c0_14 = arith.constant 0 : index
    %19 = vector.load %arg7[%c4_13, %c0_14] : memref<64x512xf32, #tpu.memory_space<vmem>>, vector<1x512xf32>
    tpu.vector_store %arg7[%c4_13, %c0_14], %18 {strides = array<i32>} : memref<64x512xf32, #tpu.memory_space<vmem>>, vector<1x512xf32>,
    %c5 = arith.constant 5 : index
    %20 = memref.load %arg1[%c5] : memref<64xi32, #tpu.memory_space<smem>>
    %21 = arith.index_cast %20 : i32 to index
    %c0_15 = arith.constant 0 : index
    %22 = vector.load %arg2[%21, %c0_15] : memref<80x512xf32, #tpu.memory_space<vmem>>, vector<1x512xf32>
    %c5_16 = arith.constant 5 : index
    %c0_17 = arith.constant 0 : index
    %23 = vector.load %arg7[%c5_16, %c0_17] : memref<64x512xf32, #tpu.memory_space<vmem>>, vector<1x512xf32>
    tpu.vector_store %arg7[%c5_16, %c0_17], %22 {strides = array<i32>} : memref<64x512xf32, #tpu.memory_space<vmem>>, vector<1x512xf32>,
    %c6 = arith.constant 6 : index
    %24 = memref.load %arg1[%c6] : memref<64xi32, #tpu.memory_space<smem>>
    %25 = arith.index_cast %24 : i32 to index
    %c0_18 = arith.constant 0 : index
    %26 = vector.load %arg2[%25, %c0_18] : memref<80x512xf32, #tpu.memory_space<vmem>>, vector<1x512xf32>
    %c6_19 = arith.constant 6 : index
    %c0_20 = arith.constant 0 : index
    %27 = vector.load %arg7[%c6_19, %c0_20] : memref<64x512xf32, #tpu.memory_space<vmem>>, vector<1x512xf32>
    tpu.vector_store %arg7[%c6_19, %c0_20], %26 {strides = array<i32>} : memref<64x512xf32, #tpu.memory_space<vmem>>, vector<1x512xf32>,
    %c7 = arith.constant 7 : index
    %28 = memref.load %arg1[%c7] : memref<64xi32, #tpu.memory_space<smem>>
    %29 = arith.index_cast %28 : i32 to index
    %c0_21 = arith.constant 0 : index
    %30 = vector.load %arg2[%29, %c0_21] : memref<80x512xf32, #tpu.memory_space<vmem>>, vector<1x512xf32>
    %c7_22 = arith.constant 7 : index
    %c0_23 = arith.constant 0 : index
    %31 = vector.load %arg7[%c7_22, %c0_23] : memref<64x512xf32, #tpu.memory_space<vmem>>, vector<1x512xf32>
    tpu.vector_store %arg7[%c7_22, %c0_23], %30 {strides = array<i32>} : memref<64x512xf32, #tpu.memory_space<vmem>>, vector<1x512xf32>,
    %c8 = arith.constant 8 : index
    %32 = memref.load %arg1[%c8] : memref<64xi32, #tpu.memory_space<smem>>
    %33 = arith.index_cast %32 : i32 to index
    %c0_24 = arith.constant 0 : index
    %34 = vector.load %arg2[%33, %c0_24] : memref<80x512xf32, #tpu.memory_space<vmem>>, vector<1x512xf32>
    %c8_25 = arith.constant 8 : index
    %c0_26 = arith.constant 0 : index
    %35 = vector.load %arg7[%c8_25, %c0_26] : memref<64x512xf32, #tpu.memory_space<vmem>>, vector<1x512xf32>
    tpu.vector_store %arg7[%c8_25, %c0_26], %34 {strides = array<i32>} : memref<64x512xf32, #tpu.memory_space<vmem>>, vector<1x512xf32>,
    %c9 = arith.constant 9 : index
    %36 = memref.load %arg1[%c9] : memref<64xi32, #tpu.memory_space<smem>>
    %37 = arith.index_cast %36 : i32 to index
    %c0_27 = arith.constant 0 : index
    %38 = vector.load %arg2[%37, %c0_27] : memref<80x512xf32, #tpu.memory_space<vmem>>, vector<1x512xf32>
    %c9_28 = arith.constant 9 : index
    %c0_29 = arith.constant 0 : index
    %39 = vector.load %arg7[%c9_28, %c0_29] : memref<64x512xf32, #tpu.memory_space<vmem>>, vector<1x512xf32>
    tpu.vector_store %arg7[%c9_28, %c0_29], %38 {strides = array<i32>} : memref<64x512xf32, #tpu.memory_space<vmem>>, vector<1x512xf32>,
    %c10 = arith.constant 10 : index
    %40 = memref.load %arg1[%c10] : memref<64xi32, #tpu.memory_space<smem>>
    %41 = arith.index_cast %40 : i32 to index
    %c0_30 = arith.constant 0 : index
    %42 = vector.load %arg2[%41, %c0_30] : memref<80x512xf32, #tpu.memory_space<vmem>>, vector<1x512xf32>
    %c10_31 = arith.constant 10 : index
    %c0_32 = arith.constant 0 : index
    %43 = vector.load %arg7[%c10_31, %c0_32] : memref<64x512xf32, #tpu.memory_space<vmem>>, vector<1x512xf32>
    tpu.vector_store %arg7[%c10_31, %c0_32], %42 {strides = array<i32>} : memref<64x512xf32, #tpu.memory_space<vmem>>, vector<1x512xf32>,
    %c11 = arith.constant 11 : index
    %44 = memref.load %arg1[%c11] : memref<64xi32, #tpu.memory_space<smem>>
    %45 = arith.index_cast %44 : i32 to index
    %c0_33 = arith.constant 0 : index
    %46 = vector.load %arg2[%45, %c0_33] : memref<80x512xf32, #tpu.memory_space<vmem>>, vector<1x512xf32>
    %c11_34 = arith.constant 11 : index
    %c0_35 = arith.constant 0 : index
    %47 = vector.load %arg7[%c11_34, %c0_35] : memref<64x512xf32, #tpu.memory_space<vmem>>, vector<1x512xf32>
    tpu.vector_store %arg7[%c11_34, %c0_35], %46 {strides = array<i32>} : memref<64x512xf32, #tpu.memory_space<vmem>>, vector<1x512xf32>,
    %c12 = arith.constant 12 : index
    %48 = memref.load %arg1[%c12] : memref<64xi32, #tpu.memory_space<smem>>
    %49 = arith.index_cast %48 : i32 to index
    %c0_36 = arith.constant 0 : index
    %50 = vector.load %arg2[%49, %c0_36] : memref<80x512xf32, #tpu.memory_space<vmem>>, vector<1x512xf32>
    %c12_37 = arith.constant 12 : index
    %c0_38 = arith.constant 0 : index
    %51 = vector.load %arg7[%c12_37, %c0_38] : memref<64x512xf32, #tpu.memory_space<vmem>>, vector<1x512xf32>
    tpu.vector_store %arg7[%c12_37, %c0_38], %50 {strides = array<i32>} : memref<64x512xf32, #tpu.memory_space<vmem>>, vector<1x512xf32>,
    %c13 = arith.constant 13 : index
    %52 = memref.load %arg1[%c13] : memref<64xi32, #tpu.memory_space<smem>>
    %53 = arith.index_cast %52 : i32 to index
    %c0_39 = arith.constant 0 : index
    %54 = vector.load %arg2[%53, %c0_39] : memref<80x512xf32, #tpu.memory_space<vmem>>, vector<1x512xf32>
    %c13_40 = arith.constant 13 : index
    %c0_41 = arith.constant 0 : index
    %55 = vector.load %arg7[%c13_40, %c0_41] : memref<64x512xf32, #tpu.memory_space<vmem>>, vector<1x512xf32>
    tpu.vector_store %arg7[%c13_40, %c0_41], %54 {strides = array<i32>} : memref<64x512xf32, #tpu.memory_space<vmem>>, vector<1x512xf32>,
    %c14 = arith.constant 14 : index
    %56 = memref.load %arg1[%c14] : memref<64xi32, #tpu.memory_space<smem>>
    %57 = arith.index_cast %56 : i32 to index
    %c0_42 = arith.constant 0 : index
    %58 = vector.load %arg2[%57, %c0_42] : memref<80x512xf32, #tpu.memory_space<vmem>>, vector<1x512xf32>
    %c14_43 = arith.constant 14 : index
    %c0_44 = arith.constant 0 : index
    %59 = vector.load %arg7[%c14_43, %c0_44] : memref<64x512xf32, #tpu.memory_space<vmem>>, vector<1x512xf32>
    tpu.vector_store %arg7[%c14_43, %c0_44], %58 {strides = array<i32>} : memref<64x512xf32, #tpu.memory_space<vmem>>, vector<1x512xf32>,
    %c15 = arith.constant 15 : index
    %60 = memref.load %arg1[%c15] : memref<64xi32, #tpu.memory_space<smem>>
    %61 = arith.index_cast %60 : i32 to index
    %c0_45 = arith.constant 0 : index
    %62 = vector.load %arg2[%61, %c0_45] : memref<80x512xf32, #tpu.memory_space<vmem>>, vector<1x512xf32>
    %c15_46 = arith.constant 15 : index
    %c0_47 = arith.constant 0 : index
    %63 = vector.load %arg7[%c15_46, %c0_47] : memref<64x512xf32, #tpu.memory_space<vmem>>, vector<1x512xf32>
    tpu.vector_store %arg7[%c15_46, %c0_47], %62 {strides = array<i32>} : memref<64x512xf32, #tpu.memory_space<vmem>>, vector<1x512xf32>,
    %c16 = arith.constant 16 : index
    %64 = memref.load %arg1[%c16] : memref<64xi32, #tpu.memory_space<smem>>
    %65 = arith.index_cast %64 : i32 to index
    %c0_48 = arith.constant 0 : index
    %66 = vector.load %arg2[%65, %c0_48] : memref<80x512xf32, #tpu.memory_space<vmem>>, vector<1x512xf32>
    %c16_49 = arith.constant 16 : index
    %c0_50 = arith.constant 0 : index
    %67 = vector.load %arg7[%c16_49, %c0_50] : memref<64x512xf32, #tpu.memory_space<vmem>>, vector<1x512xf32>
    tpu.vector_store %arg7[%c16_49, %c0_50], %66 {strides = array<i32>} : memref<64x512xf32, #tpu.memory_space<vmem>>, vector<1x512xf32>,
    %c17 = arith.constant 17 : index
    %68 = memref.load %arg1[%c17] : memref<64xi32, #tpu.memory_space<smem>>
    %69 = arith.index_cast %68 : i32 to index
    %c0_51 = arith.constant 0 : index
    %70 = vector.load %arg2[%69, %c0_51] : memref<80x512xf32, #tpu.memory_space<vmem>>, vector<1x512xf32>
    %c17_52 = arith.constant 17 : index
    %c0_53 = arith.constant 0 : index
    %71 = vector.load %arg7[%c17_52, %c0_53] : memref<64x512xf32, #tpu.memory_space<vmem>>, vector<1x512xf32>
    tpu.vector_store %arg7[%c17_52, %c0_53], %70 {strides = array<i32>} : memref<64x512xf32, #tpu.memory_space<vmem>>, vector<1x512xf32>,
    %c18 = arith.constant 18 : index
    %72 = memref.load %arg1[%c18] : memref<64xi32, #tpu.memory_space<smem>>
    %73 = arith.index_cast %72 : i32 to index
    %c0_54 = arith.constant 0 : index
    %74 = vector.load %arg2[%73, %c0_54] : memref<80x512xf32, #tpu.memory_space<vmem>>, vector<1x512xf32>
    %c18_55 = arith.constant 18 : index
    %c0_56 = arith.constant 0 : index
    %75 = vector.load %arg7[%c18_55, %c0_56] : memref<64x512xf32, #tpu.memory_space<vmem>>, vector<1x512xf32>
    tpu.vector_store %arg7[%c18_55, %c0_56], %74 {strides = array<i32>} : memref<64x512xf32, #tpu.memory_space<vmem>>, vector<1x512xf32>,
    %c19 = arith.constant 19 : index
    %76 = memref.load %arg1[%c19] : memref<64xi32, #tpu.memory_space<smem>>
    %77 = arith.index_cast %76 : i32 to index
    %c0_57 = arith.constant 0 : index
    %78 = vector.load %arg2[%77, %c0_57] : memref<80x512xf32, #tpu.memory_space<vmem>>, vector<1x512xf32>
    %c19_58 = arith.constant 19 : index
    %c0_59 = arith.constant 0 : index
    %79 = vector.load %arg7[%c19_58, %c0_59] : memref<64x512xf32, #tpu.memory_space<vmem>>, vector<1x512xf32>
    tpu.vector_store %arg7[%c19_58, %c0_59], %78 {strides = array<i32>} : memref<64x512xf32, #tpu.memory_space<vmem>>, vector<1x512xf32>,
    %c20 = arith.constant 20 : index
    %80 = memref.load %arg1[%c20] : memref<64xi32, #tpu.memory_space<smem>>
    %81 = arith.index_cast %80 : i32 to index
    %c0_60 = arith.constant 0 : index
    %82 = vector.load %arg2[%81, %c0_60] : memref<80x512xf32, #tpu.memory_space<vmem>>, vector<1x512xf32>
    %c20_61 = arith.constant 20 : index
    %c0_62 = arith.constant 0 : index
    %83 = vector.load %arg7[%c20_61, %c0_62] : memref<64x512xf32, #tpu.memory_space<vmem>>, vector<1x512xf32>
    tpu.vector_store %arg7[%c20_61, %c0_62], %82 {strides = array<i32>} : memref<64x512xf32, #tpu.memory_space<vmem>>, vector<1x512xf32>,
    %c21 = arith.constant 21 : index
    %84 = memref.load %arg1[%c21] : memref<64xi32, #tpu.memory_space<smem>>
    %85 = arith.index_cast %84 : i32 to index
    %c0_63 = arith.constant 0 : index
    %86 = vector.load %arg2[%85, %c0_63] : memref<80x512xf32, #tpu.memory_space<vmem>>, vector<1x512xf32>
    %c21_64 = arith.constant 21 : index
    %c0_65 = arith.constant 0 : index
    %87 = vector.load %arg7[%c21_64, %c0_65] : memref<64x512xf32, #tpu.memory_space<vmem>>, vector<1x512xf32>
    tpu.vector_store %arg7[%c21_64, %c0_65], %86 {strides = array<i32>} : memref<64x512xf32, #tpu.memory_space<vmem>>, vector<1x512xf32>,
    %c22 = arith.constant 22 : index
    %88 = memref.load %arg1[%c22] : memref<64xi32, #tpu.memory_space<smem>>
    %89 = arith.index_cast %88 : i32 to index
    %c0_66 = arith.constant 0 : index
    %90 = vector.load %arg2[%89, %c0_66] : memref<80x512xf32, #tpu.memory_space<vmem>>, vector<1x512xf32>
    %c22_67 = arith.constant 22 : index
    %c0_68 = arith.constant 0 : index
    %91 = vector.load %arg7[%c22_67, %c0_68] : memref<64x512xf32, #tpu.memory_space<vmem>>, vector<1x512xf32>
    tpu.vector_store %arg7[%c22_67, %c0_68], %90 {strides = array<i32>} : memref<64x512xf32, #tpu.memory_space<vmem>>, vector<1x512xf32>,
    %c23 = arith.constant 23 : index
    %92 = memref.load %arg1[%c23] : memref<64xi32, #tpu.memory_space<smem>>
    %93 = arith.index_cast %92 : i32 to index
    %c0_69 = arith.constant 0 : index
    %94 = vector.load %arg2[%93, %c0_69] : memref<80x512xf32, #tpu.memory_space<vmem>>, vector<1x512xf32>
    %c23_70 = arith.constant 23 : index
    %c0_71 = arith.constant 0 : index
    %95 = vector.load %arg7[%c23_70, %c0_71] : memref<64x512xf32, #tpu.memory_space<vmem>>, vector<1x512xf32>
    tpu.vector_store %arg7[%c23_70, %c0_71], %94 {strides = array<i32>} : memref<64x512xf32, #tpu.memory_space<vmem>>, vector<1x512xf32>,
    %c24 = arith.constant 24 : index
    %96 = memref.load %arg1[%c24] : memref<64xi32, #tpu.memory_space<smem>>
    %97 = arith.index_cast %96 : i32 to index
    %c0_72 = arith.constant 0 : index
    %98 = vector.load %arg2[%97, %c0_72] : memref<80x512xf32, #tpu.memory_space<vmem>>, vector<1x512xf32>
    %c24_73 = arith.constant 24 : index
    %c0_74 = arith.constant 0 : index
    %99 = vector.load %arg7[%c24_73, %c0_74] : memref<64x512xf32, #tpu.memory_space<vmem>>, vector<1x512xf32>
    tpu.vector_store %arg7[%c24_73, %c0_74], %98 {strides = array<i32>} : memref<64x512xf32, #tpu.memory_space<vmem>>, vector<1x512xf32>,
    %c25 = arith.constant 25 : index
    %100 = memref.load %arg1[%c25] : memref<64xi32, #tpu.memory_space<smem>>
    %101 = arith.index_cast %100 : i32 to index
    %c0_75 = arith.constant 0 : index
    %102 = vector.load %arg2[%101, %c0_75] : memref<80x512xf32, #tpu.memory_space<vmem>>, vector<1x512xf32>
    %c25_76 = arith.constant 25 : index
    %c0_77 = arith.constant 0 : index
    %103 = vector.load %arg7[%c25_76, %c0_77] : memref<64x512xf32, #tpu.memory_space<vmem>>, vector<1x512xf32>
    tpu.vector_store %arg7[%c25_76, %c0_77], %102 {strides = array<i32>} : memref<64x512xf32, #tpu.memory_space<vmem>>, vector<1x512xf32>,
    %c26 = arith.constant 26 : index
    %104 = memref.load %arg1[%c26] : memref<64xi32, #tpu.memory_space<smem>>
    %105 = arith.index_cast %104 : i32 to index
    %c0_78 = arith.constant 0 : index
    %106 = vector.load %arg2[%105, %c0_78] : memref<80x512xf32, #tpu.memory_space<vmem>>, vector<1x512xf32>
    %c26_79 = arith.constant 26 : index
    %c0_80 = arith.constant 0 : index
    %107 = vector.load %arg7[%c26_79, %c0_80] : memref<64x512xf32, #tpu.memory_space<vmem>>, vector<1x512xf32>
    tpu.vector_store %arg7[%c26_79, %c0_80], %106 {strides = array<i32>} : memref<64x512xf32, #tpu.memory_space<vmem>>, vector<1x512xf32>,
    %c27 = arith.constant 27 : index
    %108 = memref.load %arg1[%c27] : memref<64xi32, #tpu.memory_space<smem>>
    %109 = arith.index_cast %108 : i32 to index
    %c0_81 = arith.constant 0 : index
    %110 = vector.load %arg2[%109, %c0_81] : memref<80x512xf32, #tpu.memory_space<vmem>>, vector<1x512xf32>
    %c27_82 = arith.constant 27 : index
    %c0_83 = arith.constant 0 : index
    %111 = vector.load %arg7[%c27_82, %c0_83] : memref<64x512xf32, #tpu.memory_space<vmem>>, vector<1x512xf32>
    tpu.vector_store %arg7[%c27_82, %c0_83], %110 {strides = array<i32>} : memref<64x512xf32, #tpu.memory_space<vmem>>, vector<1x512xf32>,
    %c28 = arith.constant 28 : index
    %112 = memref.load %arg1[%c28] : memref<64xi32, #tpu.memory_space<smem>>
    %113 = arith.index_cast %112 : i32 to index
    %c0_84 = arith.constant 0 : index
    %114 = vector.load %arg2[%113, %c0_84] : memref<80x512xf32, #tpu.memory_space<vmem>>, vector<1x512xf32>
    %c28_85 = arith.constant 28 : index
    %c0_86 = arith.constant 0 : index
    %115 = vector.load %arg7[%c28_85, %c0_86] : memref<64x512xf32, #tpu.memory_space<vmem>>, vector<1x512xf32>
    tpu.vector_store %arg7[%c28_85, %c0_86], %114 {strides = array<i32>} : memref<64x512xf32, #tpu.memory_space<vmem>>, vector<1x512xf32>,
    %c29 = arith.constant 29 : index
    %116 = memref.load %arg1[%c29] : memref<64xi32, #tpu.memory_space<smem>>
    %117 = arith.index_cast %116 : i32 to index
    %c0_87 = arith.constant 0 : index
    %118 = vector.load %arg2[%117, %c0_87] : memref<80x512xf32, #tpu.memory_space<vmem>>, vector<1x512xf32>
    %c29_88 = arith.constant 29 : index
    %c0_89 = arith.constant 0 : index
    %119 = vector.load %arg7[%c29_88, %c0_89] : memref<64x512xf32, #tpu.memory_space<vmem>>, vector<1x512xf32>
    tpu.vector_store %arg7[%c29_88, %c0_89], %118 {strides = array<i32>} : memref<64x512xf32, #tpu.memory_space<vmem>>, vector<1x512xf32>,
    %c30 = arith.constant 30 : index
    %120 = memref.load %arg1[%c30] : memref<64xi32, #tpu.memory_space<smem>>
    %121 = arith.index_cast %120 : i32 to index
    %c0_90 = arith.constant 0 : index
    %122 = vector.load %arg2[%121, %c0_90] : memref<80x512xf32, #tpu.memory_space<vmem>>, vector<1x512xf32>
    %c30_91 = arith.constant 30 : index
    %c0_92 = arith.constant 0 : index
    %123 = vector.load %arg7[%c30_91, %c0_92] : memref<64x512xf32, #tpu.memory_space<vmem>>, vector<1x512xf32>
    tpu.vector_store %arg7[%c30_91, %c0_92], %122 {strides = array<i32>} : memref<64x512xf32, #tpu.memory_space<vmem>>, vector<1x512xf32>,
    %c31 = arith.constant 31 : index
    %124 = memref.load %arg1[%c31] : memref<64xi32, #tpu.memory_space<smem>>
    %125 = arith.index_cast %124 : i32 to index
    %c0_93 = arith.constant 0 : index
    %126 = vector.load %arg2[%125, %c0_93] : memref<80x512xf32, #tpu.memory_space<vmem>>, vector<1x512xf32>
    %c31_94 = arith.constant 31 : index
    %c0_95 = arith.constant 0 : index
    %127 = vector.load %arg7[%c31_94, %c0_95] : memref<64x512xf32, #tpu.memory_space<vmem>>, vector<1x512xf32>
    tpu.vector_store %arg7[%c31_94, %c0_95], %126 {strides = array<i32>} : memref<64x512xf32, #tpu.memory_space<vmem>>, vector<1x512xf32>,
    %c32 = arith.constant 32 : index
    %128 = memref.load %arg1[%c32] : memref<64xi32, #tpu.memory_space<smem>>
    %129 = arith.index_cast %128 : i32 to index
    %c0_96 = arith.constant 0 : index
    %130 = vector.load %arg2[%129, %c0_96] : memref<80x512xf32, #tpu.memory_space<vmem>>, vector<1x512xf32>
    %c32_97 = arith.constant 32 : index
    %c0_98 = arith.constant 0 : index
    %131 = vector.load %arg7[%c32_97, %c0_98] : memref<64x512xf32, #tpu.memory_space<vmem>>, vector<1x512xf32>
    tpu.vector_store %arg7[%c32_97, %c0_98], %130 {strides = array<i32>} : memref<64x512xf32, #tpu.memory_space<vmem>>, vector<1x512xf32>,
    %c33 = arith.constant 33 : index
    %132 = memref.load %arg1[%c33] : memref<64xi32, #tpu.memory_space<smem>>
    %133 = arith.index_cast %132 : i32 to index
    %c0_99 = arith.constant 0 : index
    %134 = vector.load %arg2[%133, %c0_99] : memref<80x512xf32, #tpu.memory_space<vmem>>, vector<1x512xf32>
    %c33_100 = arith.constant 33 : index
    %c0_101 = arith.constant 0 : index
    %135 = vector.load %arg7[%c33_100, %c0_101] : memref<64x512xf32, #tpu.memory_space<vmem>>, vector<1x512xf32>
    tpu.vector_store %arg7[%c33_100, %c0_101], %134 {strides = array<i32>} : memref<64x512xf32, #tpu.memory_space<vmem>>, vector<1x512xf32>,
    %c34 = arith.constant 34 : index
    %136 = memref.load %arg1[%c34] : memref<64xi32, #tpu.memory_space<smem>>
    %137 = arith.index_cast %136 : i32 to index
    %c0_102 = arith.constant 0 : index
    %138 = vector.load %arg2[%137, %c0_102] : memref<80x512xf32, #tpu.memory_space<vmem>>, vector<1x512xf32>
    %c34_103 = arith.constant 34 : index
    %c0_104 = arith.constant 0 : index
    %139 = vector.load %arg7[%c34_103, %c0_104] : memref<64x512xf32, #tpu.memory_space<vmem>>, vector<1x512xf32>
    tpu.vector_store %arg7[%c34_103, %c0_104], %138 {strides = array<i32>} : memref<64x512xf32, #tpu.memory_space<vmem>>, vector<1x512xf32>,
    %c35 = arith.constant 35 : index
    %140 = memref.load %arg1[%c35] : memref<64xi32, #tpu.memory_space<smem>>
    %141 = arith.index_cast %140 : i32 to index
    %c0_105 = arith.constant 0 : index
    %142 = vector.load %arg2[%141, %c0_105] : memref<80x512xf32, #tpu.memory_space<vmem>>, vector<1x512xf32>
    %c35_106 = arith.constant 35 : index
    %c0_107 = arith.constant 0 : index
    %143 = vector.load %arg7[%c35_106, %c0_107] : memref<64x512xf32, #tpu.memory_space<vmem>>, vector<1x512xf32>
    tpu.vector_store %arg7[%c35_106, %c0_107], %142 {strides = array<i32>} : memref<64x512xf32, #tpu.memory_space<vmem>>, vector<1x512xf32>,
    %c36 = arith.constant 36 : index
    %144 = memref.load %arg1[%c36] : memref<64xi32, #tpu.memory_space<smem>>
    %145 = arith.index_cast %144 : i32 to index
    %c0_108 = arith.constant 0 : index
    %146 = vector.load %arg2[%145, %c0_108] : memref<80x512xf32, #tpu.memory_space<vmem>>, vector<1x512xf32>
    %c36_109 = arith.constant 36 : index
    %c0_110 = arith.constant 0 : index
    %147 = vector.load %arg7[%c36_109, %c0_110] : memref<64x512xf32, #tpu.memory_space<vmem>>, vector<1x512xf32>
    tpu.vector_store %arg7[%c36_109, %c0_110], %146 {strides = array<i32>} : memref<64x512xf32, #tpu.memory_space<vmem>>, vector<1x512xf32>,
    %c37 = arith.constant 37 : index
    %148 = memref.load %arg1[%c37] : memref<64xi32, #tpu.memory_space<smem>>
    %149 = arith.index_cast %148 : i32 to index
    %c0_111 = arith.constant 0 : index
    %150 = vector.load %arg2[%149, %c0_111] : memref<80x512xf32, #tpu.memory_space<vmem>>, vector<1x512xf32>
    %c37_112 = arith.constant 37 : index
    %c0_113 = arith.constant 0 : index
    %151 = vector.load %arg7[%c37_112, %c0_113] : memref<64x512xf32, #tpu.memory_space<vmem>>, vector<1x512xf32>
    tpu.vector_store %arg7[%c37_112, %c0_113], %150 {strides = array<i32>} : memref<64x512xf32, #tpu.memory_space<vmem>>, vector<1x512xf32>,
    %c38 = arith.constant 38 : index
    %152 = memref.load %arg1[%c38] : memref<64xi32, #tpu.memory_space<smem>>
    %153 = arith.index_cast %152 : i32 to index
    %c0_114 = arith.constant 0 : index
    %154 = vector.load %arg2[%153, %c0_114] : memref<80x512xf32, #tpu.memory_space<vmem>>, vector<1x512xf32>
    %c38_115 = arith.constant 38 : index
    %c0_116 = arith.constant 0 : index
    %155 = vector.load %arg7[%c38_115, %c0_116] : memref<64x512xf32, #tpu.memory_space<vmem>>, vector<1x512xf32>
    tpu.vector_store %arg7[%c38_115, %c0_116], %154 {strides = array<i32>} : memref<64x512xf32, #tpu.memory_space<vmem>>, vector<1x512xf32>,
    %c39 = arith.constant 39 : index
    %156 = memref.load %arg1[%c39] : memref<64xi32, #tpu.memory_space<smem>>
    %157 = arith.index_cast %156 : i32 to index
    %c0_117 = arith.constant 0 : index
    %158 = vector.load %arg2[%157, %c0_117] : memref<80x512xf32, #tpu.memory_space<vmem>>, vector<1x512xf32>
    %c39_118 = arith.constant 39 : index
    %c0_119 = arith.constant 0 : index
    %159 = vector.load %arg7[%c39_118, %c0_119] : memref<64x512xf32, #tpu.memory_space<vmem>>, vector<1x512xf32>
    tpu.vector_store %arg7[%c39_118, %c0_119], %158 {strides = array<i32>} : memref<64x512xf32, #tpu.memory_space<vmem>>, vector<1x512xf32>,
    %c40 = arith.constant 40 : index
    %160 = memref.load %arg1[%c40] : memref<64xi32, #tpu.memory_space<smem>>
    %161 = arith.index_cast %160 : i32 to index
    %c0_120 = arith.constant 0 : index
    %162 = vector.load %arg2[%161, %c0_120] : memref<80x512xf32, #tpu.memory_space<vmem>>, vector<1x512xf32>
    %c40_121 = arith.constant 40 : index
    %c0_122 = arith.constant 0 : index
    %163 = vector.load %arg7[%c40_121, %c0_122] : memref<64x512xf32, #tpu.memory_space<vmem>>, vector<1x512xf32>
    tpu.vector_store %arg7[%c40_121, %c0_122], %162 {strides = array<i32>} : memref<64x512xf32, #tpu.memory_space<vmem>>, vector<1x512xf32>,
    %c41 = arith.constant 41 : index
    %164 = memref.load %arg1[%c41] : memref<64xi32, #tpu.memory_space<smem>>
    %165 = arith.index_cast %164 : i32 to index
    %c0_123 = arith.constant 0 : index
    %166 = vector.load %arg2[%165, %c0_123] : memref<80x512xf32, #tpu.memory_space<vmem>>, vector<1x512xf32>
    %c41_124 = arith.constant 41 : index
    %c0_125 = arith.constant 0 : index
    %167 = vector.load %arg7[%c41_124, %c0_125] : memref<64x512xf32, #tpu.memory_space<vmem>>, vector<1x512xf32>
    tpu.vector_store %arg7[%c41_124, %c0_125], %166 {strides = array<i32>} : memref<64x512xf32, #tpu.memory_space<vmem>>, vector<1x512xf32>,
    %c42 = arith.constant 42 : index
    %168 = memref.load %arg1[%c42] : memref<64xi32, #tpu.memory_space<smem>>
    %169 = arith.index_cast %168 : i32 to index
    %c0_126 = arith.constant 0 : index
    %170 = vector.load %arg2[%169, %c0_126] : memref<80x512xf32, #tpu.memory_space<vmem>>, vector<1x512xf32>
    %c42_127 = arith.constant 42 : index
    %c0_128 = arith.constant 0 : index
    %171 = vector.load %arg7[%c42_127, %c0_128] : memref<64x512xf32, #tpu.memory_space<vmem>>, vector<1x512xf32>
    tpu.vector_store %arg7[%c42_127, %c0_128], %170 {strides = array<i32>} : memref<64x512xf32, #tpu.memory_space<vmem>>, vector<1x512xf32>,
    %c43 = arith.constant 43 : index
    %172 = memref.load %arg1[%c43] : memref<64xi32, #tpu.memory_space<smem>>
    %173 = arith.index_cast %172 : i32 to index
    %c0_129 = arith.constant 0 : index
    %174 = vector.load %arg2[%173, %c0_129] : memref<80x512xf32, #tpu.memory_space<vmem>>, vector<1x512xf32>
    %c43_130 = arith.constant 43 : index
    %c0_131 = arith.constant 0 : index
    %175 = vector.load %arg7[%c43_130, %c0_131] : memref<64x512xf32, #tpu.memory_space<vmem>>, vector<1x512xf32>
    tpu.vector_store %arg7[%c43_130, %c0_131], %174 {strides = array<i32>} : memref<64x512xf32, #tpu.memory_space<vmem>>, vector<1x512xf32>,
    %c44 = arith.constant 44 : index
    %176 = memref.load %arg1[%c44] : memref<64xi32, #tpu.memory_space<smem>>
    %177 = arith.index_cast %176 : i32 to index
    %c0_132 = arith.constant 0 : index
    %178 = vector.load %arg2[%177, %c0_132] : memref<80x512xf32, #tpu.memory_space<vmem>>, vector<1x512xf32>
    %c44_133 = arith.constant 44 : index
    %c0_134 = arith.constant 0 : index
    %179 = vector.load %arg7[%c44_133, %c0_134] : memref<64x512xf32, #tpu.memory_space<vmem>>, vector<1x512xf32>
    tpu.vector_store %arg7[%c44_133, %c0_134], %178 {strides = array<i32>} : memref<64x512xf32, #tpu.memory_space<vmem>>, vector<1x512xf32>,
    %c45 = arith.constant 45 : index
    %180 = memref.load %arg1[%c45] : memref<64xi32, #tpu.memory_space<smem>>
    %181 = arith.index_cast %180 : i32 to index
    %c0_135 = arith.constant 0 : index
    %182 = vector.load %arg2[%181, %c0_135] : memref<80x512xf32, #tpu.memory_space<vmem>>, vector<1x512xf32>
    %c45_136 = arith.constant 45 : index
    %c0_137 = arith.constant 0 : index
    %183 = vector.load %arg7[%c45_136, %c0_137] : memref<64x512xf32, #tpu.memory_space<vmem>>, vector<1x512xf32>
    tpu.vector_store %arg7[%c45_136, %c0_137], %182 {strides = array<i32>} : memref<64x512xf32, #tpu.memory_space<vmem>>, vector<1x512xf32>,
    %c46 = arith.constant 46 : index
    %184 = memref.load %arg1[%c46] : memref<64xi32, #tpu.memory_space<smem>>
    %185 = arith.index_cast %184 : i32 to index
    %c0_138 = arith.constant 0 : index
    %186 = vector.load %arg2[%185, %c0_138] : memref<80x512xf32, #tpu.memory_space<vmem>>, vector<1x512xf32>
    %c46_139 = arith.constant 46 : index
    %c0_140 = arith.constant 0 : index
    %187 = vector.load %arg7[%c46_139, %c0_140] : memref<64x512xf32, #tpu.memory_space<vmem>>, vector<1x512xf32>
    tpu.vector_store %arg7[%c46_139, %c0_140], %186 {strides = array<i32>} : memref<64x512xf32, #tpu.memory_space<vmem>>, vector<1x512xf32>,
    %c47 = arith.constant 47 : index
    %188 = memref.load %arg1[%c47] : memref<64xi32, #tpu.memory_space<smem>>
    %189 = arith.index_cast %188 : i32 to index
    %c0_141 = arith.constant 0 : index
    %190 = vector.load %arg2[%189, %c0_141] : memref<80x512xf32, #tpu.memory_space<vmem>>, vector<1x512xf32>
    %c47_142 = arith.constant 47 : index
    %c0_143 = arith.constant 0 : index
    %191 = vector.load %arg7[%c47_142, %c0_143] : memref<64x512xf32, #tpu.memory_space<vmem>>, vector<1x512xf32>
    tpu.vector_store %arg7[%c47_142, %c0_143], %190 {strides = array<i32>} : memref<64x512xf32, #tpu.memory_space<vmem>>, vector<1x512xf32>,
    %c48 = arith.constant 48 : index
    %192 = memref.load %arg1[%c48] : memref<64xi32, #tpu.memory_space<smem>>
    %193 = arith.index_cast %192 : i32 to index
    %c0_144 = arith.constant 0 : index
    %194 = vector.load %arg2[%193, %c0_144] : memref<80x512xf32, #tpu.memory_space<vmem>>, vector<1x512xf32>
    %c48_145 = arith.constant 48 : index
    %c0_146 = arith.constant 0 : index
    %195 = vector.load %arg7[%c48_145, %c0_146] : memref<64x512xf32, #tpu.memory_space<vmem>>, vector<1x512xf32>
    tpu.vector_store %arg7[%c48_145, %c0_146], %194 {strides = array<i32>} : memref<64x512xf32, #tpu.memory_space<vmem>>, vector<1x512xf32>,
    %c49 = arith.constant 49 : index
    %196 = memref.load %arg1[%c49] : memref<64xi32, #tpu.memory_space<smem>>
    %197 = arith.index_cast %196 : i32 to index
    %c0_147 = arith.constant 0 : index
    %198 = vector.load %arg2[%197, %c0_147] : memref<80x512xf32, #tpu.memory_space<vmem>>, vector<1x512xf32>
    %c49_148 = arith.constant 49 : index
    %c0_149 = arith.constant 0 : index
    %199 = vector.load %arg7[%c49_148, %c0_149] : memref<64x512xf32, #tpu.memory_space<vmem>>, vector<1x512xf32>
    tpu.vector_store %arg7[%c49_148, %c0_149], %198 {strides = array<i32>} : memref<64x512xf32, #tpu.memory_space<vmem>>, vector<1x512xf32>,
    %c50 = arith.constant 50 : index
    %200 = memref.load %arg1[%c50] : memref<64xi32, #tpu.memory_space<smem>>
    %201 = arith.index_cast %200 : i32 to index
    %c0_150 = arith.constant 0 : index
    %202 = vector.load %arg2[%201, %c0_150] : memref<80x512xf32, #tpu.memory_space<vmem>>, vector<1x512xf32>
    %c50_151 = arith.constant 50 : index
    %c0_152 = arith.constant 0 : index
    %203 = vector.load %arg7[%c50_151, %c0_152] : memref<64x512xf32, #tpu.memory_space<vmem>>, vector<1x512xf32>
    tpu.vector_store %arg7[%c50_151, %c0_152], %202 {strides = array<i32>} : memref<64x512xf32, #tpu.memory_space<vmem>>, vector<1x512xf32>,
    %c51 = arith.constant 51 : index
    %204 = memref.load %arg1[%c51] : memref<64xi32, #tpu.memory_space<smem>>
    %205 = arith.index_cast %204 : i32 to index
    %c0_153 = arith.constant 0 : index
    %206 = vector.load %arg2[%205, %c0_153] : memref<80x512xf32, #tpu.memory_space<vmem>>, vector<1x512xf32>
    %c51_154 = arith.constant 51 : index
    %c0_155 = arith.constant 0 : index
    %207 = vector.load %arg7[%c51_154, %c0_155] : memref<64x512xf32, #tpu.memory_space<vmem>>, vector<1x512xf32>
    tpu.vector_store %arg7[%c51_154, %c0_155], %206 {strides = array<i32>} : memref<64x512xf32, #tpu.memory_space<vmem>>, vector<1x512xf32>,
    %c52 = arith.constant 52 : index
    %208 = memref.load %arg1[%c52] : memref<64xi32, #tpu.memory_space<smem>>
    %209 = arith.index_cast %208 : i32 to index
    %c0_156 = arith.constant 0 : index
    %210 = vector.load %arg2[%209, %c0_156] : memref<80x512xf32, #tpu.memory_space<vmem>>, vector<1x512xf32>
    %c52_157 = arith.constant 52 : index
    %c0_158 = arith.constant 0 : index
    %211 = vector.load %arg7[%c52_157, %c0_158] : memref<64x512xf32, #tpu.memory_space<vmem>>, vector<1x512xf32>
    tpu.vector_store %arg7[%c52_157, %c0_158], %210 {strides = array<i32>} : memref<64x512xf32, #tpu.memory_space<vmem>>, vector<1x512xf32>,
    %c53 = arith.constant 53 : index
    %212 = memref.load %arg1[%c53] : memref<64xi32, #tpu.memory_space<smem>>
    %213 = arith.index_cast %212 : i32 to index
    %c0_159 = arith.constant 0 : index
    %214 = vector.load %arg2[%213, %c0_159] : memref<80x512xf32, #tpu.memory_space<vmem>>, vector<1x512xf32>
    %c53_160 = arith.constant 53 : index
    %c0_161 = arith.constant 0 : index
    %215 = vector.load %arg7[%c53_160, %c0_161] : memref<64x512xf32, #tpu.memory_space<vmem>>, vector<1x512xf32>
    tpu.vector_store %arg7[%c53_160, %c0_161], %214 {strides = array<i32>} : memref<64x512xf32, #tpu.memory_space<vmem>>, vector<1x512xf32>,
    %c54 = arith.constant 54 : index
    %216 = memref.load %arg1[%c54] : memref<64xi32, #tpu.memory_space<smem>>
    %217 = arith.index_cast %216 : i32 to index
    %c0_162 = arith.constant 0 : index
    %218 = vector.load %arg2[%217, %c0_162] : memref<80x512xf32, #tpu.memory_space<vmem>>, vector<1x512xf32>
    %c54_163 = arith.constant 54 : index
    %c0_164 = arith.constant 0 : index
    %219 = vector.load %arg7[%c54_163, %c0_164] : memref<64x512xf32, #tpu.memory_space<vmem>>, vector<1x512xf32>
    tpu.vector_store %arg7[%c54_163, %c0_164], %218 {strides = array<i32>} : memref<64x512xf32, #tpu.memory_space<vmem>>, vector<1x512xf32>,
    %c55 = arith.constant 55 : index
    %220 = memref.load %arg1[%c55] : memref<64xi32, #tpu.memory_space<smem>>
    %221 = arith.index_cast %220 : i32 to index
    %c0_165 = arith.constant 0 : index
    %222 = vector.load %arg2[%221, %c0_165] : memref<80x512xf32, #tpu.memory_space<vmem>>, vector<1x512xf32>
    %c55_166 = arith.constant 55 : index
    %c0_167 = arith.constant 0 : index
    %223 = vector.load %arg7[%c55_166, %c0_167] : memref<64x512xf32, #tpu.memory_space<vmem>>, vector<1x512xf32>
    tpu.vector_store %arg7[%c55_166, %c0_167], %222 {strides = array<i32>} : memref<64x512xf32, #tpu.memory_space<vmem>>, vector<1x512xf32>,
    %c56 = arith.constant 56 : index
    %224 = memref.load %arg1[%c56] : memref<64xi32, #tpu.memory_space<smem>>
    %225 = arith.index_cast %224 : i32 to index
    %c0_168 = arith.constant 0 : index
    %226 = vector.load %arg2[%225, %c0_168] : memref<80x512xf32, #tpu.memory_space<vmem>>, vector<1x512xf32>
    %c56_169 = arith.constant 56 : index
    %c0_170 = arith.constant 0 : index
    %227 = vector.load %arg7[%c56_169, %c0_170] : memref<64x512xf32, #tpu.memory_space<vmem>>, vector<1x512xf32>
    tpu.vector_store %arg7[%c56_169, %c0_170], %226 {strides = array<i32>} : memref<64x512xf32, #tpu.memory_space<vmem>>, vector<1x512xf32>,
    %c57 = arith.constant 57 : index
    %228 = memref.load %arg1[%c57] : memref<64xi32, #tpu.memory_space<smem>>
    %229 = arith.index_cast %228 : i32 to index
    %c0_171 = arith.constant 0 : index
    %230 = vector.load %arg2[%229, %c0_171] : memref<80x512xf32, #tpu.memory_space<vmem>>, vector<1x512xf32>
    %c57_172 = arith.constant 57 : index
    %c0_173 = arith.constant 0 : index
    %231 = vector.load %arg7[%c57_172, %c0_173] : memref<64x512xf32, #tpu.memory_space<vmem>>, vector<1x512xf32>
    tpu.vector_store %arg7[%c57_172, %c0_173], %230 {strides = array<i32>} : memref<64x512xf32, #tpu.memory_space<vmem>>, vector<1x512xf32>,
    %c58 = arith.constant 58 : index
    %232 = memref.load %arg1[%c58] : memref<64xi32, #tpu.memory_space<smem>>
    %233 = arith.index_cast %232 : i32 to index
    %c0_174 = arith.constant 0 : index
    %234 = vector.load %arg2[%233, %c0_174] : memref<80x512xf32, #tpu.memory_space<vmem>>, vector<1x512xf32>
    %c58_175 = arith.constant 58 : index
    %c0_176 = arith.constant 0 : index
    %235 = vector.load %arg7[%c58_175, %c0_176] : memref<64x512xf32, #tpu.memory_space<vmem>>, vector<1x512xf32>
    tpu.vector_store %arg7[%c58_175, %c0_176], %234 {strides = array<i32>} : memref<64x512xf32, #tpu.memory_space<vmem>>, vector<1x512xf32>,
    %c59 = arith.constant 59 : index
    %236 = memref.load %arg1[%c59] : memref<64xi32, #tpu.memory_space<smem>>
    %237 = arith.index_cast %236 : i32 to index
    %c0_177 = arith.constant 0 : index
    %238 = vector.load %arg2[%237, %c0_177] : memref<80x512xf32, #tpu.memory_space<vmem>>, vector<1x512xf32>
    %c59_178 = arith.constant 59 : index
    %c0_179 = arith.constant 0 : index
    %239 = vector.load %arg7[%c59_178, %c0_179] : memref<64x512xf32, #tpu.memory_space<vmem>>, vector<1x512xf32>
    tpu.vector_store %arg7[%c59_178, %c0_179], %238 {strides = array<i32>} : memref<64x512xf32, #tpu.memory_space<vmem>>, vector<1x512xf32>,
    %c60 = arith.constant 60 : index
    %240 = memref.load %arg1[%c60] : memref<64xi32, #tpu.memory_space<smem>>
    %241 = arith.index_cast %240 : i32 to index
    %c0_180 = arith.constant 0 : index
    %242 = vector.load %arg2[%241, %c0_180] : memref<80x512xf32, #tpu.memory_space<vmem>>, vector<1x512xf32>
    %c60_181 = arith.constant 60 : index
    %c0_182 = arith.constant 0 : index
    %243 = vector.load %arg7[%c60_181, %c0_182] : memref<64x512xf32, #tpu.memory_space<vmem>>, vector<1x512xf32>
    tpu.vector_store %arg7[%c60_181, %c0_182], %242 {strides = array<i32>} : memref<64x512xf32, #tpu.memory_space<vmem>>, vector<1x512xf32>,
    %c61 = arith.constant 61 : index
    %244 = memref.load %arg1[%c61] : memref<64xi32, #tpu.memory_space<smem>>
    %245 = arith.index_cast %244 : i32 to index
    %c0_183 = arith.constant 0 : index
    %246 = vector.load %arg2[%245, %c0_183] : memref<80x512xf32, #tpu.memory_space<vmem>>, vector<1x512xf32>
    %c61_184 = arith.constant 61 : index
    %c0_185 = arith.constant 0 : index
    %247 = vector.load %arg7[%c61_184, %c0_185] : memref<64x512xf32, #tpu.memory_space<vmem>>, vector<1x512xf32>
    tpu.vector_store %arg7[%c61_184, %c0_185], %246 {strides = array<i32>} : memref<64x512xf32, #tpu.memory_space<vmem>>, vector<1x512xf32>,
    %c62 = arith.constant 62 : index
    %248 = memref.load %arg1[%c62] : memref<64xi32, #tpu.memory_space<smem>>
    %249 = arith.index_cast %248 : i32 to index
    %c0_186 = arith.constant 0 : index
    %250 = vector.load %arg2[%249, %c0_186] : memref<80x512xf32, #tpu.memory_space<vmem>>, vector<1x512xf32>
    %c62_187 = arith.constant 62 : index
    %c0_188 = arith.constant 0 : index
    %251 = vector.load %arg7[%c62_187, %c0_188] : memref<64x512xf32, #tpu.memory_space<vmem>>, vector<1x512xf32>
    tpu.vector_store %arg7[%c62_187, %c0_188], %250 {strides = array<i32>} : memref<64x512xf32, #tpu.memory_space<vmem>>, vector<1x512xf32>,
    %c63 = arith.constant 63 : index
    %252 = memref.load %arg1[%c63] : memref<64xi32, #tpu.memory_space<smem>>
    %253 = arith.index_cast %252 : i32 to index
    %c0_189 = arith.constant 0 : index
    %254 = vector.load %arg2[%253, %c0_189] : memref<80x512xf32, #tpu.memory_space<vmem>>, vector<1x512xf32>
    %c63_190 = arith.constant 63 : index
    %c0_191 = arith.constant 0 : index
    %255 = vector.load %arg7[%c63_190, %c0_191] : memref<64x512xf32, #tpu.memory_space<vmem>>, vector<1x512xf32>
    tpu.vector_store %arg7[%c63_190, %c0_191], %254 {strides = array<i32>} : memref<64x512xf32, #tpu.memory_space<vmem>>, vector<1x512xf32>,
    %c0_192 = arith.constant 0 : index
    %c0_193 = arith.constant 0 : index
    %256 = vector.load %arg3[%c0_192, %c0_193] : memref<128x512xf32, #tpu.memory_space<vmem>>, vector<128x512xf32>
    %c0_194 = arith.constant 0 : index
    %c0_195 = arith.constant 0 : index
    %257 = vector.load %arg4[%c0_194, %c0_195] : memref<256x512xf32, #tpu.memory_space<vmem>>, vector<256x512xf32>
    %c0_196 = arith.constant 0 : index
    %c0_197 = arith.constant 0 : index
    %258 = vector.load %arg5[%c0_196, %c0_197] : memref<8x512xf32, #tpu.memory_space<vmem>>, vector<8x512xf32>
    %cst = arith.constant 0.000000e+00 : f32
    %259 = vector.broadcast %cst : f32 to vector<8x128xf32>
    %c0_i32 = arith.constant 0 : i32
    %c8_i32 = arith.constant 8 : i32
    %260 = arith.muli %c0_i32, %c8_i32 : i32
    %261 = tpu.assume_multiple %260, 8 : i32
    %262 = arith.index_cast %261 : i32 to index
    %c0_198 = arith.constant 0 : index
    %263 = vector.load %arg7[%262, %c0_198] : memref<64x512xf32, #tpu.memory_space<vmem>>, vector<8x512xf32>
    %cst_199 = arith.constant dense<0.000000e+00> : vector<8x512xf32>
    %264 = tpu.matmul %259, %256, %cst_199 {dimension_numbers = #tpu.dot_dimension_numbers<[1], [0], [0], [1], [0, 0, 1, 1], [], []>} : vector<8x128xf32>, vector<128x512xf32>, vector<8x512xf32> -> vector<8x512xf32>
    %265 = arith.addf %263, %264 : vector<8x512xf32>
    %266 = vector.extract_strided_slice %265 {offsets = [0, 0], sizes = [8, 128], strides = [1, 1]} : vector<8x512xf32> to vector<8x128xf32>
    %267 = arith.negf %266 : vector<8x128xf32>
    %268 = math.exp %267 : vector<8x128xf32>
    %cst_200 = arith.constant 1.000000e+00 : f32
    %269 = vector.broadcast %cst_200 : f32 to vector<8x128xf32>
    %270 = arith.addf %269, %268 : vector<8x128xf32>
    %271 = arith.divf %269, %270 : vector<8x128xf32>
    %272 = vector.extract_strided_slice %265 {offsets = [0, 128], sizes = [8, 128], strides = [1, 1]} : vector<8x512xf32> to vector<8x128xf32>
    %273 = arith.negf %272 : vector<8x128xf32>
    %274 = math.exp %273 : vector<8x128xf32>
    %cst_201 = arith.constant 1.000000e+00 : f32
    %275 = vector.broadcast %cst_201 : f32 to vector<8x128xf32>
    %276 = arith.addf %275, %274 : vector<8x128xf32>
    %277 = arith.divf %275, %276 : vector<8x128xf32>
    %278 = vector.extract_strided_slice %265 {offsets = [0, 256], sizes = [8, 128], strides = [1, 1]} : vector<8x512xf32> to vector<8x128xf32>
    %279 = math.tanh %278 : vector<8x128xf32>
    %280 = vector.extract_strided_slice %265 {offsets = [0, 384], sizes = [8, 128], strides = [1, 1]} : vector<8x512xf32> to vector<8x128xf32>
    %281 = arith.negf %280 : vector<8x128xf32>
    %282 = math.exp %281 : vector<8x128xf32>
    %cst_202 = arith.constant 1.000000e+00 : f32
    %283 = vector.broadcast %cst_202 : f32 to vector<8x128xf32>
    %284 = arith.addf %283, %282 : vector<8x128xf32>
    %285 = arith.divf %283, %284 : vector<8x128xf32>
    %286 = arith.mulf %277, %259 : vector<8x128xf32>
    %287 = arith.mulf %271, %279 : vector<8x128xf32>
    %288 = arith.addf %286, %287 : vector<8x128xf32>
    %289 = math.tanh %288 : vector<8x128xf32>
    %290 = arith.mulf %285, %289 : vector<8x128xf32>
    %291 = tpu.concatenate %290, %259 in 1 : vector<8x128xf32>, vector<8x128xf32> -> vector<8x256xf32>
    %cst_203 = arith.constant dense<0.000000e+00> : vector<8x512xf32>
    %292 = tpu.matmul %291, %257, %cst_203 {dimension_numbers = #tpu.dot_dimension_numbers<[1], [0], [0], [1], [0, 0, 1, 1], [], []>} : vector<8x256xf32>, vector<256x512xf32>, vector<8x512xf32> -> vector<8x512xf32>
    %293 = arith.addf %258, %292 : vector<8x512xf32>
    %294 = vector.extract_strided_slice %293 {offsets = [0, 0], sizes = [8, 128], strides = [1, 1]} : vector<8x512xf32> to vector<8x128xf32>
    %295 = arith.negf %294 : vector<8x128xf32>
    %296 = math.exp %295 : vector<8x128xf32>
    %cst_204 = arith.constant 1.000000e+00 : f32
    %297 = vector.broadcast %cst_204 : f32 to vector<8x128xf32>
    %298 = arith.addf %297, %296 : vector<8x128xf32>
    %299 = arith.divf %297, %298 : vector<8x128xf32>
    %300 = vector.extract_strided_slice %293 {offsets = [0, 128], sizes = [8, 128], strides = [1, 1]} : vector<8x512xf32> to vector<8x128xf32>
    %301 = arith.negf %300 : vector<8x128xf32>
    %302 = math.exp %301 : vector<8x128xf32>
    %cst_205 = arith.constant 1.000000e+00 : f32
    %303 = vector.broadcast %cst_205 : f32 to vector<8x128xf32>
    %304 = arith.addf %303, %302 : vector<8x128xf32>
    %305 = arith.divf %303, %304 : vector<8x128xf32>
    %306 = vector.extract_strided_slice %293 {offsets = [0, 256], sizes = [8, 128], strides = [1, 1]} : vector<8x512xf32> to vector<8x128xf32>
    %307 = math.tanh %306 : vector<8x128xf32>
    %308 = vector.extract_strided_slice %293 {offsets = [0, 384], sizes = [8, 128], strides = [1, 1]} : vector<8x512xf32> to vector<8x128xf32>
    %309 = arith.negf %308 : vector<8x128xf32>
    %310 = math.exp %309 : vector<8x128xf32>
    %cst_206 = arith.constant 1.000000e+00 : f32
    %311 = vector.broadcast %cst_206 : f32 to vector<8x128xf32>
    %312 = arith.addf %311, %310 : vector<8x128xf32>
    %313 = arith.divf %311, %312 : vector<8x128xf32>
    %314 = arith.mulf %305, %259 : vector<8x128xf32>
    %315 = arith.mulf %299, %307 : vector<8x128xf32>
    %316 = arith.addf %314, %315 : vector<8x128xf32>
    %317 = math.tanh %316 : vector<8x128xf32>
    %318 = arith.mulf %313, %317 : vector<8x128xf32>
    %c1_i32 = arith.constant 1 : i32
    %c8_i32_207 = arith.constant 8 : i32
    %319 = arith.muli %c1_i32, %c8_i32_207 : i32
    %320 = tpu.assume_multiple %319, 8 : i32
    %321 = arith.index_cast %320 : i32 to index
    %c0_208 = arith.constant 0 : index
    %322 = vector.load %arg7[%321, %c0_208] : memref<64x512xf32, #tpu.memory_space<vmem>>, vector<8x512xf32>
    %cst_209 = arith.constant dense<0.000000e+00> : vector<8x512xf32>
    %323 = tpu.matmul %290, %256, %cst_209 {dimension_numbers = #tpu.dot_dimension_numbers<[1], [0], [0], [1], [0, 0, 1, 1], [], []>} : vector<8x128xf32>, vector<128x512xf32>, vector<8x512xf32> -> vector<8x512xf32>
    %324 = arith.addf %322, %323 : vector<8x512xf32>
    %325 = vector.extract_strided_slice %324 {offsets = [0, 0], sizes = [8, 128], strides = [1, 1]} : vector<8x512xf32> to vector<8x128xf32>
    %326 = arith.negf %325 : vector<8x128xf32>
    %327 = math.exp %326 : vector<8x128xf32>
    %cst_210 = arith.constant 1.000000e+00 : f32
    %328 = vector.broadcast %cst_210 : f32 to vector<8x128xf32>
    %329 = arith.addf %328, %327 : vector<8x128xf32>
    %330 = arith.divf %328, %329 : vector<8x128xf32>
    %331 = vector.extract_strided_slice %324 {offsets = [0, 128], sizes = [8, 128], strides = [1, 1]} : vector<8x512xf32> to vector<8x128xf32>
    %332 = arith.negf %331 : vector<8x128xf32>
    %333 = math.exp %332 : vector<8x128xf32>
    %cst_211 = arith.constant 1.000000e+00 : f32
    %334 = vector.broadcast %cst_211 : f32 to vector<8x128xf32>
    %335 = arith.addf %334, %333 : vector<8x128xf32>
    %336 = arith.divf %334, %335 : vector<8x128xf32>
    %337 = vector.extract_strided_slice %324 {offsets = [0, 256], sizes = [8, 128], strides = [1, 1]} : vector<8x512xf32> to vector<8x128xf32>
    %338 = math.tanh %337 : vector<8x128xf32>
    %339 = vector.extract_strided_slice %324 {offsets = [0, 384], sizes = [8, 128], strides = [1, 1]} : vector<8x512xf32> to vector<8x128xf32>
    %340 = arith.negf %339 : vector<8x128xf32>
    %341 = math.exp %340 : vector<8x128xf32>
    %cst_212 = arith.constant 1.000000e+00 : f32
    %342 = vector.broadcast %cst_212 : f32 to vector<8x128xf32>
    %343 = arith.addf %342, %341 : vector<8x128xf32>
    %344 = arith.divf %342, %343 : vector<8x128xf32>
    %345 = arith.mulf %336, %288 : vector<8x128xf32>
    %346 = arith.mulf %330, %338 : vector<8x128xf32>
    %347 = arith.addf %345, %346 : vector<8x128xf32>
    %348 = math.tanh %347 : vector<8x128xf32>
    %349 = arith.mulf %344, %348 : vector<8x128xf32>
    %350 = tpu.concatenate %349, %318 in 1 : vector<8x128xf32>, vector<8x128xf32> -> vector<8x256xf32>
    %cst_213 = arith.constant dense<0.000000e+00> : vector<8x512xf32>
    %351 = tpu.matmul %350, %257, %cst_213 {dimension_numbers = #tpu.dot_dimension_numbers<[1], [0], [0], [1], [0, 0, 1, 1], [], []>} : vector<8x256xf32>, vector<256x512xf32>, vector<8x512xf32> -> vector<8x512xf32>
    %352 = arith.addf %258, %351 : vector<8x512xf32>
    %353 = vector.extract_strided_slice %352 {offsets = [0, 0], sizes = [8, 128], strides = [1, 1]} : vector<8x512xf32> to vector<8x128xf32>
    %354 = arith.negf %353 : vector<8x128xf32>
    %355 = math.exp %354 : vector<8x128xf32>
    %cst_214 = arith.constant 1.000000e+00 : f32
    %356 = vector.broadcast %cst_214 : f32 to vector<8x128xf32>
    %357 = arith.addf %356, %355 : vector<8x128xf32>
    %358 = arith.divf %356, %357 : vector<8x128xf32>
    %359 = vector.extract_strided_slice %352 {offsets = [0, 128], sizes = [8, 128], strides = [1, 1]} : vector<8x512xf32> to vector<8x128xf32>
    %360 = arith.negf %359 : vector<8x128xf32>
    %361 = math.exp %360 : vector<8x128xf32>
    %cst_215 = arith.constant 1.000000e+00 : f32
    %362 = vector.broadcast %cst_215 : f32 to vector<8x128xf32>
    %363 = arith.addf %362, %361 : vector<8x128xf32>
    %364 = arith.divf %362, %363 : vector<8x128xf32>
    %365 = vector.extract_strided_slice %352 {offsets = [0, 256], sizes = [8, 128], strides = [1, 1]} : vector<8x512xf32> to vector<8x128xf32>
    %366 = math.tanh %365 : vector<8x128xf32>
    %367 = vector.extract_strided_slice %352 {offsets = [0, 384], sizes = [8, 128], strides = [1, 1]} : vector<8x512xf32> to vector<8x128xf32>
    %368 = arith.negf %367 : vector<8x128xf32>
    %369 = math.exp %368 : vector<8x128xf32>
    %cst_216 = arith.constant 1.000000e+00 : f32
    %370 = vector.broadcast %cst_216 : f32 to vector<8x128xf32>
    %371 = arith.addf %370, %369 : vector<8x128xf32>
    %372 = arith.divf %370, %371 : vector<8x128xf32>
    %373 = arith.mulf %364, %316 : vector<8x128xf32>
    %374 = arith.mulf %358, %366 : vector<8x128xf32>
    %375 = arith.addf %373, %374 : vector<8x128xf32>
    %376 = math.tanh %375 : vector<8x128xf32>
    %377 = arith.mulf %372, %376 : vector<8x128xf32>
    %c2_i32 = arith.constant 2 : i32
    %c8_i32_217 = arith.constant 8 : i32
    %378 = arith.muli %c2_i32, %c8_i32_217 : i32
    %379 = tpu.assume_multiple %378, 8 : i32
    %380 = arith.index_cast %379 : i32 to index
    %c0_218 = arith.constant 0 : index
    %381 = vector.load %arg7[%380, %c0_218] : memref<64x512xf32, #tpu.memory_space<vmem>>, vector<8x512xf32>
    %cst_219 = arith.constant dense<0.000000e+00> : vector<8x512xf32>
    %382 = tpu.matmul %349, %256, %cst_219 {dimension_numbers = #tpu.dot_dimension_numbers<[1], [0], [0], [1], [0, 0, 1, 1], [], []>} : vector<8x128xf32>, vector<128x512xf32>, vector<8x512xf32> -> vector<8x512xf32>
    %383 = arith.addf %381, %382 : vector<8x512xf32>
    %384 = vector.extract_strided_slice %383 {offsets = [0, 0], sizes = [8, 128], strides = [1, 1]} : vector<8x512xf32> to vector<8x128xf32>
    %385 = arith.negf %384 : vector<8x128xf32>
    %386 = math.exp %385 : vector<8x128xf32>
    %cst_220 = arith.constant 1.000000e+00 : f32
    %387 = vector.broadcast %cst_220 : f32 to vector<8x128xf32>
    %388 = arith.addf %387, %386 : vector<8x128xf32>
    %389 = arith.divf %387, %388 : vector<8x128xf32>
    %390 = vector.extract_strided_slice %383 {offsets = [0, 128], sizes = [8, 128], strides = [1, 1]} : vector<8x512xf32> to vector<8x128xf32>
    %391 = arith.negf %390 : vector<8x128xf32>
    %392 = math.exp %391 : vector<8x128xf32>
    %cst_221 = arith.constant 1.000000e+00 : f32
    %393 = vector.broadcast %cst_221 : f32 to vector<8x128xf32>
    %394 = arith.addf %393, %392 : vector<8x128xf32>
    %395 = arith.divf %393, %394 : vector<8x128xf32>
    %396 = vector.extract_strided_slice %383 {offsets = [0, 256], sizes = [8, 128], strides = [1, 1]} : vector<8x512xf32> to vector<8x128xf32>
    %397 = math.tanh %396 : vector<8x128xf32>
    %398 = vector.extract_strided_slice %383 {offsets = [0, 384], sizes = [8, 128], strides = [1, 1]} : vector<8x512xf32> to vector<8x128xf32>
    %399 = arith.negf %398 : vector<8x128xf32>
    %400 = math.exp %399 : vector<8x128xf32>
    %cst_222 = arith.constant 1.000000e+00 : f32
    %401 = vector.broadcast %cst_222 : f32 to vector<8x128xf32>
    %402 = arith.addf %401, %400 : vector<8x128xf32>
    %403 = arith.divf %401, %402 : vector<8x128xf32>
    %404 = arith.mulf %395, %347 : vector<8x128xf32>
    %405 = arith.mulf %389, %397 : vector<8x128xf32>
    %406 = arith.addf %404, %405 : vector<8x128xf32>
    %407 = math.tanh %406 : vector<8x128xf32>
    %408 = arith.mulf %403, %407 : vector<8x128xf32>
    %409 = tpu.concatenate %408, %377 in 1 : vector<8x128xf32>, vector<8x128xf32> -> vector<8x256xf32>
    %cst_223 = arith.constant dense<0.000000e+00> : vector<8x512xf32>
    %410 = tpu.matmul %409, %257, %cst_223 {dimension_numbers = #tpu.dot_dimension_numbers<[1], [0], [0], [1], [0, 0, 1, 1], [], []>} : vector<8x256xf32>, vector<256x512xf32>, vector<8x512xf32> -> vector<8x512xf32>
    %411 = arith.addf %258, %410 : vector<8x512xf32>
    %412 = vector.extract_strided_slice %411 {offsets = [0, 0], sizes = [8, 128], strides = [1, 1]} : vector<8x512xf32> to vector<8x128xf32>
    %413 = arith.negf %412 : vector<8x128xf32>
    %414 = math.exp %413 : vector<8x128xf32>
    %cst_224 = arith.constant 1.000000e+00 : f32
    %415 = vector.broadcast %cst_224 : f32 to vector<8x128xf32>
    %416 = arith.addf %415, %414 : vector<8x128xf32>
    %417 = arith.divf %415, %416 : vector<8x128xf32>
    %418 = vector.extract_strided_slice %411 {offsets = [0, 128], sizes = [8, 128], strides = [1, 1]} : vector<8x512xf32> to vector<8x128xf32>
    %419 = arith.negf %418 : vector<8x128xf32>
    %420 = math.exp %419 : vector<8x128xf32>
    %cst_225 = arith.constant 1.000000e+00 : f32
    %421 = vector.broadcast %cst_225 : f32 to vector<8x128xf32>
    %422 = arith.addf %421, %420 : vector<8x128xf32>
    %423 = arith.divf %421, %422 : vector<8x128xf32>
    %424 = vector.extract_strided_slice %411 {offsets = [0, 256], sizes = [8, 128], strides = [1, 1]} : vector<8x512xf32> to vector<8x128xf32>
    %425 = math.tanh %424 : vector<8x128xf32>
    %426 = vector.extract_strided_slice %411 {offsets = [0, 384], sizes = [8, 128], strides = [1, 1]} : vector<8x512xf32> to vector<8x128xf32>
    %427 = arith.negf %426 : vector<8x128xf32>
    %428 = math.exp %427 : vector<8x128xf32>
    %cst_226 = arith.constant 1.000000e+00 : f32
    %429 = vector.broadcast %cst_226 : f32 to vector<8x128xf32>
    %430 = arith.addf %429, %428 : vector<8x128xf32>
    %431 = arith.divf %429, %430 : vector<8x128xf32>
    %432 = arith.mulf %423, %375 : vector<8x128xf32>
    %433 = arith.mulf %417, %425 : vector<8x128xf32>
    %434 = arith.addf %432, %433 : vector<8x128xf32>
    %435 = math.tanh %434 : vector<8x128xf32>
    %436 = arith.mulf %431, %435 : vector<8x128xf32>
    %c3_i32 = arith.constant 3 : i32
    %c8_i32_227 = arith.constant 8 : i32
    %437 = arith.muli %c3_i32, %c8_i32_227 : i32
    %438 = tpu.assume_multiple %437, 8 : i32
    %439 = arith.index_cast %438 : i32 to index
    %c0_228 = arith.constant 0 : index
    %440 = vector.load %arg7[%439, %c0_228] : memref<64x512xf32, #tpu.memory_space<vmem>>, vector<8x512xf32>
    %cst_229 = arith.constant dense<0.000000e+00> : vector<8x512xf32>
    %441 = tpu.matmul %408, %256, %cst_229 {dimension_numbers = #tpu.dot_dimension_numbers<[1], [0], [0], [1], [0, 0, 1, 1], [], []>} : vector<8x128xf32>, vector<128x512xf32>, vector<8x512xf32> -> vector<8x512xf32>
    %442 = arith.addf %440, %441 : vector<8x512xf32>
    %443 = vector.extract_strided_slice %442 {offsets = [0, 0], sizes = [8, 128], strides = [1, 1]} : vector<8x512xf32> to vector<8x128xf32>
    %444 = arith.negf %443 : vector<8x128xf32>
    %445 = math.exp %444 : vector<8x128xf32>
    %cst_230 = arith.constant 1.000000e+00 : f32
    %446 = vector.broadcast %cst_230 : f32 to vector<8x128xf32>
    %447 = arith.addf %446, %445 : vector<8x128xf32>
    %448 = arith.divf %446, %447 : vector<8x128xf32>
    %449 = vector.extract_strided_slice %442 {offsets = [0, 128], sizes = [8, 128], strides = [1, 1]} : vector<8x512xf32> to vector<8x128xf32>
    %450 = arith.negf %449 : vector<8x128xf32>
    %451 = math.exp %450 : vector<8x128xf32>
    %cst_231 = arith.constant 1.000000e+00 : f32
    %452 = vector.broadcast %cst_231 : f32 to vector<8x128xf32>
    %453 = arith.addf %452, %451 : vector<8x128xf32>
    %454 = arith.divf %452, %453 : vector<8x128xf32>
    %455 = vector.extract_strided_slice %442 {offsets = [0, 256], sizes = [8, 128], strides = [1, 1]} : vector<8x512xf32> to vector<8x128xf32>
    %456 = math.tanh %455 : vector<8x128xf32>
    %457 = vector.extract_strided_slice %442 {offsets = [0, 384], sizes = [8, 128], strides = [1, 1]} : vector<8x512xf32> to vector<8x128xf32>
    %458 = arith.negf %457 : vector<8x128xf32>
    %459 = math.exp %458 : vector<8x128xf32>
    %cst_232 = arith.constant 1.000000e+00 : f32
    %460 = vector.broadcast %cst_232 : f32 to vector<8x128xf32>
    %461 = arith.addf %460, %459 : vector<8x128xf32>
    %462 = arith.divf %460, %461 : vector<8x128xf32>
    %463 = arith.mulf %454, %406 : vector<8x128xf32>
    %464 = arith.mulf %448, %456 : vector<8x128xf32>
    %465 = arith.addf %463, %464 : vector<8x128xf32>
    %466 = math.tanh %465 : vector<8x128xf32>
    %467 = arith.mulf %462, %466 : vector<8x128xf32>
    %468 = tpu.concatenate %467, %436 in 1 : vector<8x128xf32>, vector<8x128xf32> -> vector<8x256xf32>
    %cst_233 = arith.constant dense<0.000000e+00> : vector<8x512xf32>
    %469 = tpu.matmul %468, %257, %cst_233 {dimension_numbers = #tpu.dot_dimension_numbers<[1], [0], [0], [1], [0, 0, 1, 1], [], []>} : vector<8x256xf32>, vector<256x512xf32>, vector<8x512xf32> -> vector<8x512xf32>
    %470 = arith.addf %258, %469 : vector<8x512xf32>
    %471 = vector.extract_strided_slice %470 {offsets = [0, 0], sizes = [8, 128], strides = [1, 1]} : vector<8x512xf32> to vector<8x128xf32>
    %472 = arith.negf %471 : vector<8x128xf32>
    %473 = math.exp %472 : vector<8x128xf32>
    %cst_234 = arith.constant 1.000000e+00 : f32
    %474 = vector.broadcast %cst_234 : f32 to vector<8x128xf32>
    %475 = arith.addf %474, %473 : vector<8x128xf32>
    %476 = arith.divf %474, %475 : vector<8x128xf32>
    %477 = vector.extract_strided_slice %470 {offsets = [0, 128], sizes = [8, 128], strides = [1, 1]} : vector<8x512xf32> to vector<8x128xf32>
    %478 = arith.negf %477 : vector<8x128xf32>
    %479 = math.exp %478 : vector<8x128xf32>
    %cst_235 = arith.constant 1.000000e+00 : f32
    %480 = vector.broadcast %cst_235 : f32 to vector<8x128xf32>
    %481 = arith.addf %480, %479 : vector<8x128xf32>
    %482 = arith.divf %480, %481 : vector<8x128xf32>
    %483 = vector.extract_strided_slice %470 {offsets = [0, 256], sizes = [8, 128], strides = [1, 1]} : vector<8x512xf32> to vector<8x128xf32>
    %484 = math.tanh %483 : vector<8x128xf32>
    %485 = vector.extract_strided_slice %470 {offsets = [0, 384], sizes = [8, 128], strides = [1, 1]} : vector<8x512xf32> to vector<8x128xf32>
    %486 = arith.negf %485 : vector<8x128xf32>
    %487 = math.exp %486 : vector<8x128xf32>
    %cst_236 = arith.constant 1.000000e+00 : f32
    %488 = vector.broadcast %cst_236 : f32 to vector<8x128xf32>
    %489 = arith.addf %488, %487 : vector<8x128xf32>
    %490 = arith.divf %488, %489 : vector<8x128xf32>
    %491 = arith.mulf %482, %434 : vector<8x128xf32>
    %492 = arith.mulf %476, %484 : vector<8x128xf32>
    %493 = arith.addf %491, %492 : vector<8x128xf32>
    %494 = math.tanh %493 : vector<8x128xf32>
    %495 = arith.mulf %490, %494 : vector<8x128xf32>
    %c4_i32 = arith.constant 4 : i32
    %c8_i32_237 = arith.constant 8 : i32
    %496 = arith.muli %c4_i32, %c8_i32_237 : i32
    %497 = tpu.assume_multiple %496, 8 : i32
    %498 = arith.index_cast %497 : i32 to index
    %c0_238 = arith.constant 0 : index
    %499 = vector.load %arg7[%498, %c0_238] : memref<64x512xf32, #tpu.memory_space<vmem>>, vector<8x512xf32>
    %cst_239 = arith.constant dense<0.000000e+00> : vector<8x512xf32>
    %500 = tpu.matmul %467, %256, %cst_239 {dimension_numbers = #tpu.dot_dimension_numbers<[1], [0], [0], [1], [0, 0, 1, 1], [], []>} : vector<8x128xf32>, vector<128x512xf32>, vector<8x512xf32> -> vector<8x512xf32>
    %501 = arith.addf %499, %500 : vector<8x512xf32>
    %502 = vector.extract_strided_slice %501 {offsets = [0, 0], sizes = [8, 128], strides = [1, 1]} : vector<8x512xf32> to vector<8x128xf32>
    %503 = arith.negf %502 : vector<8x128xf32>
    %504 = math.exp %503 : vector<8x128xf32>
    %cst_240 = arith.constant 1.000000e+00 : f32
    %505 = vector.broadcast %cst_240 : f32 to vector<8x128xf32>
    %506 = arith.addf %505, %504 : vector<8x128xf32>
    %507 = arith.divf %505, %506 : vector<8x128xf32>
    %508 = vector.extract_strided_slice %501 {offsets = [0, 128], sizes = [8, 128], strides = [1, 1]} : vector<8x512xf32> to vector<8x128xf32>
    %509 = arith.negf %508 : vector<8x128xf32>
    %510 = math.exp %509 : vector<8x128xf32>
    %cst_241 = arith.constant 1.000000e+00 : f32
    %511 = vector.broadcast %cst_241 : f32 to vector<8x128xf32>
    %512 = arith.addf %511, %510 : vector<8x128xf32>
    %513 = arith.divf %511, %512 : vector<8x128xf32>
    %514 = vector.extract_strided_slice %501 {offsets = [0, 256], sizes = [8, 128], strides = [1, 1]} : vector<8x512xf32> to vector<8x128xf32>
    %515 = math.tanh %514 : vector<8x128xf32>
    %516 = vector.extract_strided_slice %501 {offsets = [0, 384], sizes = [8, 128], strides = [1, 1]} : vector<8x512xf32> to vector<8x128xf32>
    %517 = arith.negf %516 : vector<8x128xf32>
    %518 = math.exp %517 : vector<8x128xf32>
    %cst_242 = arith.constant 1.000000e+00 : f32
    %519 = vector.broadcast %cst_242 : f32 to vector<8x128xf32>
    %520 = arith.addf %519, %518 : vector<8x128xf32>
    %521 = arith.divf %519, %520 : vector<8x128xf32>
    %522 = arith.mulf %513, %465 : vector<8x128xf32>
    %523 = arith.mulf %507, %515 : vector<8x128xf32>
    %524 = arith.addf %522, %523 : vector<8x128xf32>
    %525 = math.tanh %524 : vector<8x128xf32>
    %526 = arith.mulf %521, %525 : vector<8x128xf32>
    %527 = tpu.concatenate %526, %495 in 1 : vector<8x128xf32>, vector<8x128xf32> -> vector<8x256xf32>
    %cst_243 = arith.constant dense<0.000000e+00> : vector<8x512xf32>
    %528 = tpu.matmul %527, %257, %cst_243 {dimension_numbers = #tpu.dot_dimension_numbers<[1], [0], [0], [1], [0, 0, 1, 1], [], []>} : vector<8x256xf32>, vector<256x512xf32>, vector<8x512xf32> -> vector<8x512xf32>
    %529 = arith.addf %258, %528 : vector<8x512xf32>
    %530 = vector.extract_strided_slice %529 {offsets = [0, 0], sizes = [8, 128], strides = [1, 1]} : vector<8x512xf32> to vector<8x128xf32>
    %531 = arith.negf %530 : vector<8x128xf32>
    %532 = math.exp %531 : vector<8x128xf32>
    %cst_244 = arith.constant 1.000000e+00 : f32
    %533 = vector.broadcast %cst_244 : f32 to vector<8x128xf32>
    %534 = arith.addf %533, %532 : vector<8x128xf32>
    %535 = arith.divf %533, %534 : vector<8x128xf32>
    %536 = vector.extract_strided_slice %529 {offsets = [0, 128], sizes = [8, 128], strides = [1, 1]} : vector<8x512xf32> to vector<8x128xf32>
    %537 = arith.negf %536 : vector<8x128xf32>
    %538 = math.exp %537 : vector<8x128xf32>
    %cst_245 = arith.constant 1.000000e+00 : f32
    %539 = vector.broadcast %cst_245 : f32 to vector<8x128xf32>
    %540 = arith.addf %539, %538 : vector<8x128xf32>
    %541 = arith.divf %539, %540 : vector<8x128xf32>
    %542 = vector.extract_strided_slice %529 {offsets = [0, 256], sizes = [8, 128], strides = [1, 1]} : vector<8x512xf32> to vector<8x128xf32>
    %543 = math.tanh %542 : vector<8x128xf32>
    %544 = vector.extract_strided_slice %529 {offsets = [0, 384], sizes = [8, 128], strides = [1, 1]} : vector<8x512xf32> to vector<8x128xf32>
    %545 = arith.negf %544 : vector<8x128xf32>
    %546 = math.exp %545 : vector<8x128xf32>
    %cst_246 = arith.constant 1.000000e+00 : f32
    %547 = vector.broadcast %cst_246 : f32 to vector<8x128xf32>
    %548 = arith.addf %547, %546 : vector<8x128xf32>
    %549 = arith.divf %547, %548 : vector<8x128xf32>
    %550 = arith.mulf %541, %493 : vector<8x128xf32>
    %551 = arith.mulf %535, %543 : vector<8x128xf32>
    %552 = arith.addf %550, %551 : vector<8x128xf32>
    %553 = math.tanh %552 : vector<8x128xf32>
    %554 = arith.mulf %549, %553 : vector<8x128xf32>
    %c5_i32 = arith.constant 5 : i32
    %c8_i32_247 = arith.constant 8 : i32
    %555 = arith.muli %c5_i32, %c8_i32_247 : i32
    %556 = tpu.assume_multiple %555, 8 : i32
    %557 = arith.index_cast %556 : i32 to index
    %c0_248 = arith.constant 0 : index
    %558 = vector.load %arg7[%557, %c0_248] : memref<64x512xf32, #tpu.memory_space<vmem>>, vector<8x512xf32>
    %cst_249 = arith.constant dense<0.000000e+00> : vector<8x512xf32>
    %559 = tpu.matmul %526, %256, %cst_249 {dimension_numbers = #tpu.dot_dimension_numbers<[1], [0], [0], [1], [0, 0, 1, 1], [], []>} : vector<8x128xf32>, vector<128x512xf32>, vector<8x512xf32> -> vector<8x512xf32>
    %560 = arith.addf %558, %559 : vector<8x512xf32>
    %561 = vector.extract_strided_slice %560 {offsets = [0, 0], sizes = [8, 128], strides = [1, 1]} : vector<8x512xf32> to vector<8x128xf32>
    %562 = arith.negf %561 : vector<8x128xf32>
    %563 = math.exp %562 : vector<8x128xf32>
    %cst_250 = arith.constant 1.000000e+00 : f32
    %564 = vector.broadcast %cst_250 : f32 to vector<8x128xf32>
    %565 = arith.addf %564, %563 : vector<8x128xf32>
    %566 = arith.divf %564, %565 : vector<8x128xf32>
    %567 = vector.extract_strided_slice %560 {offsets = [0, 128], sizes = [8, 128], strides = [1, 1]} : vector<8x512xf32> to vector<8x128xf32>
    %568 = arith.negf %567 : vector<8x128xf32>
    %569 = math.exp %568 : vector<8x128xf32>
    %cst_251 = arith.constant 1.000000e+00 : f32
    %570 = vector.broadcast %cst_251 : f32 to vector<8x128xf32>
    %571 = arith.addf %570, %569 : vector<8x128xf32>
    %572 = arith.divf %570, %571 : vector<8x128xf32>
    %573 = vector.extract_strided_slice %560 {offsets = [0, 256], sizes = [8, 128], strides = [1, 1]} : vector<8x512xf32> to vector<8x128xf32>
    %574 = math.tanh %573 : vector<8x128xf32>
    %575 = vector.extract_strided_slice %560 {offsets = [0, 384], sizes = [8, 128], strides = [1, 1]} : vector<8x512xf32> to vector<8x128xf32>
    %576 = arith.negf %575 : vector<8x128xf32>
    %577 = math.exp %576 : vector<8x128xf32>
    %cst_252 = arith.constant 1.000000e+00 : f32
    %578 = vector.broadcast %cst_252 : f32 to vector<8x128xf32>
    %579 = arith.addf %578, %577 : vector<8x128xf32>
    %580 = arith.divf %578, %579 : vector<8x128xf32>
    %581 = arith.mulf %572, %524 : vector<8x128xf32>
    %582 = arith.mulf %566, %574 : vector<8x128xf32>
    %583 = arith.addf %581, %582 : vector<8x128xf32>
    %584 = math.tanh %583 : vector<8x128xf32>
    %585 = arith.mulf %580, %584 : vector<8x128xf32>
    %586 = tpu.concatenate %585, %554 in 1 : vector<8x128xf32>, vector<8x128xf32> -> vector<8x256xf32>
    %cst_253 = arith.constant dense<0.000000e+00> : vector<8x512xf32>
    %587 = tpu.matmul %586, %257, %cst_253 {dimension_numbers = #tpu.dot_dimension_numbers<[1], [0], [0], [1], [0, 0, 1, 1], [], []>} : vector<8x256xf32>, vector<256x512xf32>, vector<8x512xf32> -> vector<8x512xf32>
    %588 = arith.addf %258, %587 : vector<8x512xf32>
    %589 = vector.extract_strided_slice %588 {offsets = [0, 0], sizes = [8, 128], strides = [1, 1]} : vector<8x512xf32> to vector<8x128xf32>
    %590 = arith.negf %589 : vector<8x128xf32>
    %591 = math.exp %590 : vector<8x128xf32>
    %cst_254 = arith.constant 1.000000e+00 : f32
    %592 = vector.broadcast %cst_254 : f32 to vector<8x128xf32>
    %593 = arith.addf %592, %591 : vector<8x128xf32>
    %594 = arith.divf %592, %593 : vector<8x128xf32>
    %595 = vector.extract_strided_slice %588 {offsets = [0, 128], sizes = [8, 128], strides = [1, 1]} : vector<8x512xf32> to vector<8x128xf32>
    %596 = arith.negf %595 : vector<8x128xf32>
    %597 = math.exp %596 : vector<8x128xf32>
    %cst_255 = arith.constant 1.000000e+00 : f32
    %598 = vector.broadcast %cst_255 : f32 to vector<8x128xf32>
    %599 = arith.addf %598, %597 : vector<8x128xf32>
    %600 = arith.divf %598, %599 : vector<8x128xf32>
    %601 = vector.extract_strided_slice %588 {offsets = [0, 256], sizes = [8, 128], strides = [1, 1]} : vector<8x512xf32> to vector<8x128xf32>
    %602 = math.tanh %601 : vector<8x128xf32>
    %603 = vector.extract_strided_slice %588 {offsets = [0, 384], sizes = [8, 128], strides = [1, 1]} : vector<8x512xf32> to vector<8x128xf32>
    %604 = arith.negf %603 : vector<8x128xf32>
    %605 = math.exp %604 : vector<8x128xf32>
    %cst_256 = arith.constant 1.000000e+00 : f32
    %606 = vector.broadcast %cst_256 : f32 to vector<8x128xf32>
    %607 = arith.addf %606, %605 : vector<8x128xf32>
    %608 = arith.divf %606, %607 : vector<8x128xf32>
    %609 = arith.mulf %600, %552 : vector<8x128xf32>
    %610 = arith.mulf %594, %602 : vector<8x128xf32>
    %611 = arith.addf %609, %610 : vector<8x128xf32>
    %612 = math.tanh %611 : vector<8x128xf32>
    %613 = arith.mulf %608, %612 : vector<8x128xf32>
    %c6_i32 = arith.constant 6 : i32
    %c8_i32_257 = arith.constant 8 : i32
    %614 = arith.muli %c6_i32, %c8_i32_257 : i32
    %615 = tpu.assume_multiple %614, 8 : i32
    %616 = arith.index_cast %615 : i32 to index
    %c0_258 = arith.constant 0 : index
    %617 = vector.load %arg7[%616, %c0_258] : memref<64x512xf32, #tpu.memory_space<vmem>>, vector<8x512xf32>
    %cst_259 = arith.constant dense<0.000000e+00> : vector<8x512xf32>
    %618 = tpu.matmul %585, %256, %cst_259 {dimension_numbers = #tpu.dot_dimension_numbers<[1], [0], [0], [1], [0, 0, 1, 1], [], []>} : vector<8x128xf32>, vector<128x512xf32>, vector<8x512xf32> -> vector<8x512xf32>
    %619 = arith.addf %617, %618 : vector<8x512xf32>
    %620 = vector.extract_strided_slice %619 {offsets = [0, 0], sizes = [8, 128], strides = [1, 1]} : vector<8x512xf32> to vector<8x128xf32>
    %621 = arith.negf %620 : vector<8x128xf32>
    %622 = math.exp %621 : vector<8x128xf32>
    %cst_260 = arith.constant 1.000000e+00 : f32
    %623 = vector.broadcast %cst_260 : f32 to vector<8x128xf32>
    %624 = arith.addf %623, %622 : vector<8x128xf32>
    %625 = arith.divf %623, %624 : vector<8x128xf32>
    %626 = vector.extract_strided_slice %619 {offsets = [0, 128], sizes = [8, 128], strides = [1, 1]} : vector<8x512xf32> to vector<8x128xf32>
    %627 = arith.negf %626 : vector<8x128xf32>
    %628 = math.exp %627 : vector<8x128xf32>
    %cst_261 = arith.constant 1.000000e+00 : f32
    %629 = vector.broadcast %cst_261 : f32 to vector<8x128xf32>
    %630 = arith.addf %629, %628 : vector<8x128xf32>
    %631 = arith.divf %629, %630 : vector<8x128xf32>
    %632 = vector.extract_strided_slice %619 {offsets = [0, 256], sizes = [8, 128], strides = [1, 1]} : vector<8x512xf32> to vector<8x128xf32>
    %633 = math.tanh %632 : vector<8x128xf32>
    %634 = vector.extract_strided_slice %619 {offsets = [0, 384], sizes = [8, 128], strides = [1, 1]} : vector<8x512xf32> to vector<8x128xf32>
    %635 = arith.negf %634 : vector<8x128xf32>
    %636 = math.exp %635 : vector<8x128xf32>
    %cst_262 = arith.constant 1.000000e+00 : f32
    %637 = vector.broadcast %cst_262 : f32 to vector<8x128xf32>
    %638 = arith.addf %637, %636 : vector<8x128xf32>
    %639 = arith.divf %637, %638 : vector<8x128xf32>
    %640 = arith.mulf %631, %583 : vector<8x128xf32>
    %641 = arith.mulf %625, %633 : vector<8x128xf32>
    %642 = arith.addf %640, %641 : vector<8x128xf32>
    %643 = math.tanh %642 : vector<8x128xf32>
    %644 = arith.mulf %639, %643 : vector<8x128xf32>
    %645 = tpu.concatenate %644, %613 in 1 : vector<8x128xf32>, vector<8x128xf32> -> vector<8x256xf32>
    %cst_263 = arith.constant dense<0.000000e+00> : vector<8x512xf32>
    %646 = tpu.matmul %645, %257, %cst_263 {dimension_numbers = #tpu.dot_dimension_numbers<[1], [0], [0], [1], [0, 0, 1, 1], [], []>} : vector<8x256xf32>, vector<256x512xf32>, vector<8x512xf32> -> vector<8x512xf32>
    %647 = arith.addf %258, %646 : vector<8x512xf32>
    %648 = vector.extract_strided_slice %647 {offsets = [0, 0], sizes = [8, 128], strides = [1, 1]} : vector<8x512xf32> to vector<8x128xf32>
    %649 = arith.negf %648 : vector<8x128xf32>
    %650 = math.exp %649 : vector<8x128xf32>
    %cst_264 = arith.constant 1.000000e+00 : f32
    %651 = vector.broadcast %cst_264 : f32 to vector<8x128xf32>
    %652 = arith.addf %651, %650 : vector<8x128xf32>
    %653 = arith.divf %651, %652 : vector<8x128xf32>
    %654 = vector.extract_strided_slice %647 {offsets = [0, 128], sizes = [8, 128], strides = [1, 1]} : vector<8x512xf32> to vector<8x128xf32>
    %655 = arith.negf %654 : vector<8x128xf32>
    %656 = math.exp %655 : vector<8x128xf32>
    %cst_265 = arith.constant 1.000000e+00 : f32
    %657 = vector.broadcast %cst_265 : f32 to vector<8x128xf32>
    %658 = arith.addf %657, %656 : vector<8x128xf32>
    %659 = arith.divf %657, %658 : vector<8x128xf32>
    %660 = vector.extract_strided_slice %647 {offsets = [0, 256], sizes = [8, 128], strides = [1, 1]} : vector<8x512xf32> to vector<8x128xf32>
    %661 = math.tanh %660 : vector<8x128xf32>
    %662 = vector.extract_strided_slice %647 {offsets = [0, 384], sizes = [8, 128], strides = [1, 1]} : vector<8x512xf32> to vector<8x128xf32>
    %663 = arith.negf %662 : vector<8x128xf32>
    %664 = math.exp %663 : vector<8x128xf32>
    %cst_266 = arith.constant 1.000000e+00 : f32
    %665 = vector.broadcast %cst_266 : f32 to vector<8x128xf32>
    %666 = arith.addf %665, %664 : vector<8x128xf32>
    %667 = arith.divf %665, %666 : vector<8x128xf32>
    %668 = arith.mulf %659, %611 : vector<8x128xf32>
    %669 = arith.mulf %653, %661 : vector<8x128xf32>
    %670 = arith.addf %668, %669 : vector<8x128xf32>
    %671 = math.tanh %670 : vector<8x128xf32>
    %672 = arith.mulf %667, %671 : vector<8x128xf32>
    %c7_i32 = arith.constant 7 : i32
    %c8_i32_267 = arith.constant 8 : i32
    %673 = arith.muli %c7_i32, %c8_i32_267 : i32
    %674 = tpu.assume_multiple %673, 8 : i32
    %675 = arith.index_cast %674 : i32 to index
    %c0_268 = arith.constant 0 : index
    %676 = vector.load %arg7[%675, %c0_268] : memref<64x512xf32, #tpu.memory_space<vmem>>, vector<8x512xf32>
    %cst_269 = arith.constant dense<0.000000e+00> : vector<8x512xf32>
    %677 = tpu.matmul %644, %256, %cst_269 {dimension_numbers = #tpu.dot_dimension_numbers<[1], [0], [0], [1], [0, 0, 1, 1], [], []>} : vector<8x128xf32>, vector<128x512xf32>, vector<8x512xf32> -> vector<8x512xf32>
    %678 = arith.addf %676, %677 : vector<8x512xf32>
    %679 = vector.extract_strided_slice %678 {offsets = [0, 0], sizes = [8, 128], strides = [1, 1]} : vector<8x512xf32> to vector<8x128xf32>
    %680 = arith.negf %679 : vector<8x128xf32>
    %681 = math.exp %680 : vector<8x128xf32>
    %cst_270 = arith.constant 1.000000e+00 : f32
    %682 = vector.broadcast %cst_270 : f32 to vector<8x128xf32>
    %683 = arith.addf %682, %681 : vector<8x128xf32>
    %684 = arith.divf %682, %683 : vector<8x128xf32>
    %685 = vector.extract_strided_slice %678 {offsets = [0, 128], sizes = [8, 128], strides = [1, 1]} : vector<8x512xf32> to vector<8x128xf32>
    %686 = arith.negf %685 : vector<8x128xf32>
    %687 = math.exp %686 : vector<8x128xf32>
    %cst_271 = arith.constant 1.000000e+00 : f32
    %688 = vector.broadcast %cst_271 : f32 to vector<8x128xf32>
    %689 = arith.addf %688, %687 : vector<8x128xf32>
    %690 = arith.divf %688, %689 : vector<8x128xf32>
    %691 = vector.extract_strided_slice %678 {offsets = [0, 256], sizes = [8, 128], strides = [1, 1]} : vector<8x512xf32> to vector<8x128xf32>
    %692 = math.tanh %691 : vector<8x128xf32>
    %693 = vector.extract_strided_slice %678 {offsets = [0, 384], sizes = [8, 128], strides = [1, 1]} : vector<8x512xf32> to vector<8x128xf32>
    %694 = arith.negf %693 : vector<8x128xf32>
    %695 = math.exp %694 : vector<8x128xf32>
    %cst_272 = arith.constant 1.000000e+00 : f32
    %696 = vector.broadcast %cst_272 : f32 to vector<8x128xf32>
    %697 = arith.addf %696, %695 : vector<8x128xf32>
    %698 = arith.divf %696, %697 : vector<8x128xf32>
    %699 = arith.mulf %690, %642 : vector<8x128xf32>
    %700 = arith.mulf %684, %692 : vector<8x128xf32>
    %701 = arith.addf %699, %700 : vector<8x128xf32>
    %702 = math.tanh %701 : vector<8x128xf32>
    %703 = arith.mulf %698, %702 : vector<8x128xf32>
    %704 = tpu.concatenate %703, %672 in 1 : vector<8x128xf32>, vector<8x128xf32> -> vector<8x256xf32>
    %cst_273 = arith.constant dense<0.000000e+00> : vector<8x512xf32>
    %705 = tpu.matmul %704, %257, %cst_273 {dimension_numbers = #tpu.dot_dimension_numbers<[1], [0], [0], [1], [0, 0, 1, 1], [], []>} : vector<8x256xf32>, vector<256x512xf32>, vector<8x512xf32> -> vector<8x512xf32>
    %706 = arith.addf %258, %705 : vector<8x512xf32>
    %707 = vector.extract_strided_slice %706 {offsets = [0, 0], sizes = [8, 128], strides = [1, 1]} : vector<8x512xf32> to vector<8x128xf32>
    %708 = arith.negf %707 : vector<8x128xf32>
    %709 = math.exp %708 : vector<8x128xf32>
    %cst_274 = arith.constant 1.000000e+00 : f32
    %710 = vector.broadcast %cst_274 : f32 to vector<8x128xf32>
    %711 = arith.addf %710, %709 : vector<8x128xf32>
    %712 = arith.divf %710, %711 : vector<8x128xf32>
    %713 = vector.extract_strided_slice %706 {offsets = [0, 128], sizes = [8, 128], strides = [1, 1]} : vector<8x512xf32> to vector<8x128xf32>
    %714 = arith.negf %713 : vector<8x128xf32>
    %715 = math.exp %714 : vector<8x128xf32>
    %cst_275 = arith.constant 1.000000e+00 : f32
    %716 = vector.broadcast %cst_275 : f32 to vector<8x128xf32>
    %717 = arith.addf %716, %715 : vector<8x128xf32>
    %718 = arith.divf %716, %717 : vector<8x128xf32>
    %719 = vector.extract_strided_slice %706 {offsets = [0, 256], sizes = [8, 128], strides = [1, 1]} : vector<8x512xf32> to vector<8x128xf32>
    %720 = math.tanh %719 : vector<8x128xf32>
    %721 = vector.extract_strided_slice %706 {offsets = [0, 384], sizes = [8, 128], strides = [1, 1]} : vector<8x512xf32> to vector<8x128xf32>
    %722 = arith.negf %721 : vector<8x128xf32>
    %723 = math.exp %722 : vector<8x128xf32>
    %cst_276 = arith.constant 1.000000e+00 : f32
    %724 = vector.broadcast %cst_276 : f32 to vector<8x128xf32>
    %725 = arith.addf %724, %723 : vector<8x128xf32>
    %726 = arith.divf %724, %725 : vector<8x128xf32>
    %727 = arith.mulf %718, %670 : vector<8x128xf32>
    %728 = arith.mulf %712, %720 : vector<8x128xf32>
    %729 = arith.addf %727, %728 : vector<8x128xf32>
    %730 = math.tanh %729 : vector<8x128xf32>
    %731 = arith.mulf %726, %730 : vector<8x128xf32>
    %c8_i32_277 = arith.constant 8 : i32
    %c0_278 = arith.constant 0 : index
    %c0_279 = arith.constant 0 : index
    %732 = vector.load %arg6[%c0_278, %c0_279] : memref<8x128xf32, #tpu.memory_space<vmem>>, vector<8x128xf32>
    tpu.vector_store %arg6[%c0_278, %c0_279], %731 {strides = array<i32>} : memref<8x128xf32, #tpu.memory_space<vmem>>, vector<8x128xf32>,
    return
  }
  func.func @transform_0(%arg0: i32, %arg1: memref<64xi32, #tpu.memory_space<smem>>) -> (i32, i32) {
    %c0_i32 = arith.constant 0 : i32
    %c0_i32_0 = arith.constant 0 : i32
    %c0_i32_1 = arith.constant 0 : i32
    return %c0_i32, %c0_i32_0 : i32, i32
  }
  func.func @transform_1(%arg0: i32, %arg1: memref<64xi32, #tpu.memory_space<smem>>) -> (i32, i32) {
    %c0_i32 = arith.constant 0 : i32
    %c0_i32_0 = arith.constant 0 : i32
    %c0_i32_1 = arith.constant 0 : i32
    return %c0_i32, %c0_i32_0 : i32, i32
  }
  func.func @transform_2(%arg0: i32, %arg1: memref<64xi32, #tpu.memory_space<smem>>) -> (i32, i32) {
    %c0_i32 = arith.constant 0 : i32
    %c0_i32_0 = arith.constant 0 : i32
    %c0_i32_1 = arith.constant 0 : i32
    return %c0_i32, %c0_i32_0 : i32, i32
  }
  func.func @transform_3(%arg0: i32, %arg1: memref<64xi32, #tpu.memory_space<smem>>) -> (i32, i32) {
    %c0_i32 = arith.constant 0 : i32
    %c0_i32_0 = arith.constant 0 : i32
    %c0_i32_1 = arith.constant 0 : i32
    return %c0_i32, %c0_i32_0 : i32, i32
  }
  func.func @transform_4(%arg0: i32, %arg1: memref<64xi32, #tpu.memory_space<smem>>) -> (i32, i32) {
    %c0_i32 = arith.constant 0 : i32
    %c0_i32_0 = arith.constant 0 : i32
    %c0_i32_1 = arith.constant 0 : i32
    return %c0_i32, %c0_i32_0 : i32, i32
  }
}

</mosaic_0001>

<llo_original>
// kernel: lstm_shakespeare_client_forward.1
$region0: #{lstm_shakespeare_client_forward.1}
  #allocation0 [shape = 'u32[]', space=smem, size = 0x4, offset = 0x4, fixed_abs, tag = 'smem constant byte address 0x4 - core index']
  #allocation1 [shape = 'u32[72,128]{1,0:T(1,128)}', space=vmem, size = 0x9000, scoped, tag = 'internal scratch']
  #allocation2 [shape = 'f32[64,512]{1,0:T(8,128)}', space=vmem, size = 0x20000, scoped, tag = 'scratch operand']
  #allocation3 [shape = 's32[1]{0}', space=sflag, size = 0x4, scoped, tag = 'scoped memory for lstm_shakespeare_client_forward.1']
  #allocation4 [shape = 'u8[512]{0}', space=smem, size = 0x200, scoped, tag = 'prefetched SMEM operand 0']
  %s0 = inlined_call_operand.vmem [shape: s32[64], index: 0, kind: input, shape index: {}]
  %s1 = inlined_call_operand.vmem [shape: f32[80,512], index: 1, kind: input, shape index: {}]
  %s2 = inlined_call_operand.vmem [shape: f32[128,512], index: 2, kind: input, shape index: {}]
  %s3 = inlined_call_operand.vmem [shape: f32[256,512], index: 3, kind: input, shape index: {}]
  %s4 = inlined_call_operand.vmem [shape: f32[8,512], index: 4, kind: input, shape index: {}]
  %s5 = inlined_call_operand.vmem [shape: f32[8,128], index: 5, kind: output, shape index: {}]
  %s6 = sld [smem:[#allocation0]]
  $region26: #{lstm_shakespeare_client_forward.1} parent=0
    _
  %s8 = ssub.s32 1, %s6
  %s9 = scalar_select 0, %s8, %s6
  %s11 = sshll.u32 %s0, 4
  %s12 = int_to_ptr.vmem [resolvable:$true] %s11
  %14 = dma.vmem_to_smem %s12, 16, [#allocation4], [#allocation3]
  %16 = dma.done [#allocation3], 16
  %17 = sfence
  // Predicated region
  $region2: #{lstm_shakespeare_client_forward.1} parent=0 // pred_check
    _
  $region3: #{lstm_shakespeare_client_forward.1} parent=0 // pred_check_branch
    %19 = sbr.rel (0) target = $region5
  $region4: #{lstm_shakespeare_client_forward.1} parent=0 // pred_region
    _
  $region5: #{lstm_shakespeare_client_forward.1} parent=0 // pred_fallthru
    _
  // Predicated region
  $region6: #{lstm_shakespeare_client_forward.1} parent=0 // pred_check
    _
  $region7: #{lstm_shakespeare_client_forward.1} parent=0 // pred_check_branch
    %21 = sbr.rel (0) target = $region9
  $region8: #{lstm_shakespeare_client_forward.1} parent=0 // pred_region
    _
  $region9: #{lstm_shakespeare_client_forward.1} parent=0 // pred_fallthru
    _
  // Predicated region
  $region10: #{lstm_shakespeare_client_forward.1} parent=0 // pred_check
    _
  $region11: #{lstm_shakespeare_client_forward.1} parent=0 // pred_check_branch
    %23 = sbr.rel (0) target = $region13
  $region12: #{lstm_shakespeare_client_forward.1} parent=0 // pred_region
    _
  $region13: #{lstm_shakespeare_client_forward.1} parent=0 // pred_fallthru
    _
  // Predicated region
  $region14: #{lstm_shakespeare_client_forward.1} parent=0 // pred_check
    _
  $region15: #{lstm_shakespeare_client_forward.1} parent=0 // pred_check_branch
    %25 = sbr.rel (0) target = $region17
  $region16: #{lstm_shakespeare_client_forward.1} parent=0 // pred_region
    _
  $region17: #{lstm_shakespeare_client_forward.1} parent=0 // pred_fallthru
    _
  %s26 = sld [smem:[#allocation4]]
  %s27 = sshra.s32 %s26, 3
  %s28 = sand.u32 %s26, 7
  %s29 = sshra.s32 %s26, 3
  %s30 = sand.u32 %s26, 7
  %s31 = smul.u32 %s27, 4
  %s32 = smul.u32 %s31, 8
  %s33 = sadd.s32 %s32, %s30
  %s34 = scalar_lea.vmem %s1, %s33
  %v35 = vld [vmem:[%s34] ss:$8 sm:$0xf]
  %v36 = vlaneseq
  %vm37 = vcmp.ge.s32.totalorder %v36, 0
  %vm38 = vcmp.lt.s32.totalorder %v36, 512
  %vm39 = vmand %vm37, %vm38
  %40 = vst.msk [vmem:[#allocation2] ss:$8 sm:$0xf] %vm39, %v35
  %41 = vst.msk [vmem:[#allocation2] ss:$8 sm:$0x0] %vm39, %v35
  %s42 = sld [smem:[#allocation4 + $0x1]]
  %s43 = sshra.s32 %s42, 3
  %s44 = sand.u32 %s42, 7
  %s45 = sshra.s32 %s42, 3
  %s46 = sand.u32 %s42, 7
  %s47 = smul.u32 %s43, 4
  %s48 = smul.u32 %s47, 8
  %s49 = sadd.s32 %s48, %s46
  %s50 = scalar_lea.vmem %s1, %s49
  %v51 = vld [vmem:[%s50] ss:$8 sm:$0xf]
  %s52 = scalar_lea.vmem [#allocation2], 1
  %53 = vst.msk [vmem:[%s52] ss:$8 sm:$0xf] %vm39, %v51
  %54 = vst.msk [vmem:[%s52] ss:$8 sm:$0x0] %vm39, %v51
  %s55 = sld [smem:[#allocation4 + $0x2]]
  %s56 = sshra.s32 %s55, 3
  %s57 = sand.u32 %s55, 7
  %s58 = sshra.s32 %s55, 3
  %s59 = sand.u32 %s55, 7
  %s60 = smul.u32 %s56, 4
  %s61 = smul.u32 %s60, 8
  %s62 = sadd.s32 %s61, %s59
  %s63 = scalar_lea.vmem %s1, %s62
  %v64 = vld [vmem:[%s63] ss:$8 sm:$0xf]
  %s65 = scalar_lea.vmem [#allocation2], 2
  %66 = vst.msk [vmem:[%s65] ss:$8 sm:$0xf] %vm39, %v64
  %67 = vst.msk [vmem:[%s65] ss:$8 sm:$0x0] %vm39, %v64
  %s68 = sld [smem:[#allocation4 + $0x3]]
  %s69 = sshra.s32 %s68, 3
  %s70 = sand.u32 %s68, 7
  %s71 = sshra.s32 %s68, 3
  %s72 = sand.u32 %s68, 7
  %s73 = smul.u32 %s69, 4
  %s74 = smul.u32 %s73, 8
  %s75 = sadd.s32 %s74, %s72
  %s76 = scalar_lea.vmem %s1, %s75
  %v77 = vld [vmem:[%s76] ss:$8 sm:$0xf]
  %s78 = scalar_lea.vmem [#allocation2], 3
  %79 = vst.msk [vmem:[%s78] ss:$8 sm:$0xf] %vm39, %v77
  %80 = vst.msk [vmem:[%s78] ss:$8 sm:$0x0] %vm39, %v77
  %s81 = sld [smem:[#allocation4 + $0x4]]
  %s82 = sshra.s32 %s81, 3
  %s83 = sand.u32 %s81, 7
  %s84 = sshra.s32 %s81, 3
  %s85 = sand.u32 %s81, 7
  %s86 = smul.u32 %s82, 4
  %s87 = smul.u32 %s86, 8
  %s88 = sadd.s32 %s87, %s85
  %s89 = scalar_lea.vmem %s1, %s88
  %v90 = vld [vmem:[%s89] ss:$8 sm:$0xf]
  %s91 = scalar_lea.vmem [#allocation2], 4
  %92 = vst.msk [vmem:[%s91] ss:$8 sm:$0xf] %vm39, %v90
  %93 = vst.msk [vmem:[%s91] ss:$8 sm:$0x0] %vm39, %v90
  %s94 = sld [smem:[#allocation4 + $0x5]]
  %s95 = sshra.s32 %s94, 3
  %s96 = sand.u32 %s94, 7
  %s97 = sshra.s32 %s94, 3
  %s98 = sand.u32 %s94, 7
  %s99 = smul.u32 %s95, 4
  %s100 = smul.u32 %s99, 8
  %s101 = sadd.s32 %s100, %s98
  %s102 = scalar_lea.vmem %s1, %s101
  %v103 = vld [vmem:[%s102] ss:$8 sm:$0xf]
  %s104 = scalar_lea.vmem [#allocation2], 5
  %105 = vst.msk [vmem:[%s104] ss:$8 sm:$0xf] %vm39, %v103
  %106 = vst.msk [vmem:[%s104] ss:$8 sm:$0x0] %vm39, %v103
  %s107 = sld [smem:[#allocation4 + $0x6]]
  %s108 = sshra.s32 %s107, 3
  %s109 = sand.u32 %s107, 7
  %s110 = sshra.s32 %s107, 3
  %s111 = sand.u32 %s107, 7
  %s112 = smul.u32 %s108, 4
  %s113 = smul.u32 %s112, 8
  %s114 = sadd.s32 %s113, %s111
  %s115 = scalar_lea.vmem %s1, %s114
  %v116 = vld [vmem:[%s115] ss:$8 sm:$0xf]
  %s117 = scalar_lea.vmem [#allocation2], 6
  %118 = vst.msk [vmem:[%s117] ss:$8 sm:$0xf] %vm39, %v116
  %119 = vst.msk [vmem:[%s117] ss:$8 sm:$0x0] %vm39, %v116
  %s120 = sld [smem:[#allocation4 + $0x7]]
  %s121 = sshra.s32 %s120, 3
  %s122 = sand.u32 %s120, 7
  %s123 = sshra.s32 %s120, 3
  %s124 = sand.u32 %s120, 7
  %s125 = smul.u32 %s121, 4
  %s126 = smul.u32 %s125, 8
  %s127 = sadd.s32 %s126, %s124
  %s128 = scalar_lea.vmem %s1, %s127
  %v129 = vld [vmem:[%s128] ss:$8 sm:$0xf]
  %s130 = scalar_lea.vmem [#allocation2], 7
  %131 = vst.msk [vmem:[%s130] ss:$8 sm:$0xf] %vm39, %v129
  %132 = vst.msk [vmem:[%s130] ss:$8 sm:$0x0] %vm39, %v129
  %s133 = sld [smem:[#allocation4 + $0x8]]
  %s134 = sshra.s32 %s133, 3
  %s135 = sand.u32 %s133, 7
  %s136 = sshra.s32 %s133, 3
  %s137 = sand.u32 %s133, 7
  %s138 = smul.u32 %s134, 4
  %s139 = smul.u32 %s138, 8
  %s140 = sadd.s32 %s139, %s137
  %s141 = scalar_lea.vmem %s1, %s140
  %v142 = vld [vmem:[%s141] ss:$8 sm:$0xf]
  %s143 = scalar_lea.vmem [#allocation2], 32
  %144 = vst.msk [vmem:[%s143] ss:$8 sm:$0xf] %vm39, %v142
  %145 = vst.msk [vmem:[%s143] ss:$8 sm:$0x0] %vm39, %v142
  %s146 = sld [smem:[#allocation4 + $0x9]]
  %s147 = sshra.s32 %s146, 3
  %s148 = sand.u32 %s146, 7
  %s149 = sshra.s32 %s146, 3
  %s150 = sand.u32 %s146, 7
  %s151 = smul.u32 %s147, 4
  %s152 = smul.u32 %s151, 8
  %s153 = sadd.s32 %s152, %s150
  %s154 = scalar_lea.vmem %s1, %s153
  %v155 = vld [vmem:[%s154] ss:$8 sm:$0xf]
  %s156 = scalar_lea.vmem [#allocation2], 33
  %157 = vst.msk [vmem:[%s156] ss:$8 sm:$0xf] %vm39, %v155
  %158 = vst.msk [vmem:[%s156] ss:$8 sm:$0x0] %vm39, %v155
  %s159 = sld [smem:[#allocation4 + $0xa]]
  %s160 = sshra.s32 %s159, 3
  %s161 = sand.u32 %s159, 7
  %s162 = sshra.s32 %s159, 3
  %s163 = sand.u32 %s159, 7
  %s164 = smul.u32 %s160, 4
  %s165 = smul.u32 %s164, 8
  %s166 = sadd.s32 %s165, %s163
  %s167 = scalar_lea.vmem %s1, %s166
  %v168 = vld [vmem:[%s167] ss:$8 sm:$0xf]
  %s169 = scalar_lea.vmem [#allocation2], 34
  %170 = vst.msk [vmem:[%s169] ss:$8 sm:$0xf] %vm39, %v168
  %171 = vst.msk [vmem:[%s169] ss:$8 sm:$0x0] %vm39, %v168
  %s172 = sld [smem:[#allocation4 + $0xb]]
  %s173 = sshra.s32 %s172, 3
  %s174 = sand.u32 %s172, 7
  %s175 = sshra.s32 %s172, 3
  %s176 = sand.u32 %s172, 7
  %s177 = smul.u32 %s173, 4
  %s178 = smul.u32 %s177, 8
  %s179 = sadd.s32 %s178, %s176
  %s180 = scalar_lea.vmem %s1, %s179
  %v181 = vld [vmem:[%s180] ss:$8 sm:$0xf]
  %s182 = scalar_lea.vmem [#allocation2], 35
  %183 = vst.msk [vmem:[%s182] ss:$8 sm:$0xf] %vm39, %v181
  %184 = vst.msk [vmem:[%s182] ss:$8 sm:$0x0] %vm39, %v181
  %s185 = sld [smem:[#allocation4 + $0xc]]
  %s186 = sshra.s32 %s185, 3
  %s187 = sand.u32 %s185, 7
  %s188 = sshra.s32 %s185, 3
  %s189 = sand.u32 %s185, 7
  %s190 = smul.u32 %s186, 4
  %s191 = smul.u32 %s190, 8
  %s192 = sadd.s32 %s191, %s189
  %s193 = scalar_lea.vmem %s1, %s192
  %v194 = vld [vmem:[%s193] ss:$8 sm:$0xf]
  %s195 = scalar_lea.vmem [#allocation2], 36
  %196 = vst.msk [vmem:[%s195] ss:$8 sm:$0xf] %vm39, %v194
  %197 = vst.msk [vmem:[%s195] ss:$8 sm:$0x0] %vm39, %v194
  %s198 = sld [smem:[#allocation4 + $0xd]]
  %s199 = sshra.s32 %s198, 3
  %s200 = sand.u32 %s198, 7
  %s201 = sshra.s32 %s198, 3
  %s202 = sand.u32 %s198, 7
  %s203 = smul.u32 %s199, 4
  %s204 = smul.u32 %s203, 8
  %s205 = sadd.s32 %s204, %s202
  %s206 = scalar_lea.vmem %s1, %s205
  %v207 = vld [vmem:[%s206] ss:$8 sm:$0xf]
  %s208 = scalar_lea.vmem [#allocation2], 37
  %209 = vst.msk [vmem:[%s208] ss:$8 sm:$0xf] %vm39, %v207
  %210 = vst.msk [vmem:[%s208] ss:$8 sm:$0x0] %vm39, %v207
  %s211 = sld [smem:[#allocation4 + $0xe]]
  %s212 = sshra.s32 %s211, 3
  %s213 = sand.u32 %s211, 7
  %s214 = sshra.s32 %s211, 3
  %s215 = sand.u32 %s211, 7
  %s216 = smul.u32 %s212, 4
  %s217 = smul.u32 %s216, 8
  %s218 = sadd.s32 %s217, %s215
  %s219 = scalar_lea.vmem %s1, %s218
  %v220 = vld [vmem:[%s219] ss:$8 sm:$0xf]
  %s221 = scalar_lea.vmem [#allocation2], 38
  %222 = vst.msk [vmem:[%s221] ss:$8 sm:$0xf] %vm39, %v220
  %223 = vst.msk [vmem:[%s221] ss:$8 sm:$0x0] %vm39, %v220
  %s224 = sld [smem:[#allocation4 + $0xf]]
  %s225 = sshra.s32 %s224, 3
  %s226 = sand.u32 %s224, 7
  %s227 = sshra.s32 %s224, 3
  %s228 = sand.u32 %s224, 7
  %s229 = smul.u32 %s225, 4
  %s230 = smul.u32 %s229, 8
  %s231 = sadd.s32 %s230, %s228
  %s232 = scalar_lea.vmem %s1, %s231
  %v233 = vld [vmem:[%s232] ss:$8 sm:$0xf]
  %s234 = scalar_lea.vmem [#allocation2], 39
  %235 = vst.msk [vmem:[%s234] ss:$8 sm:$0xf] %vm39, %v233
  %236 = vst.msk [vmem:[%s234] ss:$8 sm:$0x0] %vm39, %v233
  %s237 = sld [smem:[#allocation4 + $0x10]]
  %s238 = sshra.s32 %s237, 3
  %s239 = sand.u32 %s237, 7
  %s240 = sshra.s32 %s237, 3
  %s241 = sand.u32 %s237, 7
  %s242 = smul.u32 %s238, 4
  %s243 = smul.u32 %s242, 8
  %s244 = sadd.s32 %s243, %s241
  %s245 = scalar_lea.vmem %s1, %s244
  %v246 = vld [vmem:[%s245] ss:$8 sm:$0xf]
  %s247 = scalar_lea.vmem [#allocation2], 64
  %248 = vst.msk [vmem:[%s247] ss:$8 sm:$0xf] %vm39, %v246
  %249 = vst.msk [vmem:[%s247] ss:$8 sm:$0x0] %vm39, %v246
  %s250 = sld [smem:[#allocation4 + $0x11]]
  %s251 = sshra.s32 %s250, 3
  %s252 = sand.u32 %s250, 7
  %s253 = sshra.s32 %s250, 3
  %s254 = sand.u32 %s250, 7
  %s255 = smul.u32 %s251, 4
  %s256 = smul.u32 %s255, 8
  %s257 = sadd.s32 %s256, %s254
  %s258 = scalar_lea.vmem %s1, %s257
  %v259 = vld [vmem:[%s258] ss:$8 sm:$0xf]
  %s260 = scalar_lea.vmem [#allocation2], 65
  %261 = vst.msk [vmem:[%s260] ss:$8 sm:$0xf] %vm39, %v259
  %262 = vst.msk [vmem:[%s260] ss:$8 sm:$0x0] %vm39, %v259
  %s263 = sld [smem:[#allocation4 + $0x12]]
  %s264 = sshra.s32 %s263, 3
  %s265 = sand.u32 %s263, 7
  %s266 = sshra.s32 %s263, 3
  %s267 = sand.u32 %s263, 7
  %s268 = smul.u32 %s264, 4
  %s269 = smul.u32 %s268, 8
  %s270 = sadd.s32 %s269, %s267
  %s271 = scalar_lea.vmem %s1, %s270
  %v272 = vld [vmem:[%s271] ss:$8 sm:$0xf]
  %s273 = scalar_lea.vmem [#allocation2], 66
  %274 = vst.msk [vmem:[%s273] ss:$8 sm:$0xf] %vm39, %v272
  %275 = vst.msk [vmem:[%s273] ss:$8 sm:$0x0] %vm39, %v272
  %s276 = sld [smem:[#allocation4 + $0x13]]
  %s277 = sshra.s32 %s276, 3
  %s278 = sand.u32 %s276, 7
  %s279 = sshra.s32 %s276, 3
  %s280 = sand.u32 %s276, 7
  %s281 = smul.u32 %s277, 4
  %s282 = smul.u32 %s281, 8
  %s283 = sadd.s32 %s282, %s280
  %s284 = scalar_lea.vmem %s1, %s283
  %v285 = vld [vmem:[%s284] ss:$8 sm:$0xf]
  %s286 = scalar_lea.vmem [#allocation2], 67
  %287 = vst.msk [vmem:[%s286] ss:$8 sm:$0xf] %vm39, %v285
  %288 = vst.msk [vmem:[%s286] ss:$8 sm:$0x0] %vm39, %v285
  %s289 = sld [smem:[#allocation4 + $0x14]]
  %s290 = sshra.s32 %s289, 3
  %s291 = sand.u32 %s289, 7
  %s292 = sshra.s32 %s289, 3
  %s293 = sand.u32 %s289, 7
  %s294 = smul.u32 %s290, 4
  %s295 = smul.u32 %s294, 8
  %s296 = sadd.s32 %s295, %s293
  %s297 = scalar_lea.vmem %s1, %s296
  %v298 = vld [vmem:[%s297] ss:$8 sm:$0xf]
  %s299 = scalar_lea.vmem [#allocation2], 68
  %300 = vst.msk [vmem:[%s299] ss:$8 sm:$0xf] %vm39, %v298
  %301 = vst.msk [vmem:[%s299] ss:$8 sm:$0x0] %vm39, %v298
  %s302 = sld [smem:[#allocation4 + $0x15]]
  %s303 = sshra.s32 %s302, 3
  %s304 = sand.u32 %s302, 7
  %s305 = sshra.s32 %s302, 3
  %s306 = sand.u32 %s302, 7
  %s307 = smul.u32 %s303, 4
  %s308 = smul.u32 %s307, 8
  %s309 = sadd.s32 %s308, %s306
  %s310 = scalar_lea.vmem %s1, %s309
  %v311 = vld [vmem:[%s310] ss:$8 sm:$0xf]
  %s312 = scalar_lea.vmem [#allocation2], 69
  %313 = vst.msk [vmem:[%s312] ss:$8 sm:$0xf] %vm39, %v311
  %314 = vst.msk [vmem:[%s312] ss:$8 sm:$0x0] %vm39, %v311
  %s315 = sld [smem:[#allocation4 + $0x16]]
  %s316 = sshra.s32 %s315, 3
  %s317 = sand.u32 %s315, 7
  %s318 = sshra.s32 %s315, 3
  %s319 = sand.u32 %s315, 7
  %s320 = smul.u32 %s316, 4
  %s321 = smul.u32 %s320, 8
  %s322 = sadd.s32 %s321, %s319
  %s323 = scalar_lea.vmem %s1, %s322
  %v324 = vld [vmem:[%s323] ss:$8 sm:$0xf]
  %s325 = scalar_lea.vmem [#allocation2], 70
  %326 = vst.msk [vmem:[%s325] ss:$8 sm:$0xf] %vm39, %v324
  %327 = vst.msk [vmem:[%s325] ss:$8 sm:$0x0] %vm39, %v324
  %s328 = sld [smem:[#allocation4 + $0x17]]
  %s329 = sshra.s32 %s328, 3
  %s330 = sand.u32 %s328, 7
  %s331 = sshra.s32 %s328, 3
  %s332 = sand.u32 %s328, 7
  %s333 = smul.u32 %s329, 4
  %s334 = smul.u32 %s333, 8
  %s335 = sadd.s32 %s334, %s332
  %s336 = scalar_lea.vmem %s1, %s335
  %v337 = vld [vmem:[%s336] ss:$8 sm:$0xf]
  %s338 = scalar_lea.vmem [#allocation2], 71
  %339 = vst.msk [vmem:[%s338] ss:$8 sm:$0xf] %vm39, %v337
  %340 = vst.msk [vmem:[%s338] ss:$8 sm:$0x0] %vm39, %v337
  %s341 = sld [smem:[#allocation4 + $0x18]]
  %s342 = sshra.s32 %s341, 3
  %s343 = sand.u32 %s341, 7
  %s344 = sshra.s32 %s341, 3
  %s345 = sand.u32 %s341, 7
  %s346 = smul.u32 %s342, 4
  %s347 = smul.u32 %s346, 8
  %s348 = sadd.s32 %s347, %s345
  %s349 = scalar_lea.vmem %s1, %s348
  %v350 = vld [vmem:[%s349] ss:$8 sm:$0xf]
  %s351 = scalar_lea.vmem [#allocation2], 96
  %352 = vst.msk [vmem:[%s351] ss:$8 sm:$0xf] %vm39, %v350
  %353 = vst.msk [vmem:[%s351] ss:$8 sm:$0x0] %vm39, %v350
  %s354 = sld [smem:[#allocation4 + $0x19]]
  %s355 = sshra.s32 %s354, 3
  %s356 = sand.u32 %s354, 7
  %s357 = sshra.s32 %s354, 3
  %s358 = sand.u32 %s354, 7
  %s359 = smul.u32 %s355, 4
  %s360 = smul.u32 %s359, 8
  %s361 = sadd.s32 %s360, %s358
  %s362 = scalar_lea.vmem %s1, %s361
  %v363 = vld [vmem:[%s362] ss:$8 sm:$0xf]
  %s364 = scalar_lea.vmem [#allocation2], 97
  %365 = vst.msk [vmem:[%s364] ss:$8 sm:$0xf] %vm39, %v363
  %366 = vst.msk [vmem:[%s364] ss:$8 sm:$0x0] %vm39, %v363
  %s367 = sld [smem:[#allocation4 + $0x1a]]
  %s368 = sshra.s32 %s367, 3
  %s369 = sand.u32 %s367, 7
  %s370 = sshra.s32 %s367, 3
  %s371 = sand.u32 %s367, 7
  %s372 = smul.u32 %s368, 4
  %s373 = smul.u32 %s372, 8
  %s374 = sadd.s32 %s373, %s371
  %s375 = scalar_lea.vmem %s1, %s374
  %v376 = vld [vmem:[%s375] ss:$8 sm:$0xf]
  %s377 = scalar_lea.vmem [#allocation2], 98
  %378 = vst.msk [vmem:[%s377] ss:$8 sm:$0xf] %vm39, %v376
  %379 = vst.msk [vmem:[%s377] ss:$8 sm:$0x0] %vm39, %v376
  %s380 = sld [smem:[#allocation4 + $0x1b]]
  %s381 = sshra.s32 %s380, 3
  %s382 = sand.u32 %s380, 7
  %s383 = sshra.s32 %s380, 3
  %s384 = sand.u32 %s380, 7
  %s385 = smul.u32 %s381, 4
  %s386 = smul.u32 %s385, 8
  %s387 = sadd.s32 %s386, %s384
  %s388 = scalar_lea.vmem %s1, %s387
  %v389 = vld [vmem:[%s388] ss:$8 sm:$0xf]
  %s390 = scalar_lea.vmem [#allocation2], 99
  %391 = vst.msk [vmem:[%s390] ss:$8 sm:$0xf] %vm39, %v389
  %392 = vst.msk [vmem:[%s390] ss:$8 sm:$0x0] %vm39, %v389
  %s393 = sld [smem:[#allocation4 + $0x1c]]
  %s394 = sshra.s32 %s393, 3
  %s395 = sand.u32 %s393, 7
  %s396 = sshra.s32 %s393, 3
  %s397 = sand.u32 %s393, 7
  %s398 = smul.u32 %s394, 4
  %s399 = smul.u32 %s398, 8
  %s400 = sadd.s32 %s399, %s397
  %s401 = scalar_lea.vmem %s1, %s400
  %v402 = vld [vmem:[%s401] ss:$8 sm:$0xf]
  %s403 = scalar_lea.vmem [#allocation2], 100
  %404 = vst.msk [vmem:[%s403] ss:$8 sm:$0xf] %vm39, %v402
  %405 = vst.msk [vmem:[%s403] ss:$8 sm:$0x0] %vm39, %v402
  %s406 = sld [smem:[#allocation4 + $0x1d]]
  %s407 = sshra.s32 %s406, 3
  %s408 = sand.u32 %s406, 7
  %s409 = sshra.s32 %s406, 3
  %s410 = sand.u32 %s406, 7
  %s411 = smul.u32 %s407, 4
  %s412 = smul.u32 %s411, 8
  %s413 = sadd.s32 %s412, %s410
  %s414 = scalar_lea.vmem %s1, %s413
  %v415 = vld [vmem:[%s414] ss:$8 sm:$0xf]
  %s416 = scalar_lea.vmem [#allocation2], 101
  %417 = vst.msk [vmem:[%s416] ss:$8 sm:$0xf] %vm39, %v415
  %418 = vst.msk [vmem:[%s416] ss:$8 sm:$0x0] %vm39, %v415
  %s419 = sld [smem:[#allocation4 + $0x1e]]
  %s420 = sshra.s32 %s419, 3
  %s421 = sand.u32 %s419, 7
  %s422 = sshra.s32 %s419, 3
  %s423 = sand.u32 %s419, 7
  %s424 = smul.u32 %s420, 4
  %s425 = smul.u32 %s424, 8
  %s426 = sadd.s32 %s425, %s423
  %s427 = scalar_lea.vmem %s1, %s426
  %v428 = vld [vmem:[%s427] ss:$8 sm:$0xf]
  %s429 = scalar_lea.vmem [#allocation2], 102
  %430 = vst.msk [vmem:[%s429] ss:$8 sm:$0xf] %vm39, %v428
  %431 = vst.msk [vmem:[%s429] ss:$8 sm:$0x0] %vm39, %v428
  %s432 = sld [smem:[#allocation4 + $0x1f]]
  %s433 = sshra.s32 %s432, 3
  %s434 = sand.u32 %s432, 7
  %s435 = sshra.s32 %s432, 3
  %s436 = sand.u32 %s432, 7
  %s437 = smul.u32 %s433, 4
  %s438 = smul.u32 %s437, 8
  %s439 = sadd.s32 %s438, %s436
  %s440 = scalar_lea.vmem %s1, %s439
  %v441 = vld [vmem:[%s440] ss:$8 sm:$0xf]
  %s442 = scalar_lea.vmem [#allocation2], 103
  %443 = vst.msk [vmem:[%s442] ss:$8 sm:$0xf] %vm39, %v441
  %444 = vst.msk [vmem:[%s442] ss:$8 sm:$0x0] %vm39, %v441
  %s445 = sld [smem:[#allocation4 + $0x20]]
  %s446 = sshra.s32 %s445, 3
  %s447 = sand.u32 %s445, 7
  %s448 = sshra.s32 %s445, 3
  %s449 = sand.u32 %s445, 7
  %s450 = smul.u32 %s446, 4
  %s451 = smul.u32 %s450, 8
  %s452 = sadd.s32 %s451, %s449
  %s453 = scalar_lea.vmem %s1, %s452
  %v454 = vld [vmem:[%s453] ss:$8 sm:$0xf]
  %s455 = scalar_lea.vmem [#allocation2], 128
  %456 = vst.msk [vmem:[%s455] ss:$8 sm:$0xf] %vm39, %v454
  %457 = vst.msk [vmem:[%s455] ss:$8 sm:$0x0] %vm39, %v454
  %s458 = sld [smem:[#allocation4 + $0x21]]
  %s459 = sshra.s32 %s458, 3
  %s460 = sand.u32 %s458, 7
  %s461 = sshra.s32 %s458, 3
  %s462 = sand.u32 %s458, 7
  %s463 = smul.u32 %s459, 4
  %s464 = smul.u32 %s463, 8
  %s465 = sadd.s32 %s464, %s462
  %s466 = scalar_lea.vmem %s1, %s465
  %v467 = vld [vmem:[%s466] ss:$8 sm:$0xf]
  %s468 = scalar_lea.vmem [#allocation2], 129
  %469 = vst.msk [vmem:[%s468] ss:$8 sm:$0xf] %vm39, %v467
  %470 = vst.msk [vmem:[%s468] ss:$8 sm:$0x0] %vm39, %v467
  %s471 = sld [smem:[#allocation4 + $0x22]]
  %s472 = sshra.s32 %s471, 3
  %s473 = sand.u32 %s471, 7
  %s474 = sshra.s32 %s471, 3
  %s475 = sand.u32 %s471, 7
  %s476 = smul.u32 %s472, 4
  %s477 = smul.u32 %s476, 8
  %s478 = sadd.s32 %s477, %s475
  %s479 = scalar_lea.vmem %s1, %s478
  %v480 = vld [vmem:[%s479] ss:$8 sm:$0xf]
  %s481 = scalar_lea.vmem [#allocation2], 130
  %482 = vst.msk [vmem:[%s481] ss:$8 sm:$0xf] %vm39, %v480
  %483 = vst.msk [vmem:[%s481] ss:$8 sm:$0x0] %vm39, %v480
  %s484 = sld [smem:[#allocation4 + $0x23]]
  %s485 = sshra.s32 %s484, 3
  %s486 = sand.u32 %s484, 7
  %s487 = sshra.s32 %s484, 3
  %s488 = sand.u32 %s484, 7
  %s489 = smul.u32 %s485, 4
  %s490 = smul.u32 %s489, 8
  %s491 = sadd.s32 %s490, %s488
  %s492 = scalar_lea.vmem %s1, %s491
  %v493 = vld [vmem:[%s492] ss:$8 sm:$0xf]
  %s494 = scalar_lea.vmem [#allocation2], 131
  %495 = vst.msk [vmem:[%s494] ss:$8 sm:$0xf] %vm39, %v493
  %496 = vst.msk [vmem:[%s494] ss:$8 sm:$0x0] %vm39, %v493
  %s497 = sld [smem:[#allocation4 + $0x24]]
  %s498 = sshra.s32 %s497, 3
  %s499 = sand.u32 %s497, 7
  %s500 = sshra.s32 %s497, 3
  %s501 = sand.u32 %s497, 7
  %s502 = smul.u32 %s498, 4
  %s503 = smul.u32 %s502, 8
  %s504 = sadd.s32 %s503, %s501
  %s505 = scalar_lea.vmem %s1, %s504
  %v506 = vld [vmem:[%s505] ss:$8 sm:$0xf]
  %s507 = scalar_lea.vmem [#allocation2], 132
  %508 = vst.msk [vmem:[%s507] ss:$8 sm:$0xf] %vm39, %v506
  %509 = vst.msk [vmem:[%s507] ss:$8 sm:$0x0] %vm39, %v506
  %s510 = sld [smem:[#allocation4 + $0x25]]
  %s511 = sshra.s32 %s510, 3
  %s512 = sand.u32 %s510, 7
  %s513 = sshra.s32 %s510, 3
  %s514 = sand.u32 %s510, 7
  %s515 = smul.u32 %s511, 4
  %s516 = smul.u32 %s515, 8
  %s517 = sadd.s32 %s516, %s514
  %s518 = scalar_lea.vmem %s1, %s517
  %v519 = vld [vmem:[%s518] ss:$8 sm:$0xf]
  %s520 = scalar_lea.vmem [#allocation2], 133
  %521 = vst.msk [vmem:[%s520] ss:$8 sm:$0xf] %vm39, %v519
  %522 = vst.msk [vmem:[%s520] ss:$8 sm:$0x0] %vm39, %v519
  %s523 = sld [smem:[#allocation4 + $0x26]]
  %s524 = sshra.s32 %s523, 3
  %s525 = sand.u32 %s523, 7
  %s526 = sshra.s32 %s523, 3
  %s527 = sand.u32 %s523, 7
  %s528 = smul.u32 %s524, 4
  %s529 = smul.u32 %s528, 8
  %s530 = sadd.s32 %s529, %s527
  %s531 = scalar_lea.vmem %s1, %s530
  %v532 = vld [vmem:[%s531] ss:$8 sm:$0xf]
  %s533 = scalar_lea.vmem [#allocation2], 134
  %534 = vst.msk [vmem:[%s533] ss:$8 sm:$0xf] %vm39, %v532
  %535 = vst.msk [vmem:[%s533] ss:$8 sm:$0x0] %vm39, %v532
  %s536 = sld [smem:[#allocation4 + $0x27]]
  %s537 = sshra.s32 %s536, 3
  %s538 = sand.u32 %s536, 7
  %s539 = sshra.s32 %s536, 3
  %s540 = sand.u32 %s536, 7
  %s541 = smul.u32 %s537, 4
  %s542 = smul.u32 %s541, 8
  %s543 = sadd.s32 %s542, %s540
  %s544 = scalar_lea.vmem %s1, %s543
  %v545 = vld [vmem:[%s544] ss:$8 sm:$0xf]
  %s546 = scalar_lea.vmem [#allocation2], 135
  %547 = vst.msk [vmem:[%s546] ss:$8 sm:$0xf] %vm39, %v545
  %548 = vst.msk [vmem:[%s546] ss:$8 sm:$0x0] %vm39, %v545
  %s549 = sld [smem:[#allocation4 + $0x28]]
  %s550 = sshra.s32 %s549, 3
  %s551 = sand.u32 %s549, 7
  %s552 = sshra.s32 %s549, 3
  %s553 = sand.u32 %s549, 7
  %s554 = smul.u32 %s550, 4
  %s555 = smul.u32 %s554, 8
  %s556 = sadd.s32 %s555, %s553
  %s557 = scalar_lea.vmem %s1, %s556
  %v558 = vld [vmem:[%s557] ss:$8 sm:$0xf]
  %s559 = scalar_lea.vmem [#allocation2], 160
  %560 = vst.msk [vmem:[%s559] ss:$8 sm:$0xf] %vm39, %v558
  %561 = vst.msk [vmem:[%s559] ss:$8 sm:$0x0] %vm39, %v558
  %s562 = sld [smem:[#allocation4 + $0x29]]
  %s563 = sshra.s32 %s562, 3
  %s564 = sand.u32 %s562, 7
  %s565 = sshra.s32 %s562, 3
  %s566 = sand.u32 %s562, 7
  %s567 = smul.u32 %s563, 4
  %s568 = smul.u32 %s567, 8
  %s569 = sadd.s32 %s568, %s566
  %s570 = scalar_lea.vmem %s1, %s569
  %v571 = vld [vmem:[%s570] ss:$8 sm:$0xf]
  %s572 = scalar_lea.vmem [#allocation2], 161
  %573 = vst.msk [vmem:[%s572] ss:$8 sm:$0xf] %vm39, %v571
  %574 = vst.msk [vmem:[%s572] ss:$8 sm:$0x0] %vm39, %v571
  %s575 = sld [smem:[#allocation4 + $0x2a]]
  %s576 = sshra.s32 %s575, 3
  %s577 = sand.u32 %s575, 7
  %s578 = sshra.s32 %s575, 3
  %s579 = sand.u32 %s575, 7
  %s580 = smul.u32 %s576, 4
  %s581 = smul.u32 %s580, 8
  %s582 = sadd.s32 %s581, %s579
  %s583 = scalar_lea.vmem %s1, %s582
  %v584 = vld [vmem:[%s583] ss:$8 sm:$0xf]
  %s585 = scalar_lea.vmem [#allocation2], 162
  %586 = vst.msk [vmem:[%s585] ss:$8 sm:$0xf] %vm39, %v584
  %587 = vst.msk [vmem:[%s585] ss:$8 sm:$0x0] %vm39, %v584
  %s588 = sld [smem:[#allocation4 + $0x2b]]
  %s589 = sshra.s32 %s588, 3
  %s590 = sand.u32 %s588, 7
  %s591 = sshra.s32 %s588, 3
  %s592 = sand.u32 %s588, 7
  %s593 = smul.u32 %s589, 4
  %s594 = smul.u32 %s593, 8
  %s595 = sadd.s32 %s594, %s592
  %s596 = scalar_lea.vmem %s1, %s595
  %v597 = vld [vmem:[%s596] ss:$8 sm:$0xf]
  %s598 = scalar_lea.vmem [#allocation2], 163
  %599 = vst.msk [vmem:[%s598] ss:$8 sm:$0xf] %vm39, %v597
  %600 = vst.msk [vmem:[%s598] ss:$8 sm:$0x0] %vm39, %v597
  %s601 = sld [smem:[#allocation4 + $0x2c]]
  %s602 = sshra.s32 %s601, 3
  %s603 = sand.u32 %s601, 7
  %s604 = sshra.s32 %s601, 3
  %s605 = sand.u32 %s601, 7
  %s606 = smul.u32 %s602, 4
  %s607 = smul.u32 %s606, 8
  %s608 = sadd.s32 %s607, %s605
  %s609 = scalar_lea.vmem %s1, %s608
  %v610 = vld [vmem:[%s609] ss:$8 sm:$0xf]
  %s611 = scalar_lea.vmem [#allocation2], 164
  %612 = vst.msk [vmem:[%s611] ss:$8 sm:$0xf] %vm39, %v610
  %613 = vst.msk [vmem:[%s611] ss:$8 sm:$0x0] %vm39, %v610
  %s614 = sld [smem:[#allocation4 + $0x2d]]
  %s615 = sshra.s32 %s614, 3
  %s616 = sand.u32 %s614, 7
  %s617 = sshra.s32 %s614, 3
  %s618 = sand.u32 %s614, 7
  %s619 = smul.u32 %s615, 4
  %s620 = smul.u32 %s619, 8
  %s621 = sadd.s32 %s620, %s618
  %s622 = scalar_lea.vmem %s1, %s621
  %v623 = vld [vmem:[%s622] ss:$8 sm:$0xf]
  %s624 = scalar_lea.vmem [#allocation2], 165
  %625 = vst.msk [vmem:[%s624] ss:$8 sm:$0xf] %vm39, %v623
  %626 = vst.msk [vmem:[%s624] ss:$8 sm:$0x0] %vm39, %v623
  %s627 = sld [smem:[#allocation4 + $0x2e]]
  %s628 = sshra.s32 %s627, 3
  %s629 = sand.u32 %s627, 7
  %s630 = sshra.s32 %s627, 3
  %s631 = sand.u32 %s627, 7
  %s632 = smul.u32 %s628, 4
  %s633 = smul.u32 %s632, 8
  %s634 = sadd.s32 %s633, %s631
  %s635 = scalar_lea.vmem %s1, %s634
  %v636 = vld [vmem:[%s635] ss:$8 sm:$0xf]
  %s637 = scalar_lea.vmem [#allocation2], 166
  %638 = vst.msk [vmem:[%s637] ss:$8 sm:$0xf] %vm39, %v636
  %639 = vst.msk [vmem:[%s637] ss:$8 sm:$0x0] %vm39, %v636
  %s640 = sld [smem:[#allocation4 + $0x2f]]
  %s641 = sshra.s32 %s640, 3
  %s642 = sand.u32 %s640, 7
  %s643 = sshra.s32 %s640, 3
  %s644 = sand.u32 %s640, 7
  %s645 = smul.u32 %s641, 4
  %s646 = smul.u32 %s645, 8
  %s647 = sadd.s32 %s646, %s644
  %s648 = scalar_lea.vmem %s1, %s647
  %v649 = vld [vmem:[%s648] ss:$8 sm:$0xf]
  %s650 = scalar_lea.vmem [#allocation2], 167
  %651 = vst.msk [vmem:[%s650] ss:$8 sm:$0xf] %vm39, %v649
  %652 = vst.msk [vmem:[%s650] ss:$8 sm:$0x0] %vm39, %v649
  %s653 = sld [smem:[#allocation4 + $0x30]]
  %s654 = sshra.s32 %s653, 3
  %s655 = sand.u32 %s653, 7
  %s656 = sshra.s32 %s653, 3
  %s657 = sand.u32 %s653, 7
  %s658 = smul.u32 %s654, 4
  %s659 = smul.u32 %s658, 8
  %s660 = sadd.s32 %s659, %s657
  %s661 = scalar_lea.vmem %s1, %s660
  %v662 = vld [vmem:[%s661] ss:$8 sm:$0xf]
  %s663 = scalar_lea.vmem [#allocation2], 192
  %664 = vst.msk [vmem:[%s663] ss:$8 sm:$0xf] %vm39, %v662
  %665 = vst.msk [vmem:[%s663] ss:$8 sm:$0x0] %vm39, %v662
  %s666 = sld [smem:[#allocation4 + $0x31]]
  %s667 = sshra.s32 %s666, 3
  %s668 = sand.u32 %s666, 7
  %s669 = sshra.s32 %s666, 3
  %s670 = sand.u32 %s666, 7
  %s671 = smul.u32 %s667, 4
  %s672 = smul.u32 %s671, 8
  %s673 = sadd.s32 %s672, %s670
  %s674 = scalar_lea.vmem %s1, %s673
  %v675 = vld [vmem:[%s674] ss:$8 sm:$0xf]
  %s676 = scalar_lea.vmem [#allocation2], 193
  %677 = vst.msk [vmem:[%s676] ss:$8 sm:$0xf] %vm39, %v675
  %678 = vst.msk [vmem:[%s676] ss:$8 sm:$0x0] %vm39, %v675
  %s679 = sld [smem:[#allocation4 + $0x32]]
  %s680 = sshra.s32 %s679, 3
  %s681 = sand.u32 %s679, 7
  %s682 = sshra.s32 %s679, 3
  %s683 = sand.u32 %s679, 7
  %s684 = smul.u32 %s680, 4
  %s685 = smul.u32 %s684, 8
  %s686 = sadd.s32 %s685, %s683
  %s687 = scalar_lea.vmem %s1, %s686
  %v688 = vld [vmem:[%s687] ss:$8 sm:$0xf]
  %s689 = scalar_lea.vmem [#allocation2], 194
  %690 = vst.msk [vmem:[%s689] ss:$8 sm:$0xf] %vm39, %v688
  %691 = vst.msk [vmem:[%s689] ss:$8 sm:$0x0] %vm39, %v688
  %s692 = sld [smem:[#allocation4 + $0x33]]
  %s693 = sshra.s32 %s692, 3
  %s694 = sand.u32 %s692, 7
  %s695 = sshra.s32 %s692, 3
  %s696 = sand.u32 %s692, 7
  %s697 = smul.u32 %s693, 4
  %s698 = smul.u32 %s697, 8
  %s699 = sadd.s32 %s698, %s696
  %s700 = scalar_lea.vmem %s1, %s699
  %v701 = vld [vmem:[%s700] ss:$8 sm:$0xf]
  %s702 = scalar_lea.vmem [#allocation2], 195
  %703 = vst.msk [vmem:[%s702] ss:$8 sm:$0xf] %vm39, %v701
  %704 = vst.msk [vmem:[%s702] ss:$8 sm:$0x0] %vm39, %v701
  %s705 = sld [smem:[#allocation4 + $0x34]]
  %s706 = sshra.s32 %s705, 3
  %s707 = sand.u32 %s705, 7
  %s708 = sshra.s32 %s705, 3
  %s709 = sand.u32 %s705, 7
  %s710 = smul.u32 %s706, 4
  %s711 = smul.u32 %s710, 8
  %s712 = sadd.s32 %s711, %s709
  %s713 = scalar_lea.vmem %s1, %s712
  %v714 = vld [vmem:[%s713] ss:$8 sm:$0xf]
  %s715 = scalar_lea.vmem [#allocation2], 196
  %716 = vst.msk [vmem:[%s715] ss:$8 sm:$0xf] %vm39, %v714
  %717 = vst.msk [vmem:[%s715] ss:$8 sm:$0x0] %vm39, %v714
  %s718 = sld [smem:[#allocation4 + $0x35]]
  %s719 = sshra.s32 %s718, 3
  %s720 = sand.u32 %s718, 7
  %s721 = sshra.s32 %s718, 3
  %s722 = sand.u32 %s718, 7
  %s723 = smul.u32 %s719, 4
  %s724 = smul.u32 %s723, 8
  %s725 = sadd.s32 %s724, %s722
  %s726 = scalar_lea.vmem %s1, %s725
  %v727 = vld [vmem:[%s726] ss:$8 sm:$0xf]
  %s728 = scalar_lea.vmem [#allocation2], 197
  %729 = vst.msk [vmem:[%s728] ss:$8 sm:$0xf] %vm39, %v727
  %730 = vst.msk [vmem:[%s728] ss:$8 sm:$0x0] %vm39, %v727
  %s731 = sld [smem:[#allocation4 + $0x36]]
  %s732 = sshra.s32 %s731, 3
  %s733 = sand.u32 %s731, 7
  %s734 = sshra.s32 %s731, 3
  %s735 = sand.u32 %s731, 7
  %s736 = smul.u32 %s732, 4
  %s737 = smul.u32 %s736, 8
  %s738 = sadd.s32 %s737, %s735
  %s739 = scalar_lea.vmem %s1, %s738
  %v740 = vld [vmem:[%s739] ss:$8 sm:$0xf]
  %s741 = scalar_lea.vmem [#allocation2], 198
  %742 = vst.msk [vmem:[%s741] ss:$8 sm:$0xf] %vm39, %v740
  %743 = vst.msk [vmem:[%s741] ss:$8 sm:$0x0] %vm39, %v740
  %s744 = sld [smem:[#allocation4 + $0x37]]
  %s745 = sshra.s32 %s744, 3
  %s746 = sand.u32 %s744, 7
  %s747 = sshra.s32 %s744, 3
  %s748 = sand.u32 %s744, 7
  %s749 = smul.u32 %s745, 4
  %s750 = smul.u32 %s749, 8
  %s751 = sadd.s32 %s750, %s748
  %s752 = scalar_lea.vmem %s1, %s751
  %v753 = vld [vmem:[%s752] ss:$8 sm:$0xf]
  %s754 = scalar_lea.vmem [#allocation2], 199
  %755 = vst.msk [vmem:[%s754] ss:$8 sm:$0xf] %vm39, %v753
  %756 = vst.msk [vmem:[%s754] ss:$8 sm:$0x0] %vm39, %v753
  %s757 = sld [smem:[#allocation4 + $0x38]]
  %s758 = sshra.s32 %s757, 3
  %s759 = sand.u32 %s757, 7
  %s760 = sshra.s32 %s757, 3
  %s761 = sand.u32 %s757, 7
  %s762 = smul.u32 %s758, 4
  %s763 = smul.u32 %s762, 8
  %s764 = sadd.s32 %s763, %s761
  %s765 = scalar_lea.vmem %s1, %s764
  %v766 = vld [vmem:[%s765] ss:$8 sm:$0xf]
  %s767 = scalar_lea.vmem [#allocation2], 224
  %768 = vst.msk [vmem:[%s767] ss:$8 sm:$0xf] %vm39, %v766
  %769 = vst.msk [vmem:[%s767] ss:$8 sm:$0x0] %vm39, %v766
  %s770 = sld [smem:[#allocation4 + $0x39]]
  %s771 = sshra.s32 %s770, 3
  %s772 = sand.u32 %s770, 7
  %s773 = sshra.s32 %s770, 3
  %s774 = sand.u32 %s770, 7
  %s775 = smul.u32 %s771, 4
  %s776 = smul.u32 %s775, 8
  %s777 = sadd.s32 %s776, %s774
  %s778 = scalar_lea.vmem %s1, %s777
  %v779 = vld [vmem:[%s778] ss:$8 sm:$0xf]
  %s780 = scalar_lea.vmem [#allocation2], 225
  %781 = vst.msk [vmem:[%s780] ss:$8 sm:$0xf] %vm39, %v779
  %782 = vst.msk [vmem:[%s780] ss:$8 sm:$0x0] %vm39, %v779
  %s783 = sld [smem:[#allocation4 + $0x3a]]
  %s784 = sshra.s32 %s783, 3
  %s785 = sand.u32 %s783, 7
  %s786 = sshra.s32 %s783, 3
  %s787 = sand.u32 %s783, 7
  %s788 = smul.u32 %s784, 4
  %s789 = smul.u32 %s788, 8
  %s790 = sadd.s32 %s789, %s787
  %s791 = scalar_lea.vmem %s1, %s790
  %v792 = vld [vmem:[%s791] ss:$8 sm:$0xf]
  %s793 = scalar_lea.vmem [#allocation2], 226
  %794 = vst.msk [vmem:[%s793] ss:$8 sm:$0xf] %vm39, %v792
  %795 = vst.msk [vmem:[%s793] ss:$8 sm:$0x0] %vm39, %v792
  %s796 = sld [smem:[#allocation4 + $0x3b]]
  %s797 = sshra.s32 %s796, 3
  %s798 = sand.u32 %s796, 7
  %s799 = sshra.s32 %s796, 3
  %s800 = sand.u32 %s796, 7
  %s801 = smul.u32 %s797, 4
  %s802 = smul.u32 %s801, 8
  %s803 = sadd.s32 %s802, %s800
  %s804 = scalar_lea.vmem %s1, %s803
  %v805 = vld [vmem:[%s804] ss:$8 sm:$0xf]
  %s806 = scalar_lea.vmem [#allocation2], 227
  %807 = vst.msk [vmem:[%s806] ss:$8 sm:$0xf] %vm39, %v805
  %808 = vst.msk [vmem:[%s806] ss:$8 sm:$0x0] %vm39, %v805
  %s809 = sld [smem:[#allocation4 + $0x3c]]
  %s810 = sshra.s32 %s809, 3
  %s811 = sand.u32 %s809, 7
  %s812 = sshra.s32 %s809, 3
  %s813 = sand.u32 %s809, 7
  %s814 = smul.u32 %s810, 4
  %s815 = smul.u32 %s814, 8
  %s816 = sadd.s32 %s815, %s813
  %s817 = scalar_lea.vmem %s1, %s816
  %v818 = vld [vmem:[%s817] ss:$8 sm:$0xf]
  %s819 = scalar_lea.vmem [#allocation2], 228
  %820 = vst.msk [vmem:[%s819] ss:$8 sm:$0xf] %vm39, %v818
  %821 = vst.msk [vmem:[%s819] ss:$8 sm:$0x0] %vm39, %v818
  %s822 = sld [smem:[#allocation4 + $0x3d]]
  %s823 = sshra.s32 %s822, 3
  %s824 = sand.u32 %s822, 7
  %s825 = sshra.s32 %s822, 3
  %s826 = sand.u32 %s822, 7
  %s827 = smul.u32 %s823, 4
  %s828 = smul.u32 %s827, 8
  %s829 = sadd.s32 %s828, %s826
  %s830 = scalar_lea.vmem %s1, %s829
  %v831 = vld [vmem:[%s830] ss:$8 sm:$0xf]
  %s832 = scalar_lea.vmem [#allocation2], 229
  %833 = vst.msk [vmem:[%s832] ss:$8 sm:$0xf] %vm39, %v831
  %834 = vst.msk [vmem:[%s832] ss:$8 sm:$0x0] %vm39, %v831
  %s835 = sld [smem:[#allocation4 + $0x3e]]
  %s836 = sshra.s32 %s835, 3
  %s837 = sand.u32 %s835, 7
  %s838 = sshra.s32 %s835, 3
  %s839 = sand.u32 %s835, 7
  %s840 = smul.u32 %s836, 4
  %s841 = smul.u32 %s840, 8
  %s842 = sadd.s32 %s841, %s839
  %s843 = scalar_lea.vmem %s1, %s842
  %v844 = vld [vmem:[%s843] ss:$8 sm:$0xf]
  %s845 = scalar_lea.vmem [#allocation2], 230
  %846 = vst.msk [vmem:[%s845] ss:$8 sm:$0xf] %vm39, %v844
  %847 = vst.msk [vmem:[%s845] ss:$8 sm:$0x0] %vm39, %v844
  %s848 = sld [smem:[#allocation4 + $0x3f]]
  %s849 = sshra.s32 %s848, 3
  %s850 = sand.u32 %s848, 7
  %s851 = sshra.s32 %s848, 3
  %s852 = sand.u32 %s848, 7
  %s853 = smul.u32 %s849, 4
  %s854 = smul.u32 %s853, 8
  %s855 = sadd.s32 %s854, %s852
  %s856 = scalar_lea.vmem %s1, %s855
  %v857 = vld [vmem:[%s856] ss:$8 sm:$0xf]
  %s858 = scalar_lea.vmem [#allocation2], 231
  %859 = vst.msk [vmem:[%s858] ss:$8 sm:$0xf] %vm39, %v857
  %860 = vst.msk [vmem:[%s858] ss:$8 sm:$0x0] %vm39, %v857
  %v861 = vld [vmem:[%s2] sm:$0xff]
  %v862 = vld [vmem:[%s2 + $0x8] sm:$0xff]
  %v863 = vld [vmem:[%s2 + $0x10] sm:$0xff]
  %v864 = vld [vmem:[%s2 + $0x18] sm:$0xff]
  %v865 = vld [vmem:[%s2 + $0x20] sm:$0xff]
  %v866 = vld [vmem:[%s2 + $0x28] sm:$0xff]
  %v867 = vld [vmem:[%s2 + $0x30] sm:$0xff]
  %v868 = vld [vmem:[%s2 + $0x38] sm:$0xff]
  %v869 = vld [vmem:[%s2 + $0x40] sm:$0xff]
  %v870 = vld [vmem:[%s2 + $0x48] sm:$0xff]
  %v871 = vld [vmem:[%s2 + $0x50] sm:$0xff]
  %v872 = vld [vmem:[%s2 + $0x58] sm:$0xff]
  %v873 = vld [vmem:[%s2 + $0x60] sm:$0xff]
  %v874 = vld [vmem:[%s2 + $0x68] sm:$0xff]
  %v875 = vld [vmem:[%s2 + $0x70] sm:$0xff]
  %v876 = vld [vmem:[%s2 + $0x78] sm:$0xff]
  %v877 = vld [vmem:[%s2 + $0x80] sm:$0xff]
  %v878 = vld [vmem:[%s2 + $0x88] sm:$0xff]
  %v879 = vld [vmem:[%s2 + $0x90] sm:$0xff]
  %v880 = vld [vmem:[%s2 + $0x98] sm:$0xff]
  %v881 = vld [vmem:[%s2 + $0xa0] sm:$0xff]
  %v882 = vld [vmem:[%s2 + $0xa8] sm:$0xff]
  %v883 = vld [vmem:[%s2 + $0xb0] sm:$0xff]
  %v884 = vld [vmem:[%s2 + $0xb8] sm:$0xff]
  %v885 = vld [vmem:[%s2 + $0xc0] sm:$0xff]
  %v886 = vld [vmem:[%s2 + $0xc8] sm:$0xff]
  %v887 = vld [vmem:[%s2 + $0xd0] sm:$0xff]
  %v888 = vld [vmem:[%s2 + $0xd8] sm:$0xff]
  %v889 = vld [vmem:[%s2 + $0xe0] sm:$0xff]
  %v890 = vld [vmem:[%s2 + $0xe8] sm:$0xff]
  %v891 = vld [vmem:[%s2 + $0xf0] sm:$0xff]
  %v892 = vld [vmem:[%s2 + $0xf8] sm:$0xff]
  %v893 = vld [vmem:[%s2 + $0x100] sm:$0xff]
  %v894 = vld [vmem:[%s2 + $0x108] sm:$0xff]
  %v895 = vld [vmem:[%s2 + $0x110] sm:$0xff]
  %v896 = vld [vmem:[%s2 + $0x118] sm:$0xff]
  %v897 = vld [vmem:[%s2 + $0x120] sm:$0xff]
  %v898 = vld [vmem:[%s2 + $0x128] sm:$0xff]
  %v899 = vld [vmem:[%s2 + $0x130] sm:$0xff]
  %v900 = vld [vmem:[%s2 + $0x138] sm:$0xff]
  %v901 = vld [vmem:[%s2 + $0x140] sm:$0xff]
  %v902 = vld [vmem:[%s2 + $0x148] sm:$0xff]
  %v903 = vld [vmem:[%s2 + $0x150] sm:$0xff]
  %v904 = vld [vmem:[%s2 + $0x158] sm:$0xff]
  %v905 = vld [vmem:[%s2 + $0x160] sm:$0xff]
  %v906 = vld [vmem:[%s2 + $0x168] sm:$0xff]
  %v907 = vld [vmem:[%s2 + $0x170] sm:$0xff]
  %v908 = vld [vmem:[%s2 + $0x178] sm:$0xff]
  %v909 = vld [vmem:[%s2 + $0x180] sm:$0xff]
  %v910 = vld [vmem:[%s2 + $0x188] sm:$0xff]
  %v911 = vld [vmem:[%s2 + $0x190] sm:$0xff]
  %v912 = vld [vmem:[%s2 + $0x198] sm:$0xff]
  %v913 = vld [vmem:[%s2 + $0x1a0] sm:$0xff]
  %v914 = vld [vmem:[%s2 + $0x1a8] sm:$0xff]
  %v915 = vld [vmem:[%s2 + $0x1b0] sm:$0xff]
  %v916 = vld [vmem:[%s2 + $0x1b8] sm:$0xff]
  %v917 = vld [vmem:[%s2 + $0x1c0] sm:$0xff]
  %v918 = vld [vmem:[%s2 + $0x1c8] sm:$0xff]
  %v919 = vld [vmem:[%s2 + $0x1d0] sm:$0xff]
  %v920 = vld [vmem:[%s2 + $0x1d8] sm:$0xff]
  %v921 = vld [vmem:[%s2 + $0x1e0] sm:$0xff]
  %v922 = vld [vmem:[%s2 + $0x1e8] sm:$0xff]
  %v923 = vld [vmem:[%s2 + $0x1f0] sm:$0xff]
  %v924 = vld [vmem:[%s2 + $0x1f8] sm:$0xff]
  %v925 = vld [vmem:[%s3] sm:$0xff]
  %v926 = vld [vmem:[%s3 + $0x8] sm:$0xff]
  %v927 = vld [vmem:[%s3 + $0x10] sm:$0xff]
  %v928 = vld [vmem:[%s3 + $0x18] sm:$0xff]
  %v929 = vld [vmem:[%s3 + $0x20] sm:$0xff]
  %v930 = vld [vmem:[%s3 + $0x28] sm:$0xff]
  %v931 = vld [vmem:[%s3 + $0x30] sm:$0xff]
  %v932 = vld [vmem:[%s3 + $0x38] sm:$0xff]
  %v933 = vld [vmem:[%s3 + $0x40] sm:$0xff]
  %v934 = vld [vmem:[%s3 + $0x48] sm:$0xff]
  %v935 = vld [vmem:[%s3 + $0x50] sm:$0xff]
  %v936 = vld [vmem:[%s3 + $0x58] sm:$0xff]
  %v937 = vld [vmem:[%s3 + $0x60] sm:$0xff]
  %v938 = vld [vmem:[%s3 + $0x68] sm:$0xff]
  %v939 = vld [vmem:[%s3 + $0x70] sm:$0xff]
  %v940 = vld [vmem:[%s3 + $0x78] sm:$0xff]
  %v941 = vld [vmem:[%s3 + $0x80] sm:$0xff]
  %v942 = vld [vmem:[%s3 + $0x88] sm:$0xff]
  %v943 = vld [vmem:[%s3 + $0x90] sm:$0xff]
  %v944 = vld [vmem:[%s3 + $0x98] sm:$0xff]
  %v945 = vld [vmem:[%s3 + $0xa0] sm:$0xff]
  %v946 = vld [vmem:[%s3 + $0xa8] sm:$0xff]
  %v947 = vld [vmem:[%s3 + $0xb0] sm:$0xff]
  %v948 = vld [vmem:[%s3 + $0xb8] sm:$0xff]
  %v949 = vld [vmem:[%s3 + $0xc0] sm:$0xff]
  %v950 = vld [vmem:[%s3 + $0xc8] sm:$0xff]
  %v951 = vld [vmem:[%s3 + $0xd0] sm:$0xff]
  %v952 = vld [vmem:[%s3 + $0xd8] sm:$0xff]
  %v953 = vld [vmem:[%s3 + $0xe0] sm:$0xff]
  %v954 = vld [vmem:[%s3 + $0xe8] sm:$0xff]
  %v955 = vld [vmem:[%s3 + $0xf0] sm:$0xff]
  %v956 = vld [vmem:[%s3 + $0xf8] sm:$0xff]
  %v957 = vld [vmem:[%s3 + $0x100] sm:$0xff]
  %v958 = vld [vmem:[%s3 + $0x108] sm:$0xff]
  %v959 = vld [vmem:[%s3 + $0x110] sm:$0xff]
  %v960 = vld [vmem:[%s3 + $0x118] sm:$0xff]
  %v961 = vld [vmem:[%s3 + $0x120] sm:$0xff]
  %v962 = vld [vmem:[%s3 + $0x128] sm:$0xff]
  %v963 = vld [vmem:[%s3 + $0x130] sm:$0xff]
  %v964 = vld [vmem:[%s3 + $0x138] sm:$0xff]
  %v965 = vld [vmem:[%s3 + $0x140] sm:$0xff]
  %v966 = vld [vmem:[%s3 + $0x148] sm:$0xff]
  %v967 = vld [vmem:[%s3 + $0x150] sm:$0xff]
  %v968 = vld [vmem:[%s3 + $0x158] sm:$0xff]
  %v969 = vld [vmem:[%s3 + $0x160] sm:$0xff]
  %v970 = vld [vmem:[%s3 + $0x168] sm:$0xff]
  %v971 = vld [vmem:[%s3 + $0x170] sm:$0xff]
  %v972 = vld [vmem:[%s3 + $0x178] sm:$0xff]
  %v973 = vld [vmem:[%s3 + $0x180] sm:$0xff]
  %v974 = vld [vmem:[%s3 + $0x188] sm:$0xff]
  %v975 = vld [vmem:[%s3 + $0x190] sm:$0xff]
  %v976 = vld [vmem:[%s3 + $0x198] sm:$0xff]
  %v977 = vld [vmem:[%s3 + $0x1a0] sm:$0xff]
  %v978 = vld [vmem:[%s3 + $0x1a8] sm:$0xff]
  %v979 = vld [vmem:[%s3 + $0x1b0] sm:$0xff]
  %v980 = vld [vmem:[%s3 + $0x1b8] sm:$0xff]
  %v981 = vld [vmem:[%s3 + $0x1c0] sm:$0xff]
  %v982 = vld [vmem:[%s3 + $0x1c8] sm:$0xff]
  %v983 = vld [vmem:[%s3 + $0x1d0] sm:$0xff]
  %v984 = vld [vmem:[%s3 + $0x1d8] sm:$0xff]
  %v985 = vld [vmem:[%s3 + $0x1e0] sm:$0xff]
  %v986 = vld [vmem:[%s3 + $0x1e8] sm:$0xff]
  %v987 = vld [vmem:[%s3 + $0x1f0] sm:$0xff]
  %v988 = vld [vmem:[%s3 + $0x1f8] sm:$0xff]
  %v989 = vld [vmem:[%s3 + $0x200] sm:$0xff]
  %v990 = vld [vmem:[%s3 + $0x208] sm:$0xff]
  %v991 = vld [vmem:[%s3 + $0x210] sm:$0xff]
  %v992 = vld [vmem:[%s3 + $0x218] sm:$0xff]
  %v993 = vld [vmem:[%s3 + $0x220] sm:$0xff]
  %v994 = vld [vmem:[%s3 + $0x228] sm:$0xff]
  %v995 = vld [vmem:[%s3 + $0x230] sm:$0xff]
  %v996 = vld [vmem:[%s3 + $0x238] sm:$0xff]
  %v997 = vld [vmem:[%s3 + $0x240] sm:$0xff]
  %v998 = vld [vmem:[%s3 + $0x248] sm:$0xff]
  %v999 = vld [vmem:[%s3 + $0x250] sm:$0xff]
  %v1000 = vld [vmem:[%s3 + $0x258] sm:$0xff]
  %v1001 = vld [vmem:[%s3 + $0x260] sm:$0xff]
  %v1002 = vld [vmem:[%s3 + $0x268] sm:$0xff]
  %v1003 = vld [vmem:[%s3 + $0x270] sm:$0xff]
  %v1004 = vld [vmem:[%s3 + $0x278] sm:$0xff]
  %v1005 = vld [vmem:[%s3 + $0x280] sm:$0xff]
  %v1006 = vld [vmem:[%s3 + $0x288] sm:$0xff]
  %v1007 = vld [vmem:[%s3 + $0x290] sm:$0xff]
  %v1008 = vld [vmem:[%s3 + $0x298] sm:$0xff]
  %v1009 = vld [vmem:[%s3 + $0x2a0] sm:$0xff]
  %v1010 = vld [vmem:[%s3 + $0x2a8] sm:$0xff]
  %v1011 = vld [vmem:[%s3 + $0x2b0] sm:$0xff]
  %v1012 = vld [vmem:[%s3 + $0x2b8] sm:$0xff]
  %v1013 = vld [vmem:[%s3 + $0x2c0] sm:$0xff]
  %v1014 = vld [vmem:[%s3 + $0x2c8] sm:$0xff]
  %v1015 = vld [vmem:[%s3 + $0x2d0] sm:$0xff]
  %v1016 = vld [vmem:[%s3 + $0x2d8] sm:$0xff]
  %v1017 = vld [vmem:[%s3 + $0x2e0] sm:$0xff]
  %v1018 = vld [vmem:[%s3 + $0x2e8] sm:$0xff]
  %v1019 = vld [vmem:[%s3 + $0x2f0] sm:$0xff]
  %v1020 = vld [vmem:[%s3 + $0x2f8] sm:$0xff]
  %v1021 = vld [vmem:[%s3 + $0x300] sm:$0xff]
  %v1022 = vld [vmem:[%s3 + $0x308] sm:$0xff]
  %v1023 = vld [vmem:[%s3 + $0x310] sm:$0xff]
  %v1024 = vld [vmem:[%s3 + $0x318] sm:$0xff]
  %v1025 = vld [vmem:[%s3 + $0x320] sm:$0xff]
  %v1026 = vld [vmem:[%s3 + $0x328] sm:$0xff]
  %v1027 = vld [vmem:[%s3 + $0x330] sm:$0xff]
  %v1028 = vld [vmem:[%s3 + $0x338] sm:$0xff]
  %v1029 = vld [vmem:[%s3 + $0x340] sm:$0xff]
  %v1030 = vld [vmem:[%s3 + $0x348] sm:$0xff]
  %v1031 = vld [vmem:[%s3 + $0x350] sm:$0xff]
  %v1032 = vld [vmem:[%s3 + $0x358] sm:$0xff]
  %v1033 = vld [vmem:[%s3 + $0x360] sm:$0xff]
  %v1034 = vld [vmem:[%s3 + $0x368] sm:$0xff]
  %v1035 = vld [vmem:[%s3 + $0x370] sm:$0xff]
  %v1036 = vld [vmem:[%s3 + $0x378] sm:$0xff]
  %v1037 = vld [vmem:[%s3 + $0x380] sm:$0xff]
  %v1038 = vld [vmem:[%s3 + $0x388] sm:$0xff]
  %v1039 = vld [vmem:[%s3 + $0x390] sm:$0xff]
  %v1040 = vld [vmem:[%s3 + $0x398] sm:$0xff]
  %v1041 = vld [vmem:[%s3 + $0x3a0] sm:$0xff]
  %v1042 = vld [vmem:[%s3 + $0x3a8] sm:$0xff]
  %v1043 = vld [vmem:[%s3 + $0x3b0] sm:$0xff]
  %v1044 = vld [vmem:[%s3 + $0x3b8] sm:$0xff]
  %v1045 = vld [vmem:[%s3 + $0x3c0] sm:$0xff]
  %v1046 = vld [vmem:[%s3 + $0x3c8] sm:$0xff]
  %v1047 = vld [vmem:[%s3 + $0x3d0] sm:$0xff]
  %v1048 = vld [vmem:[%s3 + $0x3d8] sm:$0xff]
  %v1049 = vld [vmem:[%s3 + $0x3e0] sm:$0xff]
  %v1050 = vld [vmem:[%s3 + $0x3e8] sm:$0xff]
  %v1051 = vld [vmem:[%s3 + $0x3f0] sm:$0xff]
  %v1052 = vld [vmem:[%s3 + $0x3f8] sm:$0xff]
  %v1053 = vld [vmem:[%s4] sm:$0xff]
  %v1054 = vld [vmem:[%s4 + $0x8] sm:$0xff]
  %v1055 = vld [vmem:[%s4 + $0x10] sm:$0xff]
  %v1056 = vld [vmem:[%s4 + $0x18] sm:$0xff]
  %s1057 = smul.u32 0, 4
  %s1058 = smul.addr %s1057, 8
  %s1059 = scalar_lea.vmem [#allocation2], %s1058
  %v1060 = vld [vmem:[%s1059] sm:$0xff]
  %v1061 = vld [vmem:[%s1059 + $0x8] sm:$0xff]
  %v1062 = vld [vmem:[%s1059 + $0x10] sm:$0xff]
  %v1063 = vld [vmem:[%s1059 + $0x18] sm:$0xff]
  %1064 = vmatpush.msra.mxu0 %v921
  %1065 = vmatpush.msra.mxu0 %v917
  %1066 = vmatpush.msra.mxu0 %v913
  %1067 = vmatpush.msra.mxu0 %v909
  %1068 = vmatpush.msra.mxu0 %v905
  %1069 = vmatpush.msra.mxu0 %v901
  %1070 = vmatpush.msra.mxu0 %v897
  %1071 = vmatpush.msra.mxu0 %v893
  %1072 = vmatpush.msra.mxu0 %v889
  %1073 = vmatpush.msra.mxu0 %v885
  %1074 = vmatpush.msra.mxu0 %v881
  %1075 = vmatpush.msra.mxu0 %v877
  %1076 = vmatpush.msra.mxu0 %v873
  %1077 = vmatpush.msra.mxu0 %v869
  %1078 = vmatpush.msra.mxu0 %v865
  %1079 = vmatpush.msra.mxu0 %v861
  %1080 = vmatmul.f32.gmra.mxu0 0.0
  %v1081 = vpop.f32.mrf.mxu0
  %v1082 = vadd.f32 0.0, %v1081
  %1083 = vdwg.mxu0
  %1084 = vmatpush.msra.mxu0 %v922
  %1085 = vmatpush.msra.mxu0 %v918
  %1086 = vmatpush.msra.mxu0 %v914
  %1087 = vmatpush.msra.mxu0 %v910
  %1088 = vmatpush.msra.mxu0 %v906
  %1089 = vmatpush.msra.mxu0 %v902
  %1090 = vmatpush.msra.mxu0 %v898
  %1091 = vmatpush.msra.mxu0 %v894
  %1092 = vmatpush.msra.mxu0 %v890
  %1093 = vmatpush.msra.mxu0 %v886
  %1094 = vmatpush.msra.mxu0 %v882
  %1095 = vmatpush.msra.mxu0 %v878
  %1096 = vmatpush.msra.mxu0 %v874
  %1097 = vmatpush.msra.mxu0 %v870
  %1098 = vmatpush.msra.mxu0 %v866
  %1099 = vmatpush.msra.mxu0 %v862
  %1100 = vmatmul.f32.gmra.mxu0 0.0
  %v1101 = vpop.f32.mrf.mxu0
  %v1102 = vadd.f32 0.0, %v1101
  %1103 = vdwg.mxu0
  %1104 = vmatpush.msra.mxu0 %v923
  %1105 = vmatpush.msra.mxu0 %v919
  %1106 = vmatpush.msra.mxu0 %v915
  %1107 = vmatpush.msra.mxu0 %v911
  %1108 = vmatpush.msra.mxu0 %v907
  %1109 = vmatpush.msra.mxu0 %v903
  %1110 = vmatpush.msra.mxu0 %v899
  %1111 = vmatpush.msra.mxu0 %v895
  %1112 = vmatpush.msra.mxu0 %v891
  %1113 = vmatpush.msra.mxu0 %v887
  %1114 = vmatpush.msra.mxu0 %v883
  %1115 = vmatpush.msra.mxu0 %v879
  %1116 = vmatpush.msra.mxu0 %v875
  %1117 = vmatpush.msra.mxu0 %v871
  %1118 = vmatpush.msra.mxu0 %v867
  %1119 = vmatpush.msra.mxu0 %v863
  %1120 = vmatmul.f32.gmra.mxu0 0.0
  %v1121 = vpop.f32.mrf.mxu0
  %v1122 = vadd.f32 0.0, %v1121
  %1123 = vdwg.mxu0
  %1124 = vmatpush.msra.mxu0 %v924
  %1125 = vmatpush.msra.mxu0 %v920
  %1126 = vmatpush.msra.mxu0 %v916
  %1127 = vmatpush.msra.mxu0 %v912
  %1128 = vmatpush.msra.mxu0 %v908
  %1129 = vmatpush.msra.mxu0 %v904
  %1130 = vmatpush.msra.mxu0 %v900
  %1131 = vmatpush.msra.mxu0 %v896
  %1132 = vmatpush.msra.mxu0 %v892
  %1133 = vmatpush.msra.mxu0 %v888
  %1134 = vmatpush.msra.mxu0 %v884
  %1135 = vmatpush.msra.mxu0 %v880
  %1136 = vmatpush.msra.mxu0 %v876
  %1137 = vmatpush.msra.mxu0 %v872
  %1138 = vmatpush.msra.mxu0 %v868
  %1139 = vmatpush.msra.mxu0 %v864
  %1140 = vmatmul.f32.gmra.mxu0 0.0
  %v1141 = vpop.f32.mrf.mxu0
  %v1142 = vadd.f32 0.0, %v1141
  %1143 = vdwg.mxu0
  %v1144 = vadd.f32 %v1060, %v1082
  %v1145 = vadd.f32 %v1061, %v1102
  %v1146 = vadd.f32 %v1062, %v1122
  %v1147 = vadd.f32 %v1063, %v1142
  %v1148 = vxor.u32 %v1144, 2147483648
  %v1149 = vmul.f32 %v1148, 1.442695
  %v1150 = vpow.pop %v1149
  %v1151 = vadd.f32 %v1150, 1.0
  %v1152 = vrcp.pop %v1151
  %v1153 = vmul.f32 %v1151, %v1152
  %v1154 = vsub.f32 1.0, %v1153
  %v1155 = vmul.f32 %v1152, %v1154
  %v1156 = vadd.f32 %v1152, %v1155
  %vm1157 = vweird.f32 %v1151
  %vm1158 = vweird.f32 %v1152
  %vm1159 = vmor %vm1157, %vm1158
  %v1160 = vsel %vm1159, %v1152, %v1156
  %v1161 = vand.u32 2147483647, %v1151
  %vm1162 = vcmp.eq.f32.partialorder %v1161, 8.507059e+37
  %v1163 = vand.u32 %v1151, 2147483648
  %v1164 = vor.u32 1.1754944e-38, %v1163
  %v1165 = vsel %vm1162, %v1164, %v1160
  %v1166 = vmul.f32 1.0, %v1165
  %v1167 = vxor.u32 %v1145, 2147483648
  %v1168 = vmul.f32 %v1167, 1.442695
  %v1169 = vpow.pop %v1168
  %v1170 = vadd.f32 %v1169, 1.0
  %v1171 = vrcp.pop %v1170
  %v1172 = vmul.f32 %v1170, %v1171
  %v1173 = vsub.f32 1.0, %v1172
  %v1174 = vmul.f32 %v1171, %v1173
  %v1175 = vadd.f32 %v1171, %v1174
  %vm1176 = vweird.f32 %v1170
  %vm1177 = vweird.f32 %v1171
  %vm1178 = vmor %vm1176, %vm1177
  %v1179 = vsel %vm1178, %v1171, %v1175
  %v1180 = vand.u32 2147483647, %v1170
  %vm1181 = vcmp.eq.f32.partialorder %v1180, 8.507059e+37
  %v1182 = vand.u32 %v1170, 2147483648
  %v1183 = vor.u32 1.1754944e-38, %v1182
  %v1184 = vsel %vm1181, %v1183, %v1179
  %v1185 = vmul.f32 1.0, %v1184
  %v1186 = vtanh.pop %v1146
  %v1187 = vxor.u32 %v1147, 2147483648
  %v1188 = vmul.f32 %v1187, 1.442695
  %v1189 = vpow.pop %v1188
  %v1190 = vadd.f32 %v1189, 1.0
  %v1191 = vrcp.pop %v1190
  %v1192 = vmul.f32 %v1190, %v1191
  %v1193 = vsub.f32 1.0, %v1192
  %v1194 = vmul.f32 %v1191, %v1193
  %v1195 = vadd.f32 %v1191, %v1194
  %vm1196 = vweird.f32 %v1190
  %vm1197 = vweird.f32 %v1191
  %vm1198 = vmor %vm1196, %vm1197
  %v1199 = vsel %vm1198, %v1191, %v1195
  %v1200 = vand.u32 2147483647, %v1190
  %vm1201 = vcmp.eq.f32.partialorder %v1200, 8.507059e+37
  %v1202 = vand.u32 %v1190, 2147483648
  %v1203 = vor.u32 1.1754944e-38, %v1202
  %v1204 = vsel %vm1201, %v1203, %v1199
  %v1205 = vmul.f32 1.0, %v1204
  %v1206 = vmul.f32 %v1185, 0.0
  %v1207 = vmul.f32 %v1166, %v1186
  %v1208 = vadd.f32 %v1206, %v1207
  %v1209 = vtanh.pop %v1208
  %v1210 = vmul.f32 %v1205, %v1209
  %1211 = vmatpush.msra.mxu0 %v985
  %1212 = vmatpush.msra.mxu0 %v981
  %1213 = vmatpush.msra.mxu0 %v977
  %1214 = vmatpush.msra.mxu0 %v973
  %1215 = vmatpush.msra.mxu0 %v969
  %1216 = vmatpush.msra.mxu0 %v965
  %1217 = vmatpush.msra.mxu0 %v961
  %1218 = vmatpush.msra.mxu0 %v957
  %1219 = vmatpush.msra.mxu0 %v953
  %1220 = vmatpush.msra.mxu0 %v949
  %1221 = vmatpush.msra.mxu0 %v945
  %1222 = vmatpush.msra.mxu0 %v941
  %1223 = vmatpush.msra.mxu0 %v937
  %1224 = vmatpush.msra.mxu0 %v933
  %1225 = vmatpush.msra.mxu0 %v929
  %1226 = vmatpush.msra.mxu0 %v925
  %1227 = vmatmul.f32.gmra.mxu0 %v1210
  %v1228 = vpop.f32.mrf.mxu0
  %v1229 = vadd.f32 0.0, %v1228
  %1230 = vdwg.mxu0
  %1231 = vmatpush.msra.mxu0 %v1049
  %1232 = vmatpush.msra.mxu0 %v1045
  %1233 = vmatpush.msra.mxu0 %v1041
  %1234 = vmatpush.msra.mxu0 %v1037
  %1235 = vmatpush.msra.mxu0 %v1033
  %1236 = vmatpush.msra.mxu0 %v1029
  %1237 = vmatpush.msra.mxu0 %v1025
  %1238 = vmatpush.msra.mxu0 %v1021
  %1239 = vmatpush.msra.mxu0 %v1017
  %1240 = vmatpush.msra.mxu0 %v1013
  %1241 = vmatpush.msra.mxu0 %v1009
  %1242 = vmatpush.msra.mxu0 %v1005
  %1243 = vmatpush.msra.mxu0 %v1001
  %1244 = vmatpush.msra.mxu0 %v997
  %1245 = vmatpush.msra.mxu0 %v993
  %1246 = vmatpush.msra.mxu0 %v989
  %1247 = vmatmul.f32.gmra.mxu0 0.0
  %v1248 = vpop.f32.mrf.mxu0
  %v1249 = vadd.f32 %v1229, %v1248
  %1250 = vdwg.mxu0
  %1251 = vmatpush.msra.mxu0 %v986
  %1252 = vmatpush.msra.mxu0 %v982
  %1253 = vmatpush.msra.mxu0 %v978
  %1254 = vmatpush.msra.mxu0 %v974
  %1255 = vmatpush.msra.mxu0 %v970
  %1256 = vmatpush.msra.mxu0 %v966
  %1257 = vmatpush.msra.mxu0 %v962
  %1258 = vmatpush.msra.mxu0 %v958
  %1259 = vmatpush.msra.mxu0 %v954
  %1260 = vmatpush.msra.mxu0 %v950
  %1261 = vmatpush.msra.mxu0 %v946
  %1262 = vmatpush.msra.mxu0 %v942
  %1263 = vmatpush.msra.mxu0 %v938
  %1264 = vmatpush.msra.mxu0 %v934
  %1265 = vmatpush.msra.mxu0 %v930
  %1266 = vmatpush.msra.mxu0 %v926
  %1267 = vmatmul.f32.gmra.mxu0 %v1210
  %v1268 = vpop.f32.mrf.mxu0
  %v1269 = vadd.f32 0.0, %v1268
  %1270 = vdwg.mxu0
  %1271 = vmatpush.msra.mxu0 %v1050
  %1272 = vmatpush.msra.mxu0 %v1046
  %1273 = vmatpush.msra.mxu0 %v1042
  %1274 = vmatpush.msra.mxu0 %v1038
  %1275 = vmatpush.msra.mxu0 %v1034
  %1276 = vmatpush.msra.mxu0 %v1030
  %1277 = vmatpush.msra.mxu0 %v1026
  %1278 = vmatpush.msra.mxu0 %v1022
  %1279 = vmatpush.msra.mxu0 %v1018
  %1280 = vmatpush.msra.mxu0 %v1014
  %1281 = vmatpush.msra.mxu0 %v1010
  %1282 = vmatpush.msra.mxu0 %v1006
  %1283 = vmatpush.msra.mxu0 %v1002
  %1284 = vmatpush.msra.mxu0 %v998
  %1285 = vmatpush.msra.mxu0 %v994
  %1286 = vmatpush.msra.mxu0 %v990
  %1287 = vmatmul.f32.gmra.mxu0 0.0
  %v1288 = vpop.f32.mrf.mxu0
  %v1289 = vadd.f32 %v1269, %v1288
  %1290 = vdwg.mxu0
  %1291 = vmatpush.msra.mxu0 %v987
  %1292 = vmatpush.msra.mxu0 %v983
  %1293 = vmatpush.msra.mxu0 %v979
  %1294 = vmatpush.msra.mxu0 %v975
  %1295 = vmatpush.msra.mxu0 %v971
  %1296 = vmatpush.msra.mxu0 %v967
  %1297 = vmatpush.msra.mxu0 %v963
  %1298 = vmatpush.msra.mxu0 %v959
  %1299 = vmatpush.msra.mxu0 %v955
  %1300 = vmatpush.msra.mxu0 %v951
  %1301 = vmatpush.msra.mxu0 %v947
  %1302 = vmatpush.msra.mxu0 %v943
  %1303 = vmatpush.msra.mxu0 %v939
  %1304 = vmatpush.msra.mxu0 %v935
  %1305 = vmatpush.msra.mxu0 %v931
  %1306 = vmatpush.msra.mxu0 %v927
  %1307 = vmatmul.f32.gmra.mxu0 %v1210
  %v1308 = vpop.f32.mrf.mxu0
  %v1309 = vadd.f32 0.0, %v1308
  %1310 = vdwg.mxu0
  %1311 = vmatpush.msra.mxu0 %v1051
  %1312 = vmatpush.msra.mxu0 %v1047
  %1313 = vmatpush.msra.mxu0 %v1043
  %1314 = vmatpush.msra.mxu0 %v1039
  %1315 = vmatpush.msra.mxu0 %v1035
  %1316 = vmatpush.msra.mxu0 %v1031
  %1317 = vmatpush.msra.mxu0 %v1027
  %1318 = vmatpush.msra.mxu0 %v1023
  %1319 = vmatpush.msra.mxu0 %v1019
  %1320 = vmatpush.msra.mxu0 %v1015
  %1321 = vmatpush.msra.mxu0 %v1011
  %1322 = vmatpush.msra.mxu0 %v1007
  %1323 = vmatpush.msra.mxu0 %v1003
  %1324 = vmatpush.msra.mxu0 %v999
  %1325 = vmatpush.msra.mxu0 %v995
  %1326 = vmatpush.msra.mxu0 %v991
  %1327 = vmatmul.f32.gmra.mxu0 0.0
  %v1328 = vpop.f32.mrf.mxu0
  %v1329 = vadd.f32 %v1309, %v1328
  %1330 = vdwg.mxu0
  %1331 = vmatpush.msra.mxu0 %v988
  %1332 = vmatpush.msra.mxu0 %v984
  %1333 = vmatpush.msra.mxu0 %v980
  %1334 = vmatpush.msra.mxu0 %v976
  %1335 = vmatpush.msra.mxu0 %v972
  %1336 = vmatpush.msra.mxu0 %v968
  %1337 = vmatpush.msra.mxu0 %v964
  %1338 = vmatpush.msra.mxu0 %v960
  %1339 = vmatpush.msra.mxu0 %v956
  %1340 = vmatpush.msra.mxu0 %v952
  %1341 = vmatpush.msra.mxu0 %v948
  %1342 = vmatpush.msra.mxu0 %v944
  %1343 = vmatpush.msra.mxu0 %v940
  %1344 = vmatpush.msra.mxu0 %v936
  %1345 = vmatpush.msra.mxu0 %v932
  %1346 = vmatpush.msra.mxu0 %v928
  %1347 = vmatmul.f32.gmra.mxu0 %v1210
  %v1348 = vpop.f32.mrf.mxu0
  %v1349 = vadd.f32 0.0, %v1348
  %1350 = vdwg.mxu0
  %1351 = vmatpush.msra.mxu0 %v1052
  %1352 = vmatpush.msra.mxu0 %v1048
  %1353 = vmatpush.msra.mxu0 %v1044
  %1354 = vmatpush.msra.mxu0 %v1040
  %1355 = vmatpush.msra.mxu0 %v1036
  %1356 = vmatpush.msra.mxu0 %v1032
  %1357 = vmatpush.msra.mxu0 %v1028
  %1358 = vmatpush.msra.mxu0 %v1024
  %1359 = vmatpush.msra.mxu0 %v1020
  %1360 = vmatpush.msra.mxu0 %v1016
  %1361 = vmatpush.msra.mxu0 %v1012
  %1362 = vmatpush.msra.mxu0 %v1008
  %1363 = vmatpush.msra.mxu0 %v1004
  %1364 = vmatpush.msra.mxu0 %v1000
  %1365 = vmatpush.msra.mxu0 %v996
  %1366 = vmatpush.msra.mxu0 %v992
  %1367 = vmatmul.f32.gmra.mxu0 0.0
  %v1368 = vpop.f32.mrf.mxu0
  %v1369 = vadd.f32 %v1349, %v1368
  %1370 = vdwg.mxu0
  %v1371 = vadd.f32 %v1053, %v1249
  %v1372 = vadd.f32 %v1054, %v1289
  %v1373 = vadd.f32 %v1055, %v1329
  %v1374 = vadd.f32 %v1056, %v1369
  %v1375 = vxor.u32 %v1371, 2147483648
  %v1376 = vmul.f32 %v1375, 1.442695
  %v1377 = vpow.pop %v1376
  %v1378 = vadd.f32 %v1377, 1.0
  %v1379 = vrcp.pop %v1378
  %v1380 = vmul.f32 %v1378, %v1379
  %v1381 = vsub.f32 1.0, %v1380
  %v1382 = vmul.f32 %v1379, %v1381
  %v1383 = vadd.f32 %v1379, %v1382
  %vm1384 = vweird.f32 %v1378
  %vm1385 = vweird.f32 %v1379
  %vm1386 = vmor %vm1384, %vm1385
  %v1387 = vsel %vm1386, %v1379, %v1383
  %v1388 = vand.u32 2147483647, %v1378
  %vm1389 = vcmp.eq.f32.partialorder %v1388, 8.507059e+37
  %v1390 = vand.u32 %v1378, 2147483648
  %v1391 = vor.u32 1.1754944e-38, %v1390
  %v1392 = vsel %vm1389, %v1391, %v1387
  %v1393 = vmul.f32 1.0, %v1392
  %v1394 = vxor.u32 %v1372, 2147483648
  %v1395 = vmul.f32 %v1394, 1.442695
  %v1396 = vpow.pop %v1395
  %v1397 = vadd.f32 %v1396, 1.0
  %v1398 = vrcp.pop %v1397
  %v1399 = vmul.f32 %v1397, %v1398
  %v1400 = vsub.f32 1.0, %v1399
  %v1401 = vmul.f32 %v1398, %v1400
  %v1402 = vadd.f32 %v1398, %v1401
  %vm1403 = vweird.f32 %v1397
  %vm1404 = vweird.f32 %v1398
  %vm1405 = vmor %vm1403, %vm1404
  %v1406 = vsel %vm1405, %v1398, %v1402
  %v1407 = vand.u32 2147483647, %v1397
  %vm1408 = vcmp.eq.f32.partialorder %v1407, 8.507059e+37
  %v1409 = vand.u32 %v1397, 2147483648
  %v1410 = vor.u32 1.1754944e-38, %v1409
  %v1411 = vsel %vm1408, %v1410, %v1406
  %v1412 = vmul.f32 1.0, %v1411
  %v1413 = vtanh.pop %v1373
  %v1414 = vxor.u32 %v1374, 2147483648
  %v1415 = vmul.f32 %v1414, 1.442695
  %v1416 = vpow.pop %v1415
  %v1417 = vadd.f32 %v1416, 1.0
  %v1418 = vrcp.pop %v1417
  %v1419 = vmul.f32 %v1417, %v1418
  %v1420 = vsub.f32 1.0, %v1419
  %v1421 = vmul.f32 %v1418, %v1420
  %v1422 = vadd.f32 %v1418, %v1421
  %vm1423 = vweird.f32 %v1417
  %vm1424 = vweird.f32 %v1418
  %vm1425 = vmor %vm1423, %vm1424
  %v1426 = vsel %vm1425, %v1418, %v1422
  %v1427 = vand.u32 2147483647, %v1417
  %vm1428 = vcmp.eq.f32.partialorder %v1427, 8.507059e+37
  %v1429 = vand.u32 %v1417, 2147483648
  %v1430 = vor.u32 1.1754944e-38, %v1429
  %v1431 = vsel %vm1428, %v1430, %v1426
  %v1432 = vmul.f32 1.0, %v1431
  %v1433 = vmul.f32 %v1412, 0.0
  %v1434 = vmul.f32 %v1393, %v1413
  %v1435 = vadd.f32 %v1433, %v1434
  %v1436 = vtanh.pop %v1435
  %v1437 = vmul.f32 %v1432, %v1436
  %s1438 = smul.u32 1, 4
  %s1439 = smul.addr %s1438, 8
  %s1440 = scalar_lea.vmem [#allocation2], %s1439
  %v1441 = vld [vmem:[%s1440] sm:$0xff]
  %v1442 = vld [vmem:[%s1440 + $0x8] sm:$0xff]
  %v1443 = vld [vmem:[%s1440 + $0x10] sm:$0xff]
  %v1444 = vld [vmem:[%s1440 + $0x18] sm:$0xff]
  %1445 = vmatpush.msra.mxu0 %v921
  %1446 = vmatpush.msra.mxu0 %v917
  %1447 = vmatpush.msra.mxu0 %v913
  %1448 = vmatpush.msra.mxu0 %v909
  %1449 = vmatpush.msra.mxu0 %v905
  %1450 = vmatpush.msra.mxu0 %v901
  %1451 = vmatpush.msra.mxu0 %v897
  %1452 = vmatpush.msra.mxu0 %v893
  %1453 = vmatpush.msra.mxu0 %v889
  %1454 = vmatpush.msra.mxu0 %v885
  %1455 = vmatpush.msra.mxu0 %v881
  %1456 = vmatpush.msra.mxu0 %v877
  %1457 = vmatpush.msra.mxu0 %v873
  %1458 = vmatpush.msra.mxu0 %v869
  %1459 = vmatpush.msra.mxu0 %v865
  %1460 = vmatpush.msra.mxu0 %v861
  %1461 = vmatmul.f32.gmra.mxu0 %v1210
  %v1462 = vpop.f32.mrf.mxu0
  %v1463 = vadd.f32 0.0, %v1462
  %1464 = vdwg.mxu0
  %1465 = vmatpush.msra.mxu0 %v922
  %1466 = vmatpush.msra.mxu0 %v918
  %1467 = vmatpush.msra.mxu0 %v914
  %1468 = vmatpush.msra.mxu0 %v910
  %1469 = vmatpush.msra.mxu0 %v906
  %1470 = vmatpush.msra.mxu0 %v902
  %1471 = vmatpush.msra.mxu0 %v898
  %1472 = vmatpush.msra.mxu0 %v894
  %1473 = vmatpush.msra.mxu0 %v890
  %1474 = vmatpush.msra.mxu0 %v886
  %1475 = vmatpush.msra.mxu0 %v882
  %1476 = vmatpush.msra.mxu0 %v878
  %1477 = vmatpush.msra.mxu0 %v874
  %1478 = vmatpush.msra.mxu0 %v870
  %1479 = vmatpush.msra.mxu0 %v866
  %1480 = vmatpush.msra.mxu0 %v862
  %1481 = vmatmul.f32.gmra.mxu0 %v1210
  %v1482 = vpop.f32.mrf.mxu0
  %v1483 = vadd.f32 0.0, %v1482
  %1484 = vdwg.mxu0
  %1485 = vmatpush.msra.mxu0 %v923
  %1486 = vmatpush.msra.mxu0 %v919
  %1487 = vmatpush.msra.mxu0 %v915
  %1488 = vmatpush.msra.mxu0 %v911
  %1489 = vmatpush.msra.mxu0 %v907
  %1490 = vmatpush.msra.mxu0 %v903
  %1491 = vmatpush.msra.mxu0 %v899
  %1492 = vmatpush.msra.mxu0 %v895
  %1493 = vmatpush.msra.mxu0 %v891
  %1494 = vmatpush.msra.mxu0 %v887
  %1495 = vmatpush.msra.mxu0 %v883
  %1496 = vmatpush.msra.mxu0 %v879
  %1497 = vmatpush.msra.mxu0 %v875
  %1498 = vmatpush.msra.mxu0 %v871
  %1499 = vmatpush.msra.mxu0 %v867
  %1500 = vmatpush.msra.mxu0 %v863
  %1501 = vmatmul.f32.gmra.mxu0 %v1210
  %v1502 = vpop.f32.mrf.mxu0
  %v1503 = vadd.f32 0.0, %v1502
  %1504 = vdwg.mxu0
  %1505 = vmatpush.msra.mxu0 %v924
  %1506 = vmatpush.msra.mxu0 %v920
  %1507 = vmatpush.msra.mxu0 %v916
  %1508 = vmatpush.msra.mxu0 %v912
  %1509 = vmatpush.msra.mxu0 %v908
  %1510 = vmatpush.msra.mxu0 %v904
  %1511 = vmatpush.msra.mxu0 %v900
  %1512 = vmatpush.msra.mxu0 %v896
  %1513 = vmatpush.msra.mxu0 %v892
  %1514 = vmatpush.msra.mxu0 %v888
  %1515 = vmatpush.msra.mxu0 %v884
  %1516 = vmatpush.msra.mxu0 %v880
  %1517 = vmatpush.msra.mxu0 %v876
  %1518 = vmatpush.msra.mxu0 %v872
  %1519 = vmatpush.msra.mxu0 %v868
  %1520 = vmatpush.msra.mxu0 %v864
  %1521 = vmatmul.f32.gmra.mxu0 %v1210
  %v1522 = vpop.f32.mrf.mxu0
  %v1523 = vadd.f32 0.0, %v1522
  %1524 = vdwg.mxu0
  %v1525 = vadd.f32 %v1441, %v1463
  %v1526 = vadd.f32 %v1442, %v1483
  %v1527 = vadd.f32 %v1443, %v1503
  %v1528 = vadd.f32 %v1444, %v1523
  %v1529 = vxor.u32 %v1525, 2147483648
  %v1530 = vmul.f32 %v1529, 1.442695
  %v1531 = vpow.pop %v1530
  %v1532 = vadd.f32 %v1531, 1.0
  %v1533 = vrcp.pop %v1532
  %v1534 = vmul.f32 %v1532, %v1533
  %v1535 = vsub.f32 1.0, %v1534
  %v1536 = vmul.f32 %v1533, %v1535
  %v1537 = vadd.f32 %v1533, %v1536
  %vm1538 = vweird.f32 %v1532
  %vm1539 = vweird.f32 %v1533
  %vm1540 = vmor %vm1538, %vm1539
  %v1541 = vsel %vm1540, %v1533, %v1537
  %v1542 = vand.u32 2147483647, %v1532
  %vm1543 = vcmp.eq.f32.partialorder %v1542, 8.507059e+37
  %v1544 = vand.u32 %v1532, 2147483648
  %v1545 = vor.u32 1.1754944e-38, %v1544
  %v1546 = vsel %vm1543, %v1545, %v1541
  %v1547 = vmul.f32 1.0, %v1546
  %v1548 = vxor.u32 %v1526, 2147483648
  %v1549 = vmul.f32 %v1548, 1.442695
  %v1550 = vpow.pop %v1549
  %v1551 = vadd.f32 %v1550, 1.0
  %v1552 = vrcp.pop %v1551
  %v1553 = vmul.f32 %v1551, %v1552
  %v1554 = vsub.f32 1.0, %v1553
  %v1555 = vmul.f32 %v1552, %v1554
  %v1556 = vadd.f32 %v1552, %v1555
  %vm1557 = vweird.f32 %v1551
  %vm1558 = vweird.f32 %v1552
  %vm1559 = vmor %vm1557, %vm1558
  %v1560 = vsel %vm1559, %v1552, %v1556
  %v1561 = vand.u32 2147483647, %v1551
  %vm1562 = vcmp.eq.f32.partialorder %v1561, 8.507059e+37
  %v1563 = vand.u32 %v1551, 2147483648
  %v1564 = vor.u32 1.1754944e-38, %v1563
  %v1565 = vsel %vm1562, %v1564, %v1560
  %v1566 = vmul.f32 1.0, %v1565
  %v1567 = vtanh.pop %v1527
  %v1568 = vxor.u32 %v1528, 2147483648
  %v1569 = vmul.f32 %v1568, 1.442695
  %v1570 = vpow.pop %v1569
  %v1571 = vadd.f32 %v1570, 1.0
  %v1572 = vrcp.pop %v1571
  %v1573 = vmul.f32 %v1571, %v1572
  %v1574 = vsub.f32 1.0, %v1573
  %v1575 = vmul.f32 %v1572, %v1574
  %v1576 = vadd.f32 %v1572, %v1575
  %vm1577 = vweird.f32 %v1571
  %vm1578 = vweird.f32 %v1572
  %vm1579 = vmor %vm1577, %vm1578
  %v1580 = vsel %vm1579, %v1572, %v1576
  %v1581 = vand.u32 2147483647, %v1571
  %vm1582 = vcmp.eq.f32.partialorder %v1581, 8.507059e+37
  %v1583 = vand.u32 %v1571, 2147483648
  %v1584 = vor.u32 1.1754944e-38, %v1583
  %v1585 = vsel %vm1582, %v1584, %v1580
  %v1586 = vmul.f32 1.0, %v1585
  %v1587 = vmul.f32 %v1566, %v1208
  %v1588 = vmul.f32 %v1547, %v1567
  %v1589 = vadd.f32 %v1587, %v1588
  %v1590 = vtanh.pop %v1589
  %v1591 = vmul.f32 %v1586, %v1590
  %1592 = vmatpush.msra.mxu0 %v985
  %1593 = vmatpush.msra.mxu0 %v981
  %1594 = vmatpush.msra.mxu0 %v977
  %1595 = vmatpush.msra.mxu0 %v973
  %1596 = vmatpush.msra.mxu0 %v969
  %1597 = vmatpush.msra.mxu0 %v965
  %1598 = vmatpush.msra.mxu0 %v961
  %1599 = vmatpush.msra.mxu0 %v957
  %1600 = vmatpush.msra.mxu0 %v953
  %1601 = vmatpush.msra.mxu0 %v949
  %1602 = vmatpush.msra.mxu0 %v945
  %1603 = vmatpush.msra.mxu0 %v941
  %1604 = vmatpush.msra.mxu0 %v937
  %1605 = vmatpush.msra.mxu0 %v933
  %1606 = vmatpush.msra.mxu0 %v929
  %1607 = vmatpush.msra.mxu0 %v925
  %1608 = vmatmul.f32.gmra.mxu0 %v1591
  %v1609 = vpop.f32.mrf.mxu0
  %v1610 = vadd.f32 0.0, %v1609
  %1611 = vdwg.mxu0
  %1612 = vmatpush.msra.mxu0 %v1049
  %1613 = vmatpush.msra.mxu0 %v1045
  %1614 = vmatpush.msra.mxu0 %v1041
  %1615 = vmatpush.msra.mxu0 %v1037
  %1616 = vmatpush.msra.mxu0 %v1033
  %1617 = vmatpush.msra.mxu0 %v1029
  %1618 = vmatpush.msra.mxu0 %v1025
  %1619 = vmatpush.msra.mxu0 %v1021
  %1620 = vmatpush.msra.mxu0 %v1017
  %1621 = vmatpush.msra.mxu0 %v1013
  %1622 = vmatpush.msra.mxu0 %v1009
  %1623 = vmatpush.msra.mxu0 %v1005
  %1624 = vmatpush.msra.mxu0 %v1001
  %1625 = vmatpush.msra.mxu0 %v997
  %1626 = vmatpush.msra.mxu0 %v993
  %1627 = vmatpush.msra.mxu0 %v989
  %1628 = vmatmul.f32.gmra.mxu0 %v1437
  %v1629 = vpop.f32.mrf.mxu0
  %v1630 = vadd.f32 %v1610, %v1629
  %1631 = vdwg.mxu0
  %1632 = vmatpush.msra.mxu0 %v986
  %1633 = vmatpush.msra.mxu0 %v982
  %1634 = vmatpush.msra.mxu0 %v978
  %1635 = vmatpush.msra.mxu0 %v974
  %1636 = vmatpush.msra.mxu0 %v970
  %1637 = vmatpush.msra.mxu0 %v966
  %1638 = vmatpush.msra.mxu0 %v962
  %1639 = vmatpush.msra.mxu0 %v958
  %1640 = vmatpush.msra.mxu0 %v954
  %1641 = vmatpush.msra.mxu0 %v950
  %1642 = vmatpush.msra.mxu0 %v946
  %1643 = vmatpush.msra.mxu0 %v942
  %1644 = vmatpush.msra.mxu0 %v938
  %1645 = vmatpush.msra.mxu0 %v934
  %1646 = vmatpush.msra.mxu0 %v930
  %1647 = vmatpush.msra.mxu0 %v926
  %1648 = vmatmul.f32.gmra.mxu0 %v1591
  %v1649 = vpop.f32.mrf.mxu0
  %v1650 = vadd.f32 0.0, %v1649
  %1651 = vdwg.mxu0
  %1652 = vmatpush.msra.mxu0 %v1050
  %1653 = vmatpush.msra.mxu0 %v1046
  %1654 = vmatpush.msra.mxu0 %v1042
  %1655 = vmatpush.msra.mxu0 %v1038
  %1656 = vmatpush.msra.mxu0 %v1034
  %1657 = vmatpush.msra.mxu0 %v1030
  %1658 = vmatpush.msra.mxu0 %v1026
  %1659 = vmatpush.msra.mxu0 %v1022
  %1660 = vmatpush.msra.mxu0 %v1018
  %1661 = vmatpush.msra.mxu0 %v1014
  %1662 = vmatpush.msra.mxu0 %v1010
  %1663 = vmatpush.msra.mxu0 %v1006
  %1664 = vmatpush.msra.mxu0 %v1002
  %1665 = vmatpush.msra.mxu0 %v998
  %1666 = vmatpush.msra.mxu0 %v994
  %1667 = vmatpush.msra.mxu0 %v990
  %1668 = vmatmul.f32.gmra.mxu0 %v1437
  %v1669 = vpop.f32.mrf.mxu0
  %v1670 = vadd.f32 %v1650, %v1669
  %1671 = vdwg.mxu0
  %1672 = vmatpush.msra.mxu0 %v987
  %1673 = vmatpush.msra.mxu0 %v983
  %1674 = vmatpush.msra.mxu0 %v979
  %1675 = vmatpush.msra.mxu0 %v975
  %1676 = vmatpush.msra.mxu0 %v971
  %1677 = vmatpush.msra.mxu0 %v967
  %1678 = vmatpush.msra.mxu0 %v963
  %1679 = vmatpush.msra.mxu0 %v959
  %1680 = vmatpush.msra.mxu0 %v955
  %1681 = vmatpush.msra.mxu0 %v951
  %1682 = vmatpush.msra.mxu0 %v947
  %1683 = vmatpush.msra.mxu0 %v943
  %1684 = vmatpush.msra.mxu0 %v939
  %1685 = vmatpush.msra.mxu0 %v935
  %1686 = vmatpush.msra.mxu0 %v931
  %1687 = vmatpush.msra.mxu0 %v927
  %1688 = vmatmul.f32.gmra.mxu0 %v1591
  %v1689 = vpop.f32.mrf.mxu0
  %v1690 = vadd.f32 0.0, %v1689
  %1691 = vdwg.mxu0
  %1692 = vmatpush.msra.mxu0 %v1051
  %1693 = vmatpush.msra.mxu0 %v1047
  %1694 = vmatpush.msra.mxu0 %v1043
  %1695 = vmatpush.msra.mxu0 %v1039
  %1696 = vmatpush.msra.mxu0 %v1035
  %1697 = vmatpush.msra.mxu0 %v1031
  %1698 = vmatpush.msra.mxu0 %v1027
  %1699 = vmatpush.msra.mxu0 %v1023
  %1700 = vmatpush.msra.mxu0 %v1019
  %1701 = vmatpush.msra.mxu0 %v1015
  %1702 = vmatpush.msra.mxu0 %v1011
  %1703 = vmatpush.msra.mxu0 %v1007
  %1704 = vmatpush.msra.mxu0 %v1003
  %1705 = vmatpush.msra.mxu0 %v999
  %1706 = vmatpush.msra.mxu0 %v995
  %1707 = vmatpush.msra.mxu0 %v991
  %1708 = vmatmul.f32.gmra.mxu0 %v1437
  %v1709 = vpop.f32.mrf.mxu0
  %v1710 = vadd.f32 %v1690, %v1709
  %1711 = vdwg.mxu0
  %1712 = vmatpush.msra.mxu0 %v988
  %1713 = vmatpush.msra.mxu0 %v984
  %1714 = vmatpush.msra.mxu0 %v980
  %1715 = vmatpush.msra.mxu0 %v976
  %1716 = vmatpush.msra.mxu0 %v972
  %1717 = vmatpush.msra.mxu0 %v968
  %1718 = vmatpush.msra.mxu0 %v964
  %1719 = vmatpush.msra.mxu0 %v960
  %1720 = vmatpush.msra.mxu0 %v956
  %1721 = vmatpush.msra.mxu0 %v952
  %1722 = vmatpush.msra.mxu0 %v948
  %1723 = vmatpush.msra.mxu0 %v944
  %1724 = vmatpush.msra.mxu0 %v940
  %1725 = vmatpush.msra.mxu0 %v936
  %1726 = vmatpush.msra.mxu0 %v932
  %1727 = vmatpush.msra.mxu0 %v928
  %1728 = vmatmul.f32.gmra.mxu0 %v1591
  %v1729 = vpop.f32.mrf.mxu0
  %v1730 = vadd.f32 0.0, %v1729
  %1731 = vdwg.mxu0
  %1732 = vmatpush.msra.mxu0 %v1052
  %1733 = vmatpush.msra.mxu0 %v1048
  %1734 = vmatpush.msra.mxu0 %v1044
  %1735 = vmatpush.msra.mxu0 %v1040
  %1736 = vmatpush.msra.mxu0 %v1036
  %1737 = vmatpush.msra.mxu0 %v1032
  %1738 = vmatpush.msra.mxu0 %v1028
  %1739 = vmatpush.msra.mxu0 %v1024
  %1740 = vmatpush.msra.mxu0 %v1020
  %1741 = vmatpush.msra.mxu0 %v1016
  %1742 = vmatpush.msra.mxu0 %v1012
  %1743 = vmatpush.msra.mxu0 %v1008
  %1744 = vmatpush.msra.mxu0 %v1004
  %1745 = vmatpush.msra.mxu0 %v1000
  %1746 = vmatpush.msra.mxu0 %v996
  %1747 = vmatpush.msra.mxu0 %v992
  %1748 = vmatmul.f32.gmra.mxu0 %v1437
  %v1749 = vpop.f32.mrf.mxu0
  %v1750 = vadd.f32 %v1730, %v1749
  %1751 = vdwg.mxu0
  %v1752 = vadd.f32 %v1053, %v1630
  %v1753 = vadd.f32 %v1054, %v1670
  %v1754 = vadd.f32 %v1055, %v1710
  %v1755 = vadd.f32 %v1056, %v1750
  %v1756 = vxor.u32 %v1752, 2147483648
  %v1757 = vmul.f32 %v1756, 1.442695
  %v1758 = vpow.pop %v1757
  %v1759 = vadd.f32 %v1758, 1.0
  %v1760 = vrcp.pop %v1759
  %v1761 = vmul.f32 %v1759, %v1760
  %v1762 = vsub.f32 1.0, %v1761
  %v1763 = vmul.f32 %v1760, %v1762
  %v1764 = vadd.f32 %v1760, %v1763
  %vm1765 = vweird.f32 %v1759
  %vm1766 = vweird.f32 %v1760
  %vm1767 = vmor %vm1765, %vm1766
  %v1768 = vsel %vm1767, %v1760, %v1764
  %v1769 = vand.u32 2147483647, %v1759
  %vm1770 = vcmp.eq.f32.partialorder %v1769, 8.507059e+37
  %v1771 = vand.u32 %v1759, 2147483648
  %v1772 = vor.u32 1.1754944e-38, %v1771
  %v1773 = vsel %vm1770, %v1772, %v1768
  %v1774 = vmul.f32 1.0, %v1773
  %v1775 = vxor.u32 %v1753, 2147483648
  %v1776 = vmul.f32 %v1775, 1.442695
  %v1777 = vpow.pop %v1776
  %v1778 = vadd.f32 %v1777, 1.0
  %v1779 = vrcp.pop %v1778
  %v1780 = vmul.f32 %v1778, %v1779
  %v1781 = vsub.f32 1.0, %v1780
  %v1782 = vmul.f32 %v1779, %v1781
  %v1783 = vadd.f32 %v1779, %v1782
  %vm1784 = vweird.f32 %v1778
  %vm1785 = vweird.f32 %v1779
  %vm1786 = vmor %vm1784, %vm1785
  %v1787 = vsel %vm1786, %v1779, %v1783
  %v1788 = vand.u32 2147483647, %v1778
  %vm1789 = vcmp.eq.f32.partialorder %v1788, 8.507059e+37
  %v1790 = vand.u32 %v1778, 2147483648
  %v1791 = vor.u32 1.1754944e-38, %v1790
  %v1792 = vsel %vm1789, %v1791, %v1787
  %v1793 = vmul.f32 1.0, %v1792
  %v1794 = vtanh.pop %v1754
  %v1795 = vxor.u32 %v1755, 2147483648
  %v1796 = vmul.f32 %v1795, 1.442695
  %v1797 = vpow.pop %v1796
  %v1798 = vadd.f32 %v1797, 1.0
  %v1799 = vrcp.pop %v1798
  %v1800 = vmul.f32 %v1798, %v1799
  %v1801 = vsub.f32 1.0, %v1800
  %v1802 = vmul.f32 %v1799, %v1801
  %v1803 = vadd.f32 %v1799, %v1802
  %vm1804 = vweird.f32 %v1798
  %vm1805 = vweird.f32 %v1799
  %vm1806 = vmor %vm1804, %vm1805
  %v1807 = vsel %vm1806, %v1799, %v1803
  %v1808 = vand.u32 2147483647, %v1798
  %vm1809 = vcmp.eq.f32.partialorder %v1808, 8.507059e+37
  %v1810 = vand.u32 %v1798, 2147483648
  %v1811 = vor.u32 1.1754944e-38, %v1810
  %v1812 = vsel %vm1809, %v1811, %v1807
  %v1813 = vmul.f32 1.0, %v1812
  %v1814 = vmul.f32 %v1793, %v1435
  %v1815 = vmul.f32 %v1774, %v1794
  %v1816 = vadd.f32 %v1814, %v1815
  %v1817 = vtanh.pop %v1816
  %v1818 = vmul.f32 %v1813, %v1817
  %s1819 = smul.u32 2, 4
  %s1820 = smul.addr %s1819, 8
  %s1821 = scalar_lea.vmem [#allocation2], %s1820
  %v1822 = vld [vmem:[%s1821] sm:$0xff]
  %v1823 = vld [vmem:[%s1821 + $0x8] sm:$0xff]
  %v1824 = vld [vmem:[%s1821 + $0x10] sm:$0xff]
  %v1825 = vld [vmem:[%s1821 + $0x18] sm:$0xff]
  %1826 = vmatpush.msra.mxu0 %v921
  %1827 = vmatpush.msra.mxu0 %v917
  %1828 = vmatpush.msra.mxu0 %v913
  %1829 = vmatpush.msra.mxu0 %v909
  %1830 = vmatpush.msra.mxu0 %v905
  %1831 = vmatpush.msra.mxu0 %v901
  %1832 = vmatpush.msra.mxu0 %v897
  %1833 = vmatpush.msra.mxu0 %v893
  %1834 = vmatpush.msra.mxu0 %v889
  %1835 = vmatpush.msra.mxu0 %v885
  %1836 = vmatpush.msra.mxu0 %v881
  %1837 = vmatpush.msra.mxu0 %v877
  %1838 = vmatpush.msra.mxu0 %v873
  %1839 = vmatpush.msra.mxu0 %v869
  %1840 = vmatpush.msra.mxu0 %v865
  %1841 = vmatpush.msra.mxu0 %v861
  %1842 = vmatmul.f32.gmra.mxu0 %v1591
  %v1843 = vpop.f32.mrf.mxu0
  %v1844 = vadd.f32 0.0, %v1843
  %1845 = vdwg.mxu0
  %1846 = vmatpush.msra.mxu0 %v922
  %1847 = vmatpush.msra.mxu0 %v918
  %1848 = vmatpush.msra.mxu0 %v914
  %1849 = vmatpush.msra.mxu0 %v910
  %1850 = vmatpush.msra.mxu0 %v906
  %1851 = vmatpush.msra.mxu0 %v902
  %1852 = vmatpush.msra.mxu0 %v898
  %1853 = vmatpush.msra.mxu0 %v894
  %1854 = vmatpush.msra.mxu0 %v890
  %1855 = vmatpush.msra.mxu0 %v886
  %1856 = vmatpush.msra.mxu0 %v882
  %1857 = vmatpush.msra.mxu0 %v878
  %1858 = vmatpush.msra.mxu0 %v874
  %1859 = vmatpush.msra.mxu0 %v870
  %1860 = vmatpush.msra.mxu0 %v866
  %1861 = vmatpush.msra.mxu0 %v862
  %1862 = vmatmul.f32.gmra.mxu0 %v1591
  %v1863 = vpop.f32.mrf.mxu0
  %v1864 = vadd.f32 0.0, %v1863
  %1865 = vdwg.mxu0
  %1866 = vmatpush.msra.mxu0 %v923
  %1867 = vmatpush.msra.mxu0 %v919
  %1868 = vmatpush.msra.mxu0 %v915
  %1869 = vmatpush.msra.mxu0 %v911
  %1870 = vmatpush.msra.mxu0 %v907
  %1871 = vmatpush.msra.mxu0 %v903
  %1872 = vmatpush.msra.mxu0 %v899
  %1873 = vmatpush.msra.mxu0 %v895
  %1874 = vmatpush.msra.mxu0 %v891
  %1875 = vmatpush.msra.mxu0 %v887
  %1876 = vmatpush.msra.mxu0 %v883
  %1877 = vmatpush.msra.mxu0 %v879
  %1878 = vmatpush.msra.mxu0 %v875
  %1879 = vmatpush.msra.mxu0 %v871
  %1880 = vmatpush.msra.mxu0 %v867
  %1881 = vmatpush.msra.mxu0 %v863
  %1882 = vmatmul.f32.gmra.mxu0 %v1591
  %v1883 = vpop.f32.mrf.mxu0
  %v1884 = vadd.f32 0.0, %v1883
  %1885 = vdwg.mxu0
  %1886 = vmatpush.msra.mxu0 %v924
  %1887 = vmatpush.msra.mxu0 %v920
  %1888 = vmatpush.msra.mxu0 %v916
  %1889 = vmatpush.msra.mxu0 %v912
  %1890 = vmatpush.msra.mxu0 %v908
  %1891 = vmatpush.msra.mxu0 %v904
  %1892 = vmatpush.msra.mxu0 %v900
  %1893 = vmatpush.msra.mxu0 %v896
  %1894 = vmatpush.msra.mxu0 %v892
  %1895 = vmatpush.msra.mxu0 %v888
  %1896 = vmatpush.msra.mxu0 %v884
  %1897 = vmatpush.msra.mxu0 %v880
  %1898 = vmatpush.msra.mxu0 %v876
  %1899 = vmatpush.msra.mxu0 %v872
  %1900 = vmatpush.msra.mxu0 %v868
  %1901 = vmatpush.msra.mxu0 %v864
  %1902 = vmatmul.f32.gmra.mxu0 %v1591
  %v1903 = vpop.f32.mrf.mxu0
  %v1904 = vadd.f32 0.0, %v1903
  %1905 = vdwg.mxu0
  %v1906 = vadd.f32 %v1822, %v1844
  %v1907 = vadd.f32 %v1823, %v1864
  %v1908 = vadd.f32 %v1824, %v1884
  %v1909 = vadd.f32 %v1825, %v1904
  %v1910 = vxor.u32 %v1906, 2147483648
  %v1911 = vmul.f32 %v1910, 1.442695
  %v1912 = vpow.pop %v1911
  %v1913 = vadd.f32 %v1912, 1.0
  %v1914 = vrcp.pop %v1913
  %v1915 = vmul.f32 %v1913, %v1914
  %v1916 = vsub.f32 1.0, %v1915
  %v1917 = vmul.f32 %v1914, %v1916
  %v1918 = vadd.f32 %v1914, %v1917
  %vm1919 = vweird.f32 %v1913
  %vm1920 = vweird.f32 %v1914
  %vm1921 = vmor %vm1919, %vm1920
  %v1922 = vsel %vm1921, %v1914, %v1918
  %v1923 = vand.u32 2147483647, %v1913
  %vm1924 = vcmp.eq.f32.partialorder %v1923, 8.507059e+37
  %v1925 = vand.u32 %v1913, 2147483648
  %v1926 = vor.u32 1.1754944e-38, %v1925
  %v1927 = vsel %vm1924, %v1926, %v1922
  %v1928 = vmul.f32 1.0, %v1927
  %v1929 = vxor.u32 %v1907, 2147483648
  %v1930 = vmul.f32 %v1929, 1.442695
  %v1931 = vpow.pop %v1930
  %v1932 = vadd.f32 %v1931, 1.0
  %v1933 = vrcp.pop %v1932
  %v1934 = vmul.f32 %v1932, %v1933
  %v1935 = vsub.f32 1.0, %v1934
  %v1936 = vmul.f32 %v1933, %v1935
  %v1937 = vadd.f32 %v1933, %v1936
  %vm1938 = vweird.f32 %v1932
  %vm1939 = vweird.f32 %v1933
  %vm1940 = vmor %vm1938, %vm1939
  %v1941 = vsel %vm1940, %v1933, %v1937
  %v1942 = vand.u32 2147483647, %v1932
  %vm1943 = vcmp.eq.f32.partialorder %v1942, 8.507059e+37
  %v1944 = vand.u32 %v1932, 2147483648
  %v1945 = vor.u32 1.1754944e-38, %v1944
  %v1946 = vsel %vm1943, %v1945, %v1941
  %v1947 = vmul.f32 1.0, %v1946
  %v1948 = vtanh.pop %v1908
  %v1949 = vxor.u32 %v1909, 2147483648
  %v1950 = vmul.f32 %v1949, 1.442695
  %v1951 = vpow.pop %v1950
  %v1952 = vadd.f32 %v1951, 1.0
  %v1953 = vrcp.pop %v1952
  %v1954 = vmul.f32 %v1952, %v1953
  %v1955 = vsub.f32 1.0, %v1954
  %v1956 = vmul.f32 %v1953, %v1955
  %v1957 = vadd.f32 %v1953, %v1956
  %vm1958 = vweird.f32 %v1952
  %vm1959 = vweird.f32 %v1953
  %vm1960 = vmor %vm1958, %vm1959
  %v1961 = vsel %vm1960, %v1953, %v1957
  %v1962 = vand.u32 2147483647, %v1952
  %vm1963 = vcmp.eq.f32.partialorder %v1962, 8.507059e+37
  %v1964 = vand.u32 %v1952, 2147483648
  %v1965 = vor.u32 1.1754944e-38, %v1964
  %v1966 = vsel %vm1963, %v1965, %v1961
  %v1967 = vmul.f32 1.0, %v1966
  %v1968 = vmul.f32 %v1947, %v1589
  %v1969 = vmul.f32 %v1928, %v1948
  %v1970 = vadd.f32 %v1968, %v1969
  %v1971 = vtanh.pop %v1970
  %v1972 = vmul.f32 %v1967, %v1971
  %1973 = vmatpush.msra.mxu0 %v985
  %1974 = vmatpush.msra.mxu0 %v981
  %1975 = vmatpush.msra.mxu0 %v977
  %1976 = vmatpush.msra.mxu0 %v973
  %1977 = vmatpush.msra.mxu0 %v969
  %1978 = vmatpush.msra.mxu0 %v965
  %1979 = vmatpush.msra.mxu0 %v961
  %1980 = vmatpush.msra.mxu0 %v957
  %1981 = vmatpush.msra.mxu0 %v953
  %1982 = vmatpush.msra.mxu0 %v949
  %1983 = vmatpush.msra.mxu0 %v945
  %1984 = vmatpush.msra.mxu0 %v941
  %1985 = vmatpush.msra.mxu0 %v937
  %1986 = vmatpush.msra.mxu0 %v933
  %1987 = vmatpush.msra.mxu0 %v929
  %1988 = vmatpush.msra.mxu0 %v925
  %1989 = vmatmul.f32.gmra.mxu0 %v1972
  %v1990 = vpop.f32.mrf.mxu0
  %v1991 = vadd.f32 0.0, %v1990
  %1992 = vdwg.mxu0
  %1993 = vmatpush.msra.mxu0 %v1049
  %1994 = vmatpush.msra.mxu0 %v1045
  %1995 = vmatpush.msra.mxu0 %v1041
  %1996 = vmatpush.msra.mxu0 %v1037
  %1997 = vmatpush.msra.mxu0 %v1033
  %1998 = vmatpush.msra.mxu0 %v1029
  %1999 = vmatpush.msra.mxu0 %v1025
  %2000 = vmatpush.msra.mxu0 %v1021
  %2001 = vmatpush.msra.mxu0 %v1017
  %2002 = vmatpush.msra.mxu0 %v1013
  %2003 = vmatpush.msra.mxu0 %v1009
  %2004 = vmatpush.msra.mxu0 %v1005
  %2005 = vmatpush.msra.mxu0 %v1001
  %2006 = vmatpush.msra.mxu0 %v997
  %2007 = vmatpush.msra.mxu0 %v993
  %2008 = vmatpush.msra.mxu0 %v989
  %2009 = vmatmul.f32.gmra.mxu0 %v1818
  %v2010 = vpop.f32.mrf.mxu0
  %v2011 = vadd.f32 %v1991, %v2010
  %2012 = vdwg.mxu0
  %2013 = vmatpush.msra.mxu0 %v986
  %2014 = vmatpush.msra.mxu0 %v982
  %2015 = vmatpush.msra.mxu0 %v978
  %2016 = vmatpush.msra.mxu0 %v974
  %2017 = vmatpush.msra.mxu0 %v970
  %2018 = vmatpush.msra.mxu0 %v966
  %2019 = vmatpush.msra.mxu0 %v962
  %2020 = vmatpush.msra.mxu0 %v958
  %2021 = vmatpush.msra.mxu0 %v954
  %2022 = vmatpush.msra.mxu0 %v950
  %2023 = vmatpush.msra.mxu0 %v946
  %2024 = vmatpush.msra.mxu0 %v942
  %2025 = vmatpush.msra.mxu0 %v938
  %2026 = vmatpush.msra.mxu0 %v934
  %2027 = vmatpush.msra.mxu0 %v930
  %2028 = vmatpush.msra.mxu0 %v926
  %2029 = vmatmul.f32.gmra.mxu0 %v1972
  %v2030 = vpop.f32.mrf.mxu0
  %v2031 = vadd.f32 0.0, %v2030
  %2032 = vdwg.mxu0
  %2033 = vmatpush.msra.mxu0 %v1050
  %2034 = vmatpush.msra.mxu0 %v1046
  %2035 = vmatpush.msra.mxu0 %v1042
  %2036 = vmatpush.msra.mxu0 %v1038
  %2037 = vmatpush.msra.mxu0 %v1034
  %2038 = vmatpush.msra.mxu0 %v1030
  %2039 = vmatpush.msra.mxu0 %v1026
  %2040 = vmatpush.msra.mxu0 %v1022
  %2041 = vmatpush.msra.mxu0 %v1018
  %2042 = vmatpush.msra.mxu0 %v1014
  %2043 = vmatpush.msra.mxu0 %v1010
  %2044 = vmatpush.msra.mxu0 %v1006
  %2045 = vmatpush.msra.mxu0 %v1002
  %2046 = vmatpush.msra.mxu0 %v998
  %2047 = vmatpush.msra.mxu0 %v994
  %2048 = vmatpush.msra.mxu0 %v990
  %2049 = vmatmul.f32.gmra.mxu0 %v1818
  %v2050 = vpop.f32.mrf.mxu0
  %v2051 = vadd.f32 %v2031, %v2050
  %2052 = vdwg.mxu0
  %2053 = vmatpush.msra.mxu0 %v987
  %2054 = vmatpush.msra.mxu0 %v983
  %2055 = vmatpush.msra.mxu0 %v979
  %2056 = vmatpush.msra.mxu0 %v975
  %2057 = vmatpush.msra.mxu0 %v971
  %2058 = vmatpush.msra.mxu0 %v967
  %2059 = vmatpush.msra.mxu0 %v963
  %2060 = vmatpush.msra.mxu0 %v959
  %2061 = vmatpush.msra.mxu0 %v955
  %2062 = vmatpush.msra.mxu0 %v951
  %2063 = vmatpush.msra.mxu0 %v947
  %2064 = vmatpush.msra.mxu0 %v943
  %2065 = vmatpush.msra.mxu0 %v939
  %2066 = vmatpush.msra.mxu0 %v935
  %2067 = vmatpush.msra.mxu0 %v931
  %2068 = vmatpush.msra.mxu0 %v927
  %2069 = vmatmul.f32.gmra.mxu0 %v1972
  %v2070 = vpop.f32.mrf.mxu0
  %v2071 = vadd.f32 0.0, %v2070
  %2072 = vdwg.mxu0
  %2073 = vmatpush.msra.mxu0 %v1051
  %2074 = vmatpush.msra.mxu0 %v1047
  %2075 = vmatpush.msra.mxu0 %v1043
  %2076 = vmatpush.msra.mxu0 %v1039
  %2077 = vmatpush.msra.mxu0 %v1035
  %2078 = vmatpush.msra.mxu0 %v1031
  %2079 = vmatpush.msra.mxu0 %v1027
  %2080 = vmatpush.msra.mxu0 %v1023
  %2081 = vmatpush.msra.mxu0 %v1019
  %2082 = vmatpush.msra.mxu0 %v1015
  %2083 = vmatpush.msra.mxu0 %v1011
  %2084 = vmatpush.msra.mxu0 %v1007
  %2085 = vmatpush.msra.mxu0 %v1003
  %2086 = vmatpush.msra.mxu0 %v999
  %2087 = vmatpush.msra.mxu0 %v995
  %2088 = vmatpush.msra.mxu0 %v991
  %2089 = vmatmul.f32.gmra.mxu0 %v1818
  %v2090 = vpop.f32.mrf.mxu0
  %v2091 = vadd.f32 %v2071, %v2090
  %2092 = vdwg.mxu0
  %2093 = vmatpush.msra.mxu0 %v988
  %2094 = vmatpush.msra.mxu0 %v984
  %2095 = vmatpush.msra.mxu0 %v980
  %2096 = vmatpush.msra.mxu0 %v976
  %2097 = vmatpush.msra.mxu0 %v972
  %2098 = vmatpush.msra.mxu0 %v968
  %2099 = vmatpush.msra.mxu0 %v964
  %2100 = vmatpush.msra.mxu0 %v960
  %2101 = vmatpush.msra.mxu0 %v956
  %2102 = vmatpush.msra.mxu0 %v952
  %2103 = vmatpush.msra.mxu0 %v948
  %2104 = vmatpush.msra.mxu0 %v944
  %2105 = vmatpush.msra.mxu0 %v940
  %2106 = vmatpush.msra.mxu0 %v936
  %2107 = vmatpush.msra.mxu0 %v932
  %2108 = vmatpush.msra.mxu0 %v928
  %2109 = vmatmul.f32.gmra.mxu0 %v1972
  %v2110 = vpop.f32.mrf.mxu0
  %v2111 = vadd.f32 0.0, %v2110
  %2112 = vdwg.mxu0
  %2113 = vmatpush.msra.mxu0 %v1052
  %2114 = vmatpush.msra.mxu0 %v1048
  %2115 = vmatpush.msra.mxu0 %v1044
  %2116 = vmatpush.msra.mxu0 %v1040
  %2117 = vmatpush.msra.mxu0 %v1036
  %2118 = vmatpush.msra.mxu0 %v1032
  %2119 = vmatpush.msra.mxu0 %v1028
  %2120 = vmatpush.msra.mxu0 %v1024
  %2121 = vmatpush.msra.mxu0 %v1020
  %2122 = vmatpush.msra.mxu0 %v1016
  %2123 = vmatpush.msra.mxu0 %v1012
  %2124 = vmatpush.msra.mxu0 %v1008
  %2125 = vmatpush.msra.mxu0 %v1004
  %2126 = vmatpush.msra.mxu0 %v1000
  %2127 = vmatpush.msra.mxu0 %v996
  %2128 = vmatpush.msra.mxu0 %v992
  %2129 = vmatmul.f32.gmra.mxu0 %v1818
  %v2130 = vpop.f32.mrf.mxu0
  %v2131 = vadd.f32 %v2111, %v2130
  %2132 = vdwg.mxu0
  %v2133 = vadd.f32 %v1053, %v2011
  %v2134 = vadd.f32 %v1054, %v2051
  %v2135 = vadd.f32 %v1055, %v2091
  %v2136 = vadd.f32 %v1056, %v2131
  %v2137 = vxor.u32 %v2133, 2147483648
  %v2138 = vmul.f32 %v2137, 1.442695
  %v2139 = vpow.pop %v2138
  %v2140 = vadd.f32 %v2139, 1.0
  %v2141 = vrcp.pop %v2140
  %v2142 = vmul.f32 %v2140, %v2141
  %v2143 = vsub.f32 1.0, %v2142
  %v2144 = vmul.f32 %v2141, %v2143
  %v2145 = vadd.f32 %v2141, %v2144
  %vm2146 = vweird.f32 %v2140
  %vm2147 = vweird.f32 %v2141
  %vm2148 = vmor %vm2146, %vm2147
  %v2149 = vsel %vm2148, %v2141, %v2145
  %v2150 = vand.u32 2147483647, %v2140
  %vm2151 = vcmp.eq.f32.partialorder %v2150, 8.507059e+37
  %v2152 = vand.u32 %v2140, 2147483648
  %v2153 = vor.u32 1.1754944e-38, %v2152
  %v2154 = vsel %vm2151, %v2153, %v2149
  %v2155 = vmul.f32 1.0, %v2154
  %v2156 = vxor.u32 %v2134, 2147483648
  %v2157 = vmul.f32 %v2156, 1.442695
  %v2158 = vpow.pop %v2157
  %v2159 = vadd.f32 %v2158, 1.0
  %v2160 = vrcp.pop %v2159
  %v2161 = vmul.f32 %v2159, %v2160
  %v2162 = vsub.f32 1.0, %v2161
  %v2163 = vmul.f32 %v2160, %v2162
  %v2164 = vadd.f32 %v2160, %v2163
  %vm2165 = vweird.f32 %v2159
  %vm2166 = vweird.f32 %v2160
  %vm2167 = vmor %vm2165, %vm2166
  %v2168 = vsel %vm2167, %v2160, %v2164
  %v2169 = vand.u32 2147483647, %v2159
  %vm2170 = vcmp.eq.f32.partialorder %v2169, 8.507059e+37
  %v2171 = vand.u32 %v2159, 2147483648
  %v2172 = vor.u32 1.1754944e-38, %v2171
  %v2173 = vsel %vm2170, %v2172, %v2168
  %v2174 = vmul.f32 1.0, %v2173
  %v2175 = vtanh.pop %v2135
  %v2176 = vxor.u32 %v2136, 2147483648
  %v2177 = vmul.f32 %v2176, 1.442695
  %v2178 = vpow.pop %v2177
  %v2179 = vadd.f32 %v2178, 1.0
  %v2180 = vrcp.pop %v2179
  %v2181 = vmul.f32 %v2179, %v2180
  %v2182 = vsub.f32 1.0, %v2181
  %v2183 = vmul.f32 %v2180, %v2182
  %v2184 = vadd.f32 %v2180, %v2183
  %vm2185 = vweird.f32 %v2179
  %vm2186 = vweird.f32 %v2180
  %vm2187 = vmor %vm2185, %vm2186
  %v2188 = vsel %vm2187, %v2180, %v2184
  %v2189 = vand.u32 2147483647, %v2179
  %vm2190 = vcmp.eq.f32.partialorder %v2189, 8.507059e+37
  %v2191 = vand.u32 %v2179, 2147483648
  %v2192 = vor.u32 1.1754944e-38, %v2191
  %v2193 = vsel %vm2190, %v2192, %v2188
  %v2194 = vmul.f32 1.0, %v2193
  %v2195 = vmul.f32 %v2174, %v1816
  %v2196 = vmul.f32 %v2155, %v2175
  %v2197 = vadd.f32 %v2195, %v2196
  %v2198 = vtanh.pop %v2197
  %v2199 = vmul.f32 %v2194, %v2198
  %s2200 = smul.u32 3, 4
  %s2201 = smul.addr %s2200, 8
  %s2202 = scalar_lea.vmem [#allocation2], %s2201
  %v2203 = vld [vmem:[%s2202] sm:$0xff]
  %v2204 = vld [vmem:[%s2202 + $0x8] sm:$0xff]
  %v2205 = vld [vmem:[%s2202 + $0x10] sm:$0xff]
  %v2206 = vld [vmem:[%s2202 + $0x18] sm:$0xff]
  %2207 = vmatpush.msra.mxu0 %v921
  %2208 = vmatpush.msra.mxu0 %v917
  %2209 = vmatpush.msra.mxu0 %v913
  %2210 = vmatpush.msra.mxu0 %v909
  %2211 = vmatpush.msra.mxu0 %v905
  %2212 = vmatpush.msra.mxu0 %v901
  %2213 = vmatpush.msra.mxu0 %v897
  %2214 = vmatpush.msra.mxu0 %v893
  %2215 = vmatpush.msra.mxu0 %v889
  %2216 = vmatpush.msra.mxu0 %v885
  %2217 = vmatpush.msra.mxu0 %v881
  %2218 = vmatpush.msra.mxu0 %v877
  %2219 = vmatpush.msra.mxu0 %v873
  %2220 = vmatpush.msra.mxu0 %v869
  %2221 = vmatpush.msra.mxu0 %v865
  %2222 = vmatpush.msra.mxu0 %v861
  %2223 = vmatmul.f32.gmra.mxu0 %v1972
  %v2224 = vpop.f32.mrf.mxu0
  %v2225 = vadd.f32 0.0, %v2224
  %2226 = vdwg.mxu0
  %2227 = vmatpush.msra.mxu0 %v922
  %2228 = vmatpush.msra.mxu0 %v918
  %2229 = vmatpush.msra.mxu0 %v914
  %2230 = vmatpush.msra.mxu0 %v910
  %2231 = vmatpush.msra.mxu0 %v906
  %2232 = vmatpush.msra.mxu0 %v902
  %2233 = vmatpush.msra.mxu0 %v898
  %2234 = vmatpush.msra.mxu0 %v894
  %2235 = vmatpush.msra.mxu0 %v890
  %2236 = vmatpush.msra.mxu0 %v886
  %2237 = vmatpush.msra.mxu0 %v882
  %2238 = vmatpush.msra.mxu0 %v878
  %2239 = vmatpush.msra.mxu0 %v874
  %2240 = vmatpush.msra.mxu0 %v870
  %2241 = vmatpush.msra.mxu0 %v866
  %2242 = vmatpush.msra.mxu0 %v862
  %2243 = vmatmul.f32.gmra.mxu0 %v1972
  %v2244 = vpop.f32.mrf.mxu0
  %v2245 = vadd.f32 0.0, %v2244
  %2246 = vdwg.mxu0
  %2247 = vmatpush.msra.mxu0 %v923
  %2248 = vmatpush.msra.mxu0 %v919
  %2249 = vmatpush.msra.mxu0 %v915
  %2250 = vmatpush.msra.mxu0 %v911
  %2251 = vmatpush.msra.mxu0 %v907
  %2252 = vmatpush.msra.mxu0 %v903
  %2253 = vmatpush.msra.mxu0 %v899
  %2254 = vmatpush.msra.mxu0 %v895
  %2255 = vmatpush.msra.mxu0 %v891
  %2256 = vmatpush.msra.mxu0 %v887
  %2257 = vmatpush.msra.mxu0 %v883
  %2258 = vmatpush.msra.mxu0 %v879
  %2259 = vmatpush.msra.mxu0 %v875
  %2260 = vmatpush.msra.mxu0 %v871
  %2261 = vmatpush.msra.mxu0 %v867
  %2262 = vmatpush.msra.mxu0 %v863
  %2263 = vmatmul.f32.gmra.mxu0 %v1972
  %v2264 = vpop.f32.mrf.mxu0
  %v2265 = vadd.f32 0.0, %v2264
  %2266 = vdwg.mxu0
  %2267 = vmatpush.msra.mxu0 %v924
  %2268 = vmatpush.msra.mxu0 %v920
  %2269 = vmatpush.msra.mxu0 %v916
  %2270 = vmatpush.msra.mxu0 %v912
  %2271 = vmatpush.msra.mxu0 %v908
  %2272 = vmatpush.msra.mxu0 %v904
  %2273 = vmatpush.msra.mxu0 %v900
  %2274 = vmatpush.msra.mxu0 %v896
  %2275 = vmatpush.msra.mxu0 %v892
  %2276 = vmatpush.msra.mxu0 %v888
  %2277 = vmatpush.msra.mxu0 %v884
  %2278 = vmatpush.msra.mxu0 %v880
  %2279 = vmatpush.msra.mxu0 %v876
  %2280 = vmatpush.msra.mxu0 %v872
  %2281 = vmatpush.msra.mxu0 %v868
  %2282 = vmatpush.msra.mxu0 %v864
  %2283 = vmatmul.f32.gmra.mxu0 %v1972
  %v2284 = vpop.f32.mrf.mxu0
  %v2285 = vadd.f32 0.0, %v2284
  %2286 = vdwg.mxu0
  %v2287 = vadd.f32 %v2203, %v2225
  %v2288 = vadd.f32 %v2204, %v2245
  %v2289 = vadd.f32 %v2205, %v2265
  %v2290 = vadd.f32 %v2206, %v2285
  %v2291 = vxor.u32 %v2287, 2147483648
  %v2292 = vmul.f32 %v2291, 1.442695
  %v2293 = vpow.pop %v2292
  %v2294 = vadd.f32 %v2293, 1.0
  %v2295 = vrcp.pop %v2294
  %v2296 = vmul.f32 %v2294, %v2295
  %v2297 = vsub.f32 1.0, %v2296
  %v2298 = vmul.f32 %v2295, %v2297
  %v2299 = vadd.f32 %v2295, %v2298
  %vm2300 = vweird.f32 %v2294
  %vm2301 = vweird.f32 %v2295
  %vm2302 = vmor %vm2300, %vm2301
  %v2303 = vsel %vm2302, %v2295, %v2299
  %v2304 = vand.u32 2147483647, %v2294
  %vm2305 = vcmp.eq.f32.partialorder %v2304, 8.507059e+37
  %v2306 = vand.u32 %v2294, 2147483648
  %v2307 = vor.u32 1.1754944e-38, %v2306
  %v2308 = vsel %vm2305, %v2307, %v2303
  %v2309 = vmul.f32 1.0, %v2308
  %v2310 = vxor.u32 %v2288, 2147483648
  %v2311 = vmul.f32 %v2310, 1.442695
  %v2312 = vpow.pop %v2311
  %v2313 = vadd.f32 %v2312, 1.0
  %v2314 = vrcp.pop %v2313
  %v2315 = vmul.f32 %v2313, %v2314
  %v2316 = vsub.f32 1.0, %v2315
  %v2317 = vmul.f32 %v2314, %v2316
  %v2318 = vadd.f32 %v2314, %v2317
  %vm2319 = vweird.f32 %v2313
  %vm2320 = vweird.f32 %v2314
  %vm2321 = vmor %vm2319, %vm2320
  %v2322 = vsel %vm2321, %v2314, %v2318
  %v2323 = vand.u32 2147483647, %v2313
  %vm2324 = vcmp.eq.f32.partialorder %v2323, 8.507059e+37
  %v2325 = vand.u32 %v2313, 2147483648
  %v2326 = vor.u32 1.1754944e-38, %v2325
  %v2327 = vsel %vm2324, %v2326, %v2322
  %v2328 = vmul.f32 1.0, %v2327
  %v2329 = vtanh.pop %v2289
  %v2330 = vxor.u32 %v2290, 2147483648
  %v2331 = vmul.f32 %v2330, 1.442695
  %v2332 = vpow.pop %v2331
  %v2333 = vadd.f32 %v2332, 1.0
  %v2334 = vrcp.pop %v2333
  %v2335 = vmul.f32 %v2333, %v2334
  %v2336 = vsub.f32 1.0, %v2335
  %v2337 = vmul.f32 %v2334, %v2336
  %v2338 = vadd.f32 %v2334, %v2337
  %vm2339 = vweird.f32 %v2333
  %vm2340 = vweird.f32 %v2334
  %vm2341 = vmor %vm2339, %vm2340
  %v2342 = vsel %vm2341, %v2334, %v2338
  %v2343 = vand.u32 2147483647, %v2333
  %vm2344 = vcmp.eq.f32.partialorder %v2343, 8.507059e+37
  %v2345 = vand.u32 %v2333, 2147483648
  %v2346 = vor.u32 1.1754944e-38, %v2345
  %v2347 = vsel %vm2344, %v2346, %v2342
  %v2348 = vmul.f32 1.0, %v2347
  %v2349 = vmul.f32 %v2328, %v1970
  %v2350 = vmul.f32 %v2309, %v2329
  %v2351 = vadd.f32 %v2349, %v2350
  %v2352 = vtanh.pop %v2351
  %v2353 = vmul.f32 %v2348, %v2352
  %2354 = vmatpush.msra.mxu0 %v985
  %2355 = vmatpush.msra.mxu0 %v981
  %2356 = vmatpush.msra.mxu0 %v977
  %2357 = vmatpush.msra.mxu0 %v973
  %2358 = vmatpush.msra.mxu0 %v969
  %2359 = vmatpush.msra.mxu0 %v965
  %2360 = vmatpush.msra.mxu0 %v961
  %2361 = vmatpush.msra.mxu0 %v957
  %2362 = vmatpush.msra.mxu0 %v953
  %2363 = vmatpush.msra.mxu0 %v949
  %2364 = vmatpush.msra.mxu0 %v945
  %2365 = vmatpush.msra.mxu0 %v941
  %2366 = vmatpush.msra.mxu0 %v937
  %2367 = vmatpush.msra.mxu0 %v933
  %2368 = vmatpush.msra.mxu0 %v929
  %2369 = vmatpush.msra.mxu0 %v925
  %2370 = vmatmul.f32.gmra.mxu0 %v2353
  %v2371 = vpop.f32.mrf.mxu0
  %v2372 = vadd.f32 0.0, %v2371
  %2373 = vdwg.mxu0
  %2374 = vmatpush.msra.mxu0 %v1049
  %2375 = vmatpush.msra.mxu0 %v1045
  %2376 = vmatpush.msra.mxu0 %v1041
  %2377 = vmatpush.msra.mxu0 %v1037
  %2378 = vmatpush.msra.mxu0 %v1033
  %2379 = vmatpush.msra.mxu0 %v1029
  %2380 = vmatpush.msra.mxu0 %v1025
  %2381 = vmatpush.msra.mxu0 %v1021
  %2382 = vmatpush.msra.mxu0 %v1017
  %2383 = vmatpush.msra.mxu0 %v1013
  %2384 = vmatpush.msra.mxu0 %v1009
  %2385 = vmatpush.msra.mxu0 %v1005
  %2386 = vmatpush.msra.mxu0 %v1001
  %2387 = vmatpush.msra.mxu0 %v997
  %2388 = vmatpush.msra.mxu0 %v993
  %2389 = vmatpush.msra.mxu0 %v989
  %2390 = vmatmul.f32.gmra.mxu0 %v2199
  %v2391 = vpop.f32.mrf.mxu0
  %v2392 = vadd.f32 %v2372, %v2391
  %2393 = vdwg.mxu0
  %2394 = vmatpush.msra.mxu0 %v986
  %2395 = vmatpush.msra.mxu0 %v982
  %2396 = vmatpush.msra.mxu0 %v978
  %2397 = vmatpush.msra.mxu0 %v974
  %2398 = vmatpush.msra.mxu0 %v970
  %2399 = vmatpush.msra.mxu0 %v966
  %2400 = vmatpush.msra.mxu0 %v962
  %2401 = vmatpush.msra.mxu0 %v958
  %2402 = vmatpush.msra.mxu0 %v954
  %2403 = vmatpush.msra.mxu0 %v950
  %2404 = vmatpush.msra.mxu0 %v946
  %2405 = vmatpush.msra.mxu0 %v942
  %2406 = vmatpush.msra.mxu0 %v938
  %2407 = vmatpush.msra.mxu0 %v934
  %2408 = vmatpush.msra.mxu0 %v930
  %2409 = vmatpush.msra.mxu0 %v926
  %2410 = vmatmul.f32.gmra.mxu0 %v2353
  %v2411 = vpop.f32.mrf.mxu0
  %v2412 = vadd.f32 0.0, %v2411
  %2413 = vdwg.mxu0
  %2414 = vmatpush.msra.mxu0 %v1050
  %2415 = vmatpush.msra.mxu0 %v1046
  %2416 = vmatpush.msra.mxu0 %v1042
  %2417 = vmatpush.msra.mxu0 %v1038
  %2418 = vmatpush.msra.mxu0 %v1034
  %2419 = vmatpush.msra.mxu0 %v1030
  %2420 = vmatpush.msra.mxu0 %v1026
  %2421 = vmatpush.msra.mxu0 %v1022
  %2422 = vmatpush.msra.mxu0 %v1018
  %2423 = vmatpush.msra.mxu0 %v1014
  %2424 = vmatpush.msra.mxu0 %v1010
  %2425 = vmatpush.msra.mxu0 %v1006
  %2426 = vmatpush.msra.mxu0 %v1002
  %2427 = vmatpush.msra.mxu0 %v998
  %2428 = vmatpush.msra.mxu0 %v994
  %2429 = vmatpush.msra.mxu0 %v990
  %2430 = vmatmul.f32.gmra.mxu0 %v2199
  %v2431 = vpop.f32.mrf.mxu0
  %v2432 = vadd.f32 %v2412, %v2431
  %2433 = vdwg.mxu0
  %2434 = vmatpush.msra.mxu0 %v987
  %2435 = vmatpush.msra.mxu0 %v983
  %2436 = vmatpush.msra.mxu0 %v979
  %2437 = vmatpush.msra.mxu0 %v975
  %2438 = vmatpush.msra.mxu0 %v971
  %2439 = vmatpush.msra.mxu0 %v967
  %2440 = vmatpush.msra.mxu0 %v963
  %2441 = vmatpush.msra.mxu0 %v959
  %2442 = vmatpush.msra.mxu0 %v955
  %2443 = vmatpush.msra.mxu0 %v951
  %2444 = vmatpush.msra.mxu0 %v947
  %2445 = vmatpush.msra.mxu0 %v943
  %2446 = vmatpush.msra.mxu0 %v939
  %2447 = vmatpush.msra.mxu0 %v935
  %2448 = vmatpush.msra.mxu0 %v931
  %2449 = vmatpush.msra.mxu0 %v927
  %2450 = vmatmul.f32.gmra.mxu0 %v2353
  %v2451 = vpop.f32.mrf.mxu0
  %v2452 = vadd.f32 0.0, %v2451
  %2453 = vdwg.mxu0
  %2454 = vmatpush.msra.mxu0 %v1051
  %2455 = vmatpush.msra.mxu0 %v1047
  %2456 = vmatpush.msra.mxu0 %v1043
  %2457 = vmatpush.msra.mxu0 %v1039
  %2458 = vmatpush.msra.mxu0 %v1035
  %2459 = vmatpush.msra.mxu0 %v1031
  %2460 = vmatpush.msra.mxu0 %v1027
  %2461 = vmatpush.msra.mxu0 %v1023
  %2462 = vmatpush.msra.mxu0 %v1019
  %2463 = vmatpush.msra.mxu0 %v1015
  %2464 = vmatpush.msra.mxu0 %v1011
  %2465 = vmatpush.msra.mxu0 %v1007
  %2466 = vmatpush.msra.mxu0 %v1003
  %2467 = vmatpush.msra.mxu0 %v999
  %2468 = vmatpush.msra.mxu0 %v995
  %2469 = vmatpush.msra.mxu0 %v991
  %2470 = vmatmul.f32.gmra.mxu0 %v2199
  %v2471 = vpop.f32.mrf.mxu0
  %v2472 = vadd.f32 %v2452, %v2471
  %2473 = vdwg.mxu0
  %2474 = vmatpush.msra.mxu0 %v988
  %2475 = vmatpush.msra.mxu0 %v984
  %2476 = vmatpush.msra.mxu0 %v980
  %2477 = vmatpush.msra.mxu0 %v976
  %2478 = vmatpush.msra.mxu0 %v972
  %2479 = vmatpush.msra.mxu0 %v968
  %2480 = vmatpush.msra.mxu0 %v964
  %2481 = vmatpush.msra.mxu0 %v960
  %2482 = vmatpush.msra.mxu0 %v956
  %2483 = vmatpush.msra.mxu0 %v952
  %2484 = vmatpush.msra.mxu0 %v948
  %2485 = vmatpush.msra.mxu0 %v944
  %2486 = vmatpush.msra.mxu0 %v940
  %2487 = vmatpush.msra.mxu0 %v936
  %2488 = vmatpush.msra.mxu0 %v932
  %2489 = vmatpush.msra.mxu0 %v928
  %2490 = vmatmul.f32.gmra.mxu0 %v2353
  %v2491 = vpop.f32.mrf.mxu0
  %v2492 = vadd.f32 0.0, %v2491
  %2493 = vdwg.mxu0
  %2494 = vmatpush.msra.mxu0 %v1052
  %2495 = vmatpush.msra.mxu0 %v1048
  %2496 = vmatpush.msra.mxu0 %v1044
  %2497 = vmatpush.msra.mxu0 %v1040
  %2498 = vmatpush.msra.mxu0 %v1036
  %2499 = vmatpush.msra.mxu0 %v1032
  %2500 = vmatpush.msra.mxu0 %v1028
  %2501 = vmatpush.msra.mxu0 %v1024
  %2502 = vmatpush.msra.mxu0 %v1020
  %2503 = vmatpush.msra.mxu0 %v1016
  %2504 = vmatpush.msra.mxu0 %v1012
  %2505 = vmatpush.msra.mxu0 %v1008
  %2506 = vmatpush.msra.mxu0 %v1004
  %2507 = vmatpush.msra.mxu0 %v1000
  %2508 = vmatpush.msra.mxu0 %v996
  %2509 = vmatpush.msra.mxu0 %v992
  %2510 = vmatmul.f32.gmra.mxu0 %v2199
  %v2511 = vpop.f32.mrf.mxu0
  %v2512 = vadd.f32 %v2492, %v2511
  %2513 = vdwg.mxu0
  %v2514 = vadd.f32 %v1053, %v2392
  %v2515 = vadd.f32 %v1054, %v2432
  %v2516 = vadd.f32 %v1055, %v2472
  %v2517 = vadd.f32 %v1056, %v2512
  %v2518 = vxor.u32 %v2514, 2147483648
  %v2519 = vmul.f32 %v2518, 1.442695
  %v2520 = vpow.pop %v2519
  %v2521 = vadd.f32 %v2520, 1.0
  %v2522 = vrcp.pop %v2521
  %v2523 = vmul.f32 %v2521, %v2522
  %v2524 = vsub.f32 1.0, %v2523
  %v2525 = vmul.f32 %v2522, %v2524
  %v2526 = vadd.f32 %v2522, %v2525
  %vm2527 = vweird.f32 %v2521
  %vm2528 = vweird.f32 %v2522
  %vm2529 = vmor %vm2527, %vm2528
  %v2530 = vsel %vm2529, %v2522, %v2526
  %v2531 = vand.u32 2147483647, %v2521
  %vm2532 = vcmp.eq.f32.partialorder %v2531, 8.507059e+37
  %v2533 = vand.u32 %v2521, 2147483648
  %v2534 = vor.u32 1.1754944e-38, %v2533
  %v2535 = vsel %vm2532, %v2534, %v2530
  %v2536 = vmul.f32 1.0, %v2535
  %v2537 = vxor.u32 %v2515, 2147483648
  %v2538 = vmul.f32 %v2537, 1.442695
  %v2539 = vpow.pop %v2538
  %v2540 = vadd.f32 %v2539, 1.0
  %v2541 = vrcp.pop %v2540
  %v2542 = vmul.f32 %v2540, %v2541
  %v2543 = vsub.f32 1.0, %v2542
  %v2544 = vmul.f32 %v2541, %v2543
  %v2545 = vadd.f32 %v2541, %v2544
  %vm2546 = vweird.f32 %v2540
  %vm2547 = vweird.f32 %v2541
  %vm2548 = vmor %vm2546, %vm2547
  %v2549 = vsel %vm2548, %v2541, %v2545
  %v2550 = vand.u32 2147483647, %v2540
  %vm2551 = vcmp.eq.f32.partialorder %v2550, 8.507059e+37
  %v2552 = vand.u32 %v2540, 2147483648
  %v2553 = vor.u32 1.1754944e-38, %v2552
  %v2554 = vsel %vm2551, %v2553, %v2549
  %v2555 = vmul.f32 1.0, %v2554
  %v2556 = vtanh.pop %v2516
  %v2557 = vxor.u32 %v2517, 2147483648
  %v2558 = vmul.f32 %v2557, 1.442695
  %v2559 = vpow.pop %v2558
  %v2560 = vadd.f32 %v2559, 1.0
  %v2561 = vrcp.pop %v2560
  %v2562 = vmul.f32 %v2560, %v2561
  %v2563 = vsub.f32 1.0, %v2562
  %v2564 = vmul.f32 %v2561, %v2563
  %v2565 = vadd.f32 %v2561, %v2564
  %vm2566 = vweird.f32 %v2560
  %vm2567 = vweird.f32 %v2561
  %vm2568 = vmor %vm2566, %vm2567
  %v2569 = vsel %vm2568, %v2561, %v2565
  %v2570 = vand.u32 2147483647, %v2560
  %vm2571 = vcmp.eq.f32.partialorder %v2570, 8.507059e+37
  %v2572 = vand.u32 %v2560, 2147483648
  %v2573 = vor.u32 1.1754944e-38, %v2572
  %v2574 = vsel %vm2571, %v2573, %v2569
  %v2575 = vmul.f32 1.0, %v2574
  %v2576 = vmul.f32 %v2555, %v2197
  %v2577 = vmul.f32 %v2536, %v2556
  %v2578 = vadd.f32 %v2576, %v2577
  %v2579 = vtanh.pop %v2578
  %v2580 = vmul.f32 %v2575, %v2579
  %s2581 = smul.u32 4, 4
  %s2582 = smul.addr %s2581, 8
  %s2583 = scalar_lea.vmem [#allocation2], %s2582
  %v2584 = vld [vmem:[%s2583] sm:$0xff]
  %v2585 = vld [vmem:[%s2583 + $0x8] sm:$0xff]
  %v2586 = vld [vmem:[%s2583 + $0x10] sm:$0xff]
  %v2587 = vld [vmem:[%s2583 + $0x18] sm:$0xff]
  %2588 = vmatpush.msra.mxu0 %v921
  %2589 = vmatpush.msra.mxu0 %v917
  %2590 = vmatpush.msra.mxu0 %v913
  %2591 = vmatpush.msra.mxu0 %v909
  %2592 = vmatpush.msra.mxu0 %v905
  %2593 = vmatpush.msra.mxu0 %v901
  %2594 = vmatpush.msra.mxu0 %v897
  %2595 = vmatpush.msra.mxu0 %v893
  %2596 = vmatpush.msra.mxu0 %v889
  %2597 = vmatpush.msra.mxu0 %v885
  %2598 = vmatpush.msra.mxu0 %v881
  %2599 = vmatpush.msra.mxu0 %v877
  %2600 = vmatpush.msra.mxu0 %v873
  %2601 = vmatpush.msra.mxu0 %v869
  %2602 = vmatpush.msra.mxu0 %v865
  %2603 = vmatpush.msra.mxu0 %v861
  %2604 = vmatmul.f32.gmra.mxu0 %v2353
  %v2605 = vpop.f32.mrf.mxu0
  %v2606 = vadd.f32 0.0, %v2605
  %2607 = vdwg.mxu0
  %2608 = vmatpush.msra.mxu0 %v922
  %2609 = vmatpush.msra.mxu0 %v918
  %2610 = vmatpush.msra.mxu0 %v914
  %2611 = vmatpush.msra.mxu0 %v910
  %2612 = vmatpush.msra.mxu0 %v906
  %2613 = vmatpush.msra.mxu0 %v902
  %2614 = vmatpush.msra.mxu0 %v898
  %2615 = vmatpush.msra.mxu0 %v894
  %2616 = vmatpush.msra.mxu0 %v890
  %2617 = vmatpush.msra.mxu0 %v886
  %2618 = vmatpush.msra.mxu0 %v882
  %2619 = vmatpush.msra.mxu0 %v878
  %2620 = vmatpush.msra.mxu0 %v874
  %2621 = vmatpush.msra.mxu0 %v870
  %2622 = vmatpush.msra.mxu0 %v866
  %2623 = vmatpush.msra.mxu0 %v862
  %2624 = vmatmul.f32.gmra.mxu0 %v2353
  %v2625 = vpop.f32.mrf.mxu0
  %v2626 = vadd.f32 0.0, %v2625
  %2627 = vdwg.mxu0
  %2628 = vmatpush.msra.mxu0 %v923
  %2629 = vmatpush.msra.mxu0 %v919
  %2630 = vmatpush.msra.mxu0 %v915
  %2631 = vmatpush.msra.mxu0 %v911
  %2632 = vmatpush.msra.mxu0 %v907
  %2633 = vmatpush.msra.mxu0 %v903
  %2634 = vmatpush.msra.mxu0 %v899
  %2635 = vmatpush.msra.mxu0 %v895
  %2636 = vmatpush.msra.mxu0 %v891
  %2637 = vmatpush.msra.mxu0 %v887
  %2638 = vmatpush.msra.mxu0 %v883
  %2639 = vmatpush.msra.mxu0 %v879
  %2640 = vmatpush.msra.mxu0 %v875
  %2641 = vmatpush.msra.mxu0 %v871
  %2642 = vmatpush.msra.mxu0 %v867
  %2643 = vmatpush.msra.mxu0 %v863
  %2644 = vmatmul.f32.gmra.mxu0 %v2353
  %v2645 = vpop.f32.mrf.mxu0
  %v2646 = vadd.f32 0.0, %v2645
  %2647 = vdwg.mxu0
  %2648 = vmatpush.msra.mxu0 %v924
  %2649 = vmatpush.msra.mxu0 %v920
  %2650 = vmatpush.msra.mxu0 %v916
  %2651 = vmatpush.msra.mxu0 %v912
  %2652 = vmatpush.msra.mxu0 %v908
  %2653 = vmatpush.msra.mxu0 %v904
  %2654 = vmatpush.msra.mxu0 %v900
  %2655 = vmatpush.msra.mxu0 %v896
  %2656 = vmatpush.msra.mxu0 %v892
  %2657 = vmatpush.msra.mxu0 %v888
  %2658 = vmatpush.msra.mxu0 %v884
  %2659 = vmatpush.msra.mxu0 %v880
  %2660 = vmatpush.msra.mxu0 %v876
  %2661 = vmatpush.msra.mxu0 %v872
  %2662 = vmatpush.msra.mxu0 %v868
  %2663 = vmatpush.msra.mxu0 %v864
  %2664 = vmatmul.f32.gmra.mxu0 %v2353
  %v2665 = vpop.f32.mrf.mxu0
  %v2666 = vadd.f32 0.0, %v2665
  %2667 = vdwg.mxu0
  %v2668 = vadd.f32 %v2584, %v2606
  %v2669 = vadd.f32 %v2585, %v2626
  %v2670 = vadd.f32 %v2586, %v2646
  %v2671 = vadd.f32 %v2587, %v2666
  %v2672 = vxor.u32 %v2668, 2147483648
  %v2673 = vmul.f32 %v2672, 1.442695
  %v2674 = vpow.pop %v2673
  %v2675 = vadd.f32 %v2674, 1.0
  %v2676 = vrcp.pop %v2675
  %v2677 = vmul.f32 %v2675, %v2676
  %v2678 = vsub.f32 1.0, %v2677
  %v2679 = vmul.f32 %v2676, %v2678
  %v2680 = vadd.f32 %v2676, %v2679
  %vm2681 = vweird.f32 %v2675
  %vm2682 = vweird.f32 %v2676
  %vm2683 = vmor %vm2681, %vm2682
  %v2684 = vsel %vm2683, %v2676, %v2680
  %v2685 = vand.u32 2147483647, %v2675
  %vm2686 = vcmp.eq.f32.partialorder %v2685, 8.507059e+37
  %v2687 = vand.u32 %v2675, 2147483648
  %v2688 = vor.u32 1.1754944e-38, %v2687
  %v2689 = vsel %vm2686, %v2688, %v2684
  %v2690 = vmul.f32 1.0, %v2689
  %v2691 = vxor.u32 %v2669, 2147483648
  %v2692 = vmul.f32 %v2691, 1.442695
  %v2693 = vpow.pop %v2692
  %v2694 = vadd.f32 %v2693, 1.0
  %v2695 = vrcp.pop %v2694
  %v2696 = vmul.f32 %v2694, %v2695
  %v2697 = vsub.f32 1.0, %v2696
  %v2698 = vmul.f32 %v2695, %v2697
  %v2699 = vadd.f32 %v2695, %v2698
  %vm2700 = vweird.f32 %v2694
  %vm2701 = vweird.f32 %v2695
  %vm2702 = vmor %vm2700, %vm2701
  %v2703 = vsel %vm2702, %v2695, %v2699
  %v2704 = vand.u32 2147483647, %v2694
  %vm2705 = vcmp.eq.f32.partialorder %v2704, 8.507059e+37
  %v2706 = vand.u32 %v2694, 2147483648
  %v2707 = vor.u32 1.1754944e-38, %v2706
  %v2708 = vsel %vm2705, %v2707, %v2703
  %v2709 = vmul.f32 1.0, %v2708
  %v2710 = vtanh.pop %v2670
  %v2711 = vxor.u32 %v2671, 2147483648
  %v2712 = vmul.f32 %v2711, 1.442695
  %v2713 = vpow.pop %v2712
  %v2714 = vadd.f32 %v2713, 1.0
  %v2715 = vrcp.pop %v2714
  %v2716 = vmul.f32 %v2714, %v2715
  %v2717 = vsub.f32 1.0, %v2716
  %v2718 = vmul.f32 %v2715, %v2717
  %v2719 = vadd.f32 %v2715, %v2718
  %vm2720 = vweird.f32 %v2714
  %vm2721 = vweird.f32 %v2715
  %vm2722 = vmor %vm2720, %vm2721
  %v2723 = vsel %vm2722, %v2715, %v2719
  %v2724 = vand.u32 2147483647, %v2714
  %vm2725 = vcmp.eq.f32.partialorder %v2724, 8.507059e+37
  %v2726 = vand.u32 %v2714, 2147483648
  %v2727 = vor.u32 1.1754944e-38, %v2726
  %v2728 = vsel %vm2725, %v2727, %v2723
  %v2729 = vmul.f32 1.0, %v2728
  %v2730 = vmul.f32 %v2709, %v2351
  %v2731 = vmul.f32 %v2690, %v2710
  %v2732 = vadd.f32 %v2730, %v2731
  %v2733 = vtanh.pop %v2732
  %v2734 = vmul.f32 %v2729, %v2733
  %2735 = vmatpush.msra.mxu0 %v985
  %2736 = vmatpush.msra.mxu0 %v981
  %2737 = vmatpush.msra.mxu0 %v977
  %2738 = vmatpush.msra.mxu0 %v973
  %2739 = vmatpush.msra.mxu0 %v969
  %2740 = vmatpush.msra.mxu0 %v965
  %2741 = vmatpush.msra.mxu0 %v961
  %2742 = vmatpush.msra.mxu0 %v957
  %2743 = vmatpush.msra.mxu0 %v953
  %2744 = vmatpush.msra.mxu0 %v949
  %2745 = vmatpush.msra.mxu0 %v945
  %2746 = vmatpush.msra.mxu0 %v941
  %2747 = vmatpush.msra.mxu0 %v937
  %2748 = vmatpush.msra.mxu0 %v933
  %2749 = vmatpush.msra.mxu0 %v929
  %2750 = vmatpush.msra.mxu0 %v925
  %2751 = vmatmul.f32.gmra.mxu0 %v2734
  %v2752 = vpop.f32.mrf.mxu0
  %v2753 = vadd.f32 0.0, %v2752
  %2754 = vdwg.mxu0
  %2755 = vmatpush.msra.mxu0 %v1049
  %2756 = vmatpush.msra.mxu0 %v1045
  %2757 = vmatpush.msra.mxu0 %v1041
  %2758 = vmatpush.msra.mxu0 %v1037
  %2759 = vmatpush.msra.mxu0 %v1033
  %2760 = vmatpush.msra.mxu0 %v1029
  %2761 = vmatpush.msra.mxu0 %v1025
  %2762 = vmatpush.msra.mxu0 %v1021
  %2763 = vmatpush.msra.mxu0 %v1017
  %2764 = vmatpush.msra.mxu0 %v1013
  %2765 = vmatpush.msra.mxu0 %v1009
  %2766 = vmatpush.msra.mxu0 %v1005
  %2767 = vmatpush.msra.mxu0 %v1001
  %2768 = vmatpush.msra.mxu0 %v997
  %2769 = vmatpush.msra.mxu0 %v993
  %2770 = vmatpush.msra.mxu0 %v989
  %2771 = vmatmul.f32.gmra.mxu0 %v2580
  %v2772 = vpop.f32.mrf.mxu0
  %v2773 = vadd.f32 %v2753, %v2772
  %2774 = vdwg.mxu0
  %2775 = vmatpush.msra.mxu0 %v986
  %2776 = vmatpush.msra.mxu0 %v982
  %2777 = vmatpush.msra.mxu0 %v978
  %2778 = vmatpush.msra.mxu0 %v974
  %2779 = vmatpush.msra.mxu0 %v970
  %2780 = vmatpush.msra.mxu0 %v966
  %2781 = vmatpush.msra.mxu0 %v962
  %2782 = vmatpush.msra.mxu0 %v958
  %2783 = vmatpush.msra.mxu0 %v954
  %2784 = vmatpush.msra.mxu0 %v950
  %2785 = vmatpush.msra.mxu0 %v946
  %2786 = vmatpush.msra.mxu0 %v942
  %2787 = vmatpush.msra.mxu0 %v938
  %2788 = vmatpush.msra.mxu0 %v934
  %2789 = vmatpush.msra.mxu0 %v930
  %2790 = vmatpush.msra.mxu0 %v926
  %2791 = vmatmul.f32.gmra.mxu0 %v2734
  %v2792 = vpop.f32.mrf.mxu0
  %v2793 = vadd.f32 0.0, %v2792
  %2794 = vdwg.mxu0
  %2795 = vmatpush.msra.mxu0 %v1050
  %2796 = vmatpush.msra.mxu0 %v1046
  %2797 = vmatpush.msra.mxu0 %v1042
  %2798 = vmatpush.msra.mxu0 %v1038
  %2799 = vmatpush.msra.mxu0 %v1034
  %2800 = vmatpush.msra.mxu0 %v1030
  %2801 = vmatpush.msra.mxu0 %v1026
  %2802 = vmatpush.msra.mxu0 %v1022
  %2803 = vmatpush.msra.mxu0 %v1018
  %2804 = vmatpush.msra.mxu0 %v1014
  %2805 = vmatpush.msra.mxu0 %v1010
  %2806 = vmatpush.msra.mxu0 %v1006
  %2807 = vmatpush.msra.mxu0 %v1002
  %2808 = vmatpush.msra.mxu0 %v998
  %2809 = vmatpush.msra.mxu0 %v994
  %2810 = vmatpush.msra.mxu0 %v990
  %2811 = vmatmul.f32.gmra.mxu0 %v2580
  %v2812 = vpop.f32.mrf.mxu0
  %v2813 = vadd.f32 %v2793, %v2812
  %2814 = vdwg.mxu0
  %2815 = vmatpush.msra.mxu0 %v987
  %2816 = vmatpush.msra.mxu0 %v983
  %2817 = vmatpush.msra.mxu0 %v979
  %2818 = vmatpush.msra.mxu0 %v975
  %2819 = vmatpush.msra.mxu0 %v971
  %2820 = vmatpush.msra.mxu0 %v967
  %2821 = vmatpush.msra.mxu0 %v963
  %2822 = vmatpush.msra.mxu0 %v959
  %2823 = vmatpush.msra.mxu0 %v955
  %2824 = vmatpush.msra.mxu0 %v951
  %2825 = vmatpush.msra.mxu0 %v947
  %2826 = vmatpush.msra.mxu0 %v943
  %2827 = vmatpush.msra.mxu0 %v939
  %2828 = vmatpush.msra.mxu0 %v935
  %2829 = vmatpush.msra.mxu0 %v931
  %2830 = vmatpush.msra.mxu0 %v927
  %2831 = vmatmul.f32.gmra.mxu0 %v2734
  %v2832 = vpop.f32.mrf.mxu0
  %v2833 = vadd.f32 0.0, %v2832
  %2834 = vdwg.mxu0
  %2835 = vmatpush.msra.mxu0 %v1051
  %2836 = vmatpush.msra.mxu0 %v1047
  %2837 = vmatpush.msra.mxu0 %v1043
  %2838 = vmatpush.msra.mxu0 %v1039
  %2839 = vmatpush.msra.mxu0 %v1035
  %2840 = vmatpush.msra.mxu0 %v1031
  %2841 = vmatpush.msra.mxu0 %v1027
  %2842 = vmatpush.msra.mxu0 %v1023
  %2843 = vmatpush.msra.mxu0 %v1019
  %2844 = vmatpush.msra.mxu0 %v1015
  %2845 = vmatpush.msra.mxu0 %v1011
  %2846 = vmatpush.msra.mxu0 %v1007
  %2847 = vmatpush.msra.mxu0 %v1003
  %2848 = vmatpush.msra.mxu0 %v999
  %2849 = vmatpush.msra.mxu0 %v995
  %2850 = vmatpush.msra.mxu0 %v991
  %2851 = vmatmul.f32.gmra.mxu0 %v2580
  %v2852 = vpop.f32.mrf.mxu0
  %v2853 = vadd.f32 %v2833, %v2852
  %2854 = vdwg.mxu0
  %2855 = vmatpush.msra.mxu0 %v988
  %2856 = vmatpush.msra.mxu0 %v984
  %2857 = vmatpush.msra.mxu0 %v980
  %2858 = vmatpush.msra.mxu0 %v976
  %2859 = vmatpush.msra.mxu0 %v972
  %2860 = vmatpush.msra.mxu0 %v968
  %2861 = vmatpush.msra.mxu0 %v964
  %2862 = vmatpush.msra.mxu0 %v960
  %2863 = vmatpush.msra.mxu0 %v956
  %2864 = vmatpush.msra.mxu0 %v952
  %2865 = vmatpush.msra.mxu0 %v948
  %2866 = vmatpush.msra.mxu0 %v944
  %2867 = vmatpush.msra.mxu0 %v940
  %2868 = vmatpush.msra.mxu0 %v936
  %2869 = vmatpush.msra.mxu0 %v932
  %2870 = vmatpush.msra.mxu0 %v928
  %2871 = vmatmul.f32.gmra.mxu0 %v2734
  %v2872 = vpop.f32.mrf.mxu0
  %v2873 = vadd.f32 0.0, %v2872
  %2874 = vdwg.mxu0
  %2875 = vmatpush.msra.mxu0 %v1052
  %2876 = vmatpush.msra.mxu0 %v1048
  %2877 = vmatpush.msra.mxu0 %v1044
  %2878 = vmatpush.msra.mxu0 %v1040
  %2879 = vmatpush.msra.mxu0 %v1036
  %2880 = vmatpush.msra.mxu0 %v1032
  %2881 = vmatpush.msra.mxu0 %v1028
  %2882 = vmatpush.msra.mxu0 %v1024
  %2883 = vmatpush.msra.mxu0 %v1020
  %2884 = vmatpush.msra.mxu0 %v1016
  %2885 = vmatpush.msra.mxu0 %v1012
  %2886 = vmatpush.msra.mxu0 %v1008
  %2887 = vmatpush.msra.mxu0 %v1004
  %2888 = vmatpush.msra.mxu0 %v1000
  %2889 = vmatpush.msra.mxu0 %v996
  %2890 = vmatpush.msra.mxu0 %v992
  %2891 = vmatmul.f32.gmra.mxu0 %v2580
  %v2892 = vpop.f32.mrf.mxu0
  %v2893 = vadd.f32 %v2873, %v2892
  %2894 = vdwg.mxu0
  %v2895 = vadd.f32 %v1053, %v2773
  %v2896 = vadd.f32 %v1054, %v2813
  %v2897 = vadd.f32 %v1055, %v2853
  %v2898 = vadd.f32 %v1056, %v2893
  %v2899 = vxor.u32 %v2895, 2147483648
  %v2900 = vmul.f32 %v2899, 1.442695
  %v2901 = vpow.pop %v2900
  %v2902 = vadd.f32 %v2901, 1.0
  %v2903 = vrcp.pop %v2902
  %v2904 = vmul.f32 %v2902, %v2903
  %v2905 = vsub.f32 1.0, %v2904
  %v2906 = vmul.f32 %v2903, %v2905
  %v2907 = vadd.f32 %v2903, %v2906
  %vm2908 = vweird.f32 %v2902
  %vm2909 = vweird.f32 %v2903
  %vm2910 = vmor %vm2908, %vm2909
  %v2911 = vsel %vm2910, %v2903, %v2907
  %v2912 = vand.u32 2147483647, %v2902
  %vm2913 = vcmp.eq.f32.partialorder %v2912, 8.507059e+37
  %v2914 = vand.u32 %v2902, 2147483648
  %v2915 = vor.u32 1.1754944e-38, %v2914
  %v2916 = vsel %vm2913, %v2915, %v2911
  %v2917 = vmul.f32 1.0, %v2916
  %v2918 = vxor.u32 %v2896, 2147483648
  %v2919 = vmul.f32 %v2918, 1.442695
  %v2920 = vpow.pop %v2919
  %v2921 = vadd.f32 %v2920, 1.0
  %v2922 = vrcp.pop %v2921
  %v2923 = vmul.f32 %v2921, %v2922
  %v2924 = vsub.f32 1.0, %v2923
  %v2925 = vmul.f32 %v2922, %v2924
  %v2926 = vadd.f32 %v2922, %v2925
  %vm2927 = vweird.f32 %v2921
  %vm2928 = vweird.f32 %v2922
  %vm2929 = vmor %vm2927, %vm2928
  %v2930 = vsel %vm2929, %v2922, %v2926
  %v2931 = vand.u32 2147483647, %v2921
  %vm2932 = vcmp.eq.f32.partialorder %v2931, 8.507059e+37
  %v2933 = vand.u32 %v2921, 2147483648
  %v2934 = vor.u32 1.1754944e-38, %v2933
  %v2935 = vsel %vm2932, %v2934, %v2930
  %v2936 = vmul.f32 1.0, %v2935
  %v2937 = vtanh.pop %v2897
  %v2938 = vxor.u32 %v2898, 2147483648
  %v2939 = vmul.f32 %v2938, 1.442695
  %v2940 = vpow.pop %v2939
  %v2941 = vadd.f32 %v2940, 1.0
  %v2942 = vrcp.pop %v2941
  %v2943 = vmul.f32 %v2941, %v2942
  %v2944 = vsub.f32 1.0, %v2943
  %v2945 = vmul.f32 %v2942, %v2944
  %v2946 = vadd.f32 %v2942, %v2945
  %vm2947 = vweird.f32 %v2941
  %vm2948 = vweird.f32 %v2942
  %vm2949 = vmor %vm2947, %vm2948
  %v2950 = vsel %vm2949, %v2942, %v2946
  %v2951 = vand.u32 2147483647, %v2941
  %vm2952 = vcmp.eq.f32.partialorder %v2951, 8.507059e+37
  %v2953 = vand.u32 %v2941, 2147483648
  %v2954 = vor.u32 1.1754944e-38, %v2953
  %v2955 = vsel %vm2952, %v2954, %v2950
  %v2956 = vmul.f32 1.0, %v2955
  %v2957 = vmul.f32 %v2936, %v2578
  %v2958 = vmul.f32 %v2917, %v2937
  %v2959 = vadd.f32 %v2957, %v2958
  %v2960 = vtanh.pop %v2959
  %v2961 = vmul.f32 %v2956, %v2960
  %s2962 = smul.u32 5, 4
  %s2963 = smul.addr %s2962, 8
  %s2964 = scalar_lea.vmem [#allocation2], %s2963
  %v2965 = vld [vmem:[%s2964] sm:$0xff]
  %v2966 = vld [vmem:[%s2964 + $0x8] sm:$0xff]
  %v2967 = vld [vmem:[%s2964 + $0x10] sm:$0xff]
  %v2968 = vld [vmem:[%s2964 + $0x18] sm:$0xff]
  %2969 = vmatpush.msra.mxu0 %v921
  %2970 = vmatpush.msra.mxu0 %v917
  %2971 = vmatpush.msra.mxu0 %v913
  %2972 = vmatpush.msra.mxu0 %v909
  %2973 = vmatpush.msra.mxu0 %v905
  %2974 = vmatpush.msra.mxu0 %v901
  %2975 = vmatpush.msra.mxu0 %v897
  %2976 = vmatpush.msra.mxu0 %v893
  %2977 = vmatpush.msra.mxu0 %v889
  %2978 = vmatpush.msra.mxu0 %v885
  %2979 = vmatpush.msra.mxu0 %v881
  %2980 = vmatpush.msra.mxu0 %v877
  %2981 = vmatpush.msra.mxu0 %v873
  %2982 = vmatpush.msra.mxu0 %v869
  %2983 = vmatpush.msra.mxu0 %v865
  %2984 = vmatpush.msra.mxu0 %v861
  %2985 = vmatmul.f32.gmra.mxu0 %v2734
  %v2986 = vpop.f32.mrf.mxu0
  %v2987 = vadd.f32 0.0, %v2986
  %2988 = vdwg.mxu0
  %2989 = vmatpush.msra.mxu0 %v922
  %2990 = vmatpush.msra.mxu0 %v918
  %2991 = vmatpush.msra.mxu0 %v914
  %2992 = vmatpush.msra.mxu0 %v910
  %2993 = vmatpush.msra.mxu0 %v906
  %2994 = vmatpush.msra.mxu0 %v902
  %2995 = vmatpush.msra.mxu0 %v898
  %2996 = vmatpush.msra.mxu0 %v894
  %2997 = vmatpush.msra.mxu0 %v890
  %2998 = vmatpush.msra.mxu0 %v886
  %2999 = vmatpush.msra.mxu0 %v882
  %3000 = vmatpush.msra.mxu0 %v878
  %3001 = vmatpush.msra.mxu0 %v874
  %3002 = vmatpush.msra.mxu0 %v870
  %3003 = vmatpush.msra.mxu0 %v866
  %3004 = vmatpush.msra.mxu0 %v862
  %3005 = vmatmul.f32.gmra.mxu0 %v2734
  %v3006 = vpop.f32.mrf.mxu0
  %v3007 = vadd.f32 0.0, %v3006
  %3008 = vdwg.mxu0
  %3009 = vmatpush.msra.mxu0 %v923
  %3010 = vmatpush.msra.mxu0 %v919
  %3011 = vmatpush.msra.mxu0 %v915
  %3012 = vmatpush.msra.mxu0 %v911
  %3013 = vmatpush.msra.mxu0 %v907
  %3014 = vmatpush.msra.mxu0 %v903
  %3015 = vmatpush.msra.mxu0 %v899
  %3016 = vmatpush.msra.mxu0 %v895
  %3017 = vmatpush.msra.mxu0 %v891
  %3018 = vmatpush.msra.mxu0 %v887
  %3019 = vmatpush.msra.mxu0 %v883
  %3020 = vmatpush.msra.mxu0 %v879
  %3021 = vmatpush.msra.mxu0 %v875
  %3022 = vmatpush.msra.mxu0 %v871
  %3023 = vmatpush.msra.mxu0 %v867
  %3024 = vmatpush.msra.mxu0 %v863
  %3025 = vmatmul.f32.gmra.mxu0 %v2734
  %v3026 = vpop.f32.mrf.mxu0
  %v3027 = vadd.f32 0.0, %v3026
  %3028 = vdwg.mxu0
  %3029 = vmatpush.msra.mxu0 %v924
  %3030 = vmatpush.msra.mxu0 %v920
  %3031 = vmatpush.msra.mxu0 %v916
  %3032 = vmatpush.msra.mxu0 %v912
  %3033 = vmatpush.msra.mxu0 %v908
  %3034 = vmatpush.msra.mxu0 %v904
  %3035 = vmatpush.msra.mxu0 %v900
  %3036 = vmatpush.msra.mxu0 %v896
  %3037 = vmatpush.msra.mxu0 %v892
  %3038 = vmatpush.msra.mxu0 %v888
  %3039 = vmatpush.msra.mxu0 %v884
  %3040 = vmatpush.msra.mxu0 %v880
  %3041 = vmatpush.msra.mxu0 %v876
  %3042 = vmatpush.msra.mxu0 %v872
  %3043 = vmatpush.msra.mxu0 %v868
  %3044 = vmatpush.msra.mxu0 %v864
  %3045 = vmatmul.f32.gmra.mxu0 %v2734
  %v3046 = vpop.f32.mrf.mxu0
  %v3047 = vadd.f32 0.0, %v3046
  %3048 = vdwg.mxu0
  %v3049 = vadd.f32 %v2965, %v2987
  %v3050 = vadd.f32 %v2966, %v3007
  %v3051 = vadd.f32 %v2967, %v3027
  %v3052 = vadd.f32 %v2968, %v3047
  %v3053 = vxor.u32 %v3049, 2147483648
  %v3054 = vmul.f32 %v3053, 1.442695
  %v3055 = vpow.pop %v3054
  %v3056 = vadd.f32 %v3055, 1.0
  %v3057 = vrcp.pop %v3056
  %v3058 = vmul.f32 %v3056, %v3057
  %v3059 = vsub.f32 1.0, %v3058
  %v3060 = vmul.f32 %v3057, %v3059
  %v3061 = vadd.f32 %v3057, %v3060
  %vm3062 = vweird.f32 %v3056
  %vm3063 = vweird.f32 %v3057
  %vm3064 = vmor %vm3062, %vm3063
  %v3065 = vsel %vm3064, %v3057, %v3061
  %v3066 = vand.u32 2147483647, %v3056
  %vm3067 = vcmp.eq.f32.partialorder %v3066, 8.507059e+37
  %v3068 = vand.u32 %v3056, 2147483648
  %v3069 = vor.u32 1.1754944e-38, %v3068
  %v3070 = vsel %vm3067, %v3069, %v3065
  %v3071 = vmul.f32 1.0, %v3070
  %v3072 = vxor.u32 %v3050, 2147483648
  %v3073 = vmul.f32 %v3072, 1.442695
  %v3074 = vpow.pop %v3073
  %v3075 = vadd.f32 %v3074, 1.0
  %v3076 = vrcp.pop %v3075
  %v3077 = vmul.f32 %v3075, %v3076
  %v3078 = vsub.f32 1.0, %v3077
  %v3079 = vmul.f32 %v3076, %v3078
  %v3080 = vadd.f32 %v3076, %v3079
  %vm3081 = vweird.f32 %v3075
  %vm3082 = vweird.f32 %v3076
  %vm3083 = vmor %vm3081, %vm3082
  %v3084 = vsel %vm3083, %v3076, %v3080
  %v3085 = vand.u32 2147483647, %v3075
  %vm3086 = vcmp.eq.f32.partialorder %v3085, 8.507059e+37
  %v3087 = vand.u32 %v3075, 2147483648
  %v3088 = vor.u32 1.1754944e-38, %v3087
  %v3089 = vsel %vm3086, %v3088, %v3084
  %v3090 = vmul.f32 1.0, %v3089
  %v3091 = vtanh.pop %v3051
  %v3092 = vxor.u32 %v3052, 2147483648
  %v3093 = vmul.f32 %v3092, 1.442695
  %v3094 = vpow.pop %v3093
  %v3095 = vadd.f32 %v3094, 1.0
  %v3096 = vrcp.pop %v3095
  %v3097 = vmul.f32 %v3095, %v3096
  %v3098 = vsub.f32 1.0, %v3097
  %v3099 = vmul.f32 %v3096, %v3098
  %v3100 = vadd.f32 %v3096, %v3099
  %vm3101 = vweird.f32 %v3095
  %vm3102 = vweird.f32 %v3096
  %vm3103 = vmor %vm3101, %vm3102
  %v3104 = vsel %vm3103, %v3096, %v3100
  %v3105 = vand.u32 2147483647, %v3095
  %vm3106 = vcmp.eq.f32.partialorder %v3105, 8.507059e+37
  %v3107 = vand.u32 %v3095, 2147483648
  %v3108 = vor.u32 1.1754944e-38, %v3107
  %v3109 = vsel %vm3106, %v3108, %v3104
  %v3110 = vmul.f32 1.0, %v3109
  %v3111 = vmul.f32 %v3090, %v2732
  %v3112 = vmul.f32 %v3071, %v3091
  %v3113 = vadd.f32 %v3111, %v3112
  %v3114 = vtanh.pop %v3113
  %v3115 = vmul.f32 %v3110, %v3114
  %3116 = vmatpush.msra.mxu0 %v985
  %3117 = vmatpush.msra.mxu0 %v981
  %3118 = vmatpush.msra.mxu0 %v977
  %3119 = vmatpush.msra.mxu0 %v973
  %3120 = vmatpush.msra.mxu0 %v969
  %3121 = vmatpush.msra.mxu0 %v965
  %3122 = vmatpush.msra.mxu0 %v961
  %3123 = vmatpush.msra.mxu0 %v957
  %3124 = vmatpush.msra.mxu0 %v953
  %3125 = vmatpush.msra.mxu0 %v949
  %3126 = vmatpush.msra.mxu0 %v945
  %3127 = vmatpush.msra.mxu0 %v941
  %3128 = vmatpush.msra.mxu0 %v937
  %3129 = vmatpush.msra.mxu0 %v933
  %3130 = vmatpush.msra.mxu0 %v929
  %3131 = vmatpush.msra.mxu0 %v925
  %3132 = vmatmul.f32.gmra.mxu0 %v3115
  %v3133 = vpop.f32.mrf.mxu0
  %v3134 = vadd.f32 0.0, %v3133
  %3135 = vdwg.mxu0
  %3136 = vmatpush.msra.mxu0 %v1049
  %3137 = vmatpush.msra.mxu0 %v1045
  %3138 = vmatpush.msra.mxu0 %v1041
  %3139 = vmatpush.msra.mxu0 %v1037
  %3140 = vmatpush.msra.mxu0 %v1033
  %3141 = vmatpush.msra.mxu0 %v1029
  %3142 = vmatpush.msra.mxu0 %v1025
  %3143 = vmatpush.msra.mxu0 %v1021
  %3144 = vmatpush.msra.mxu0 %v1017
  %3145 = vmatpush.msra.mxu0 %v1013
  %3146 = vmatpush.msra.mxu0 %v1009
  %3147 = vmatpush.msra.mxu0 %v1005
  %3148 = vmatpush.msra.mxu0 %v1001
  %3149 = vmatpush.msra.mxu0 %v997
  %3150 = vmatpush.msra.mxu0 %v993
  %3151 = vmatpush.msra.mxu0 %v989
  %3152 = vmatmul.f32.gmra.mxu0 %v2961
  %v3153 = vpop.f32.mrf.mxu0
  %v3154 = vadd.f32 %v3134, %v3153
  %3155 = vdwg.mxu0
  %3156 = vmatpush.msra.mxu0 %v986
  %3157 = vmatpush.msra.mxu0 %v982
  %3158 = vmatpush.msra.mxu0 %v978
  %3159 = vmatpush.msra.mxu0 %v974
  %3160 = vmatpush.msra.mxu0 %v970
  %3161 = vmatpush.msra.mxu0 %v966
  %3162 = vmatpush.msra.mxu0 %v962
  %3163 = vmatpush.msra.mxu0 %v958
  %3164 = vmatpush.msra.mxu0 %v954
  %3165 = vmatpush.msra.mxu0 %v950
  %3166 = vmatpush.msra.mxu0 %v946
  %3167 = vmatpush.msra.mxu0 %v942
  %3168 = vmatpush.msra.mxu0 %v938
  %3169 = vmatpush.msra.mxu0 %v934
  %3170 = vmatpush.msra.mxu0 %v930
  %3171 = vmatpush.msra.mxu0 %v926
  %3172 = vmatmul.f32.gmra.mxu0 %v3115
  %v3173 = vpop.f32.mrf.mxu0
  %v3174 = vadd.f32 0.0, %v3173
  %3175 = vdwg.mxu0
  %3176 = vmatpush.msra.mxu0 %v1050
  %3177 = vmatpush.msra.mxu0 %v1046
  %3178 = vmatpush.msra.mxu0 %v1042
  %3179 = vmatpush.msra.mxu0 %v1038
  %3180 = vmatpush.msra.mxu0 %v1034
  %3181 = vmatpush.msra.mxu0 %v1030
  %3182 = vmatpush.msra.mxu0 %v1026
  %3183 = vmatpush.msra.mxu0 %v1022
  %3184 = vmatpush.msra.mxu0 %v1018
  %3185 = vmatpush.msra.mxu0 %v1014
  %3186 = vmatpush.msra.mxu0 %v1010
  %3187 = vmatpush.msra.mxu0 %v1006
  %3188 = vmatpush.msra.mxu0 %v1002
  %3189 = vmatpush.msra.mxu0 %v998
  %3190 = vmatpush.msra.mxu0 %v994
  %3191 = vmatpush.msra.mxu0 %v990
  %3192 = vmatmul.f32.gmra.mxu0 %v2961
  %v3193 = vpop.f32.mrf.mxu0
  %v3194 = vadd.f32 %v3174, %v3193
  %3195 = vdwg.mxu0
  %3196 = vmatpush.msra.mxu0 %v987
  %3197 = vmatpush.msra.mxu0 %v983
  %3198 = vmatpush.msra.mxu0 %v979
  %3199 = vmatpush.msra.mxu0 %v975
  %3200 = vmatpush.msra.mxu0 %v971
  %3201 = vmatpush.msra.mxu0 %v967
  %3202 = vmatpush.msra.mxu0 %v963
  %3203 = vmatpush.msra.mxu0 %v959
  %3204 = vmatpush.msra.mxu0 %v955
  %3205 = vmatpush.msra.mxu0 %v951
  %3206 = vmatpush.msra.mxu0 %v947
  %3207 = vmatpush.msra.mxu0 %v943
  %3208 = vmatpush.msra.mxu0 %v939
  %3209 = vmatpush.msra.mxu0 %v935
  %3210 = vmatpush.msra.mxu0 %v931
  %3211 = vmatpush.msra.mxu0 %v927
  %3212 = vmatmul.f32.gmra.mxu0 %v3115
  %v3213 = vpop.f32.mrf.mxu0
  %v3214 = vadd.f32 0.0, %v3213
  %3215 = vdwg.mxu0
  %3216 = vmatpush.msra.mxu0 %v1051
  %3217 = vmatpush.msra.mxu0 %v1047
  %3218 = vmatpush.msra.mxu0 %v1043
  %3219 = vmatpush.msra.mxu0 %v1039
  %3220 = vmatpush.msra.mxu0 %v1035
  %3221 = vmatpush.msra.mxu0 %v1031
  %3222 = vmatpush.msra.mxu0 %v1027
  %3223 = vmatpush.msra.mxu0 %v1023
  %3224 = vmatpush.msra.mxu0 %v1019
  %3225 = vmatpush.msra.mxu0 %v1015
  %3226 = vmatpush.msra.mxu0 %v1011
  %3227 = vmatpush.msra.mxu0 %v1007
  %3228 = vmatpush.msra.mxu0 %v1003
  %3229 = vmatpush.msra.mxu0 %v999
  %3230 = vmatpush.msra.mxu0 %v995
  %3231 = vmatpush.msra.mxu0 %v991
  %3232 = vmatmul.f32.gmra.mxu0 %v2961
  %v3233 = vpop.f32.mrf.mxu0
  %v3234 = vadd.f32 %v3214, %v3233
  %3235 = vdwg.mxu0
  %3236 = vmatpush.msra.mxu0 %v988
  %3237 = vmatpush.msra.mxu0 %v984
  %3238 = vmatpush.msra.mxu0 %v980
  %3239 = vmatpush.msra.mxu0 %v976
  %3240 = vmatpush.msra.mxu0 %v972
  %3241 = vmatpush.msra.mxu0 %v968
  %3242 = vmatpush.msra.mxu0 %v964
  %3243 = vmatpush.msra.mxu0 %v960
  %3244 = vmatpush.msra.mxu0 %v956
  %3245 = vmatpush.msra.mxu0 %v952
  %3246 = vmatpush.msra.mxu0 %v948
  %3247 = vmatpush.msra.mxu0 %v944
  %3248 = vmatpush.msra.mxu0 %v940
  %3249 = vmatpush.msra.mxu0 %v936
  %3250 = vmatpush.msra.mxu0 %v932
  %3251 = vmatpush.msra.mxu0 %v928
  %3252 = vmatmul.f32.gmra.mxu0 %v3115
  %v3253 = vpop.f32.mrf.mxu0
  %v3254 = vadd.f32 0.0, %v3253
  %3255 = vdwg.mxu0
  %3256 = vmatpush.msra.mxu0 %v1052
  %3257 = vmatpush.msra.mxu0 %v1048
  %3258 = vmatpush.msra.mxu0 %v1044
  %3259 = vmatpush.msra.mxu0 %v1040
  %3260 = vmatpush.msra.mxu0 %v1036
  %3261 = vmatpush.msra.mxu0 %v1032
  %3262 = vmatpush.msra.mxu0 %v1028
  %3263 = vmatpush.msra.mxu0 %v1024
  %3264 = vmatpush.msra.mxu0 %v1020
  %3265 = vmatpush.msra.mxu0 %v1016
  %3266 = vmatpush.msra.mxu0 %v1012
  %3267 = vmatpush.msra.mxu0 %v1008
  %3268 = vmatpush.msra.mxu0 %v1004
  %3269 = vmatpush.msra.mxu0 %v1000
  %3270 = vmatpush.msra.mxu0 %v996
  %3271 = vmatpush.msra.mxu0 %v992
  %3272 = vmatmul.f32.gmra.mxu0 %v2961
  %v3273 = vpop.f32.mrf.mxu0
  %v3274 = vadd.f32 %v3254, %v3273
  %3275 = vdwg.mxu0
  %v3276 = vadd.f32 %v1053, %v3154
  %v3277 = vadd.f32 %v1054, %v3194
  %v3278 = vadd.f32 %v1055, %v3234
  %v3279 = vadd.f32 %v1056, %v3274
  %v3280 = vxor.u32 %v3276, 2147483648
  %v3281 = vmul.f32 %v3280, 1.442695
  %v3282 = vpow.pop %v3281
  %v3283 = vadd.f32 %v3282, 1.0
  %v3284 = vrcp.pop %v3283
  %v3285 = vmul.f32 %v3283, %v3284
  %v3286 = vsub.f32 1.0, %v3285
  %v3287 = vmul.f32 %v3284, %v3286
  %v3288 = vadd.f32 %v3284, %v3287
  %vm3289 = vweird.f32 %v3283
  %vm3290 = vweird.f32 %v3284
  %vm3291 = vmor %vm3289, %vm3290
  %v3292 = vsel %vm3291, %v3284, %v3288
  %v3293 = vand.u32 2147483647, %v3283
  %vm3294 = vcmp.eq.f32.partialorder %v3293, 8.507059e+37
  %v3295 = vand.u32 %v3283, 2147483648
  %v3296 = vor.u32 1.1754944e-38, %v3295
  %v3297 = vsel %vm3294, %v3296, %v3292
  %v3298 = vmul.f32 1.0, %v3297
  %v3299 = vxor.u32 %v3277, 2147483648
  %v3300 = vmul.f32 %v3299, 1.442695
  %v3301 = vpow.pop %v3300
  %v3302 = vadd.f32 %v3301, 1.0
  %v3303 = vrcp.pop %v3302
  %v3304 = vmul.f32 %v3302, %v3303
  %v3305 = vsub.f32 1.0, %v3304
  %v3306 = vmul.f32 %v3303, %v3305
  %v3307 = vadd.f32 %v3303, %v3306
  %vm3308 = vweird.f32 %v3302
  %vm3309 = vweird.f32 %v3303
  %vm3310 = vmor %vm3308, %vm3309
  %v3311 = vsel %vm3310, %v3303, %v3307
  %v3312 = vand.u32 2147483647, %v3302
  %vm3313 = vcmp.eq.f32.partialorder %v3312, 8.507059e+37
  %v3314 = vand.u32 %v3302, 2147483648
  %v3315 = vor.u32 1.1754944e-38, %v3314
  %v3316 = vsel %vm3313, %v3315, %v3311
  %v3317 = vmul.f32 1.0, %v3316
  %v3318 = vtanh.pop %v3278
  %v3319 = vxor.u32 %v3279, 2147483648
  %v3320 = vmul.f32 %v3319, 1.442695
  %v3321 = vpow.pop %v3320
  %v3322 = vadd.f32 %v3321, 1.0
  %v3323 = vrcp.pop %v3322
  %v3324 = vmul.f32 %v3322, %v3323
  %v3325 = vsub.f32 1.0, %v3324
  %v3326 = vmul.f32 %v3323, %v3325
  %v3327 = vadd.f32 %v3323, %v3326
  %vm3328 = vweird.f32 %v3322
  %vm3329 = vweird.f32 %v3323
  %vm3330 = vmor %vm3328, %vm3329
  %v3331 = vsel %vm3330, %v3323, %v3327
  %v3332 = vand.u32 2147483647, %v3322
  %vm3333 = vcmp.eq.f32.partialorder %v3332, 8.507059e+37
  %v3334 = vand.u32 %v3322, 2147483648
  %v3335 = vor.u32 1.1754944e-38, %v3334
  %v3336 = vsel %vm3333, %v3335, %v3331
  %v3337 = vmul.f32 1.0, %v3336
  %v3338 = vmul.f32 %v3317, %v2959
  %v3339 = vmul.f32 %v3298, %v3318
  %v3340 = vadd.f32 %v3338, %v3339
  %v3341 = vtanh.pop %v3340
  %v3342 = vmul.f32 %v3337, %v3341
  %s3343 = smul.u32 6, 4
  %s3344 = smul.addr %s3343, 8
  %s3345 = scalar_lea.vmem [#allocation2], %s3344
  %v3346 = vld [vmem:[%s3345] sm:$0xff]
  %v3347 = vld [vmem:[%s3345 + $0x8] sm:$0xff]
  %v3348 = vld [vmem:[%s3345 + $0x10] sm:$0xff]
  %v3349 = vld [vmem:[%s3345 + $0x18] sm:$0xff]
  %3350 = vmatpush.msra.mxu0 %v921
  %3351 = vmatpush.msra.mxu0 %v917
  %3352 = vmatpush.msra.mxu0 %v913
  %3353 = vmatpush.msra.mxu0 %v909
  %3354 = vmatpush.msra.mxu0 %v905
  %3355 = vmatpush.msra.mxu0 %v901
  %3356 = vmatpush.msra.mxu0 %v897
  %3357 = vmatpush.msra.mxu0 %v893
  %3358 = vmatpush.msra.mxu0 %v889
  %3359 = vmatpush.msra.mxu0 %v885
  %3360 = vmatpush.msra.mxu0 %v881
  %3361 = vmatpush.msra.mxu0 %v877
  %3362 = vmatpush.msra.mxu0 %v873
  %3363 = vmatpush.msra.mxu0 %v869
  %3364 = vmatpush.msra.mxu0 %v865
  %3365 = vmatpush.msra.mxu0 %v861
  %3366 = vmatmul.f32.gmra.mxu0 %v3115
  %v3367 = vpop.f32.mrf.mxu0
  %v3368 = vadd.f32 0.0, %v3367
  %3369 = vdwg.mxu0
  %3370 = vmatpush.msra.mxu0 %v922
  %3371 = vmatpush.msra.mxu0 %v918
  %3372 = vmatpush.msra.mxu0 %v914
  %3373 = vmatpush.msra.mxu0 %v910
  %3374 = vmatpush.msra.mxu0 %v906
  %3375 = vmatpush.msra.mxu0 %v902
  %3376 = vmatpush.msra.mxu0 %v898
  %3377 = vmatpush.msra.mxu0 %v894
  %3378 = vmatpush.msra.mxu0 %v890
  %3379 = vmatpush.msra.mxu0 %v886
  %3380 = vmatpush.msra.mxu0 %v882
  %3381 = vmatpush.msra.mxu0 %v878
  %3382 = vmatpush.msra.mxu0 %v874
  %3383 = vmatpush.msra.mxu0 %v870
  %3384 = vmatpush.msra.mxu0 %v866
  %3385 = vmatpush.msra.mxu0 %v862
  %3386 = vmatmul.f32.gmra.mxu0 %v3115
  %v3387 = vpop.f32.mrf.mxu0
  %v3388 = vadd.f32 0.0, %v3387
  %3389 = vdwg.mxu0
  %3390 = vmatpush.msra.mxu0 %v923
  %3391 = vmatpush.msra.mxu0 %v919
  %3392 = vmatpush.msra.mxu0 %v915
  %3393 = vmatpush.msra.mxu0 %v911
  %3394 = vmatpush.msra.mxu0 %v907
  %3395 = vmatpush.msra.mxu0 %v903
  %3396 = vmatpush.msra.mxu0 %v899
  %3397 = vmatpush.msra.mxu0 %v895
  %3398 = vmatpush.msra.mxu0 %v891
  %3399 = vmatpush.msra.mxu0 %v887
  %3400 = vmatpush.msra.mxu0 %v883
  %3401 = vmatpush.msra.mxu0 %v879
  %3402 = vmatpush.msra.mxu0 %v875
  %3403 = vmatpush.msra.mxu0 %v871
  %3404 = vmatpush.msra.mxu0 %v867
  %3405 = vmatpush.msra.mxu0 %v863
  %3406 = vmatmul.f32.gmra.mxu0 %v3115
  %v3407 = vpop.f32.mrf.mxu0
  %v3408 = vadd.f32 0.0, %v3407
  %3409 = vdwg.mxu0
  %3410 = vmatpush.msra.mxu0 %v924
  %3411 = vmatpush.msra.mxu0 %v920
  %3412 = vmatpush.msra.mxu0 %v916
  %3413 = vmatpush.msra.mxu0 %v912
  %3414 = vmatpush.msra.mxu0 %v908
  %3415 = vmatpush.msra.mxu0 %v904
  %3416 = vmatpush.msra.mxu0 %v900
  %3417 = vmatpush.msra.mxu0 %v896
  %3418 = vmatpush.msra.mxu0 %v892
  %3419 = vmatpush.msra.mxu0 %v888
  %3420 = vmatpush.msra.mxu0 %v884
  %3421 = vmatpush.msra.mxu0 %v880
  %3422 = vmatpush.msra.mxu0 %v876
  %3423 = vmatpush.msra.mxu0 %v872
  %3424 = vmatpush.msra.mxu0 %v868
  %3425 = vmatpush.msra.mxu0 %v864
  %3426 = vmatmul.f32.gmra.mxu0 %v3115
  %v3427 = vpop.f32.mrf.mxu0
  %v3428 = vadd.f32 0.0, %v3427
  %3429 = vdwg.mxu0
  %v3430 = vadd.f32 %v3346, %v3368
  %v3431 = vadd.f32 %v3347, %v3388
  %v3432 = vadd.f32 %v3348, %v3408
  %v3433 = vadd.f32 %v3349, %v3428
  %v3434 = vxor.u32 %v3430, 2147483648
  %v3435 = vmul.f32 %v3434, 1.442695
  %v3436 = vpow.pop %v3435
  %v3437 = vadd.f32 %v3436, 1.0
  %v3438 = vrcp.pop %v3437
  %v3439 = vmul.f32 %v3437, %v3438
  %v3440 = vsub.f32 1.0, %v3439
  %v3441 = vmul.f32 %v3438, %v3440
  %v3442 = vadd.f32 %v3438, %v3441
  %vm3443 = vweird.f32 %v3437
  %vm3444 = vweird.f32 %v3438
  %vm3445 = vmor %vm3443, %vm3444
  %v3446 = vsel %vm3445, %v3438, %v3442
  %v3447 = vand.u32 2147483647, %v3437
  %vm3448 = vcmp.eq.f32.partialorder %v3447, 8.507059e+37
  %v3449 = vand.u32 %v3437, 2147483648
  %v3450 = vor.u32 1.1754944e-38, %v3449
  %v3451 = vsel %vm3448, %v3450, %v3446
  %v3452 = vmul.f32 1.0, %v3451
  %v3453 = vxor.u32 %v3431, 2147483648
  %v3454 = vmul.f32 %v3453, 1.442695
  %v3455 = vpow.pop %v3454
  %v3456 = vadd.f32 %v3455, 1.0
  %v3457 = vrcp.pop %v3456
  %v3458 = vmul.f32 %v3456, %v3457
  %v3459 = vsub.f32 1.0, %v3458
  %v3460 = vmul.f32 %v3457, %v3459
  %v3461 = vadd.f32 %v3457, %v3460
  %vm3462 = vweird.f32 %v3456
  %vm3463 = vweird.f32 %v3457
  %vm3464 = vmor %vm3462, %vm3463
  %v3465 = vsel %vm3464, %v3457, %v3461
  %v3466 = vand.u32 2147483647, %v3456
  %vm3467 = vcmp.eq.f32.partialorder %v3466, 8.507059e+37
  %v3468 = vand.u32 %v3456, 2147483648
  %v3469 = vor.u32 1.1754944e-38, %v3468
  %v3470 = vsel %vm3467, %v3469, %v3465
  %v3471 = vmul.f32 1.0, %v3470
  %v3472 = vtanh.pop %v3432
  %v3473 = vxor.u32 %v3433, 2147483648
  %v3474 = vmul.f32 %v3473, 1.442695
  %v3475 = vpow.pop %v3474
  %v3476 = vadd.f32 %v3475, 1.0
  %v3477 = vrcp.pop %v3476
  %v3478 = vmul.f32 %v3476, %v3477
  %v3479 = vsub.f32 1.0, %v3478
  %v3480 = vmul.f32 %v3477, %v3479
  %v3481 = vadd.f32 %v3477, %v3480
  %vm3482 = vweird.f32 %v3476
  %vm3483 = vweird.f32 %v3477
  %vm3484 = vmor %vm3482, %vm3483
  %v3485 = vsel %vm3484, %v3477, %v3481
  %v3486 = vand.u32 2147483647, %v3476
  %vm3487 = vcmp.eq.f32.partialorder %v3486, 8.507059e+37
  %v3488 = vand.u32 %v3476, 2147483648
  %v3489 = vor.u32 1.1754944e-38, %v3488
  %v3490 = vsel %vm3487, %v3489, %v3485
  %v3491 = vmul.f32 1.0, %v3490
  %v3492 = vmul.f32 %v3471, %v3113
  %v3493 = vmul.f32 %v3452, %v3472
  %v3494 = vadd.f32 %v3492, %v3493
  %v3495 = vtanh.pop %v3494
  %v3496 = vmul.f32 %v3491, %v3495
  %3497 = vmatpush.msra.mxu0 %v985
  %3498 = vmatpush.msra.mxu0 %v981
  %3499 = vmatpush.msra.mxu0 %v977
  %3500 = vmatpush.msra.mxu0 %v973
  %3501 = vmatpush.msra.mxu0 %v969
  %3502 = vmatpush.msra.mxu0 %v965
  %3503 = vmatpush.msra.mxu0 %v961
  %3504 = vmatpush.msra.mxu0 %v957
  %3505 = vmatpush.msra.mxu0 %v953
  %3506 = vmatpush.msra.mxu0 %v949
  %3507 = vmatpush.msra.mxu0 %v945
  %3508 = vmatpush.msra.mxu0 %v941
  %3509 = vmatpush.msra.mxu0 %v937
  %3510 = vmatpush.msra.mxu0 %v933
  %3511 = vmatpush.msra.mxu0 %v929
  %3512 = vmatpush.msra.mxu0 %v925
  %3513 = vmatmul.f32.gmra.mxu0 %v3496
  %v3514 = vpop.f32.mrf.mxu0
  %v3515 = vadd.f32 0.0, %v3514
  %3516 = vdwg.mxu0
  %3517 = vmatpush.msra.mxu0 %v1049
  %3518 = vmatpush.msra.mxu0 %v1045
  %3519 = vmatpush.msra.mxu0 %v1041
  %3520 = vmatpush.msra.mxu0 %v1037
  %3521 = vmatpush.msra.mxu0 %v1033
  %3522 = vmatpush.msra.mxu0 %v1029
  %3523 = vmatpush.msra.mxu0 %v1025
  %3524 = vmatpush.msra.mxu0 %v1021
  %3525 = vmatpush.msra.mxu0 %v1017
  %3526 = vmatpush.msra.mxu0 %v1013
  %3527 = vmatpush.msra.mxu0 %v1009
  %3528 = vmatpush.msra.mxu0 %v1005
  %3529 = vmatpush.msra.mxu0 %v1001
  %3530 = vmatpush.msra.mxu0 %v997
  %3531 = vmatpush.msra.mxu0 %v993
  %3532 = vmatpush.msra.mxu0 %v989
  %3533 = vmatmul.f32.gmra.mxu0 %v3342
  %v3534 = vpop.f32.mrf.mxu0
  %v3535 = vadd.f32 %v3515, %v3534
  %3536 = vdwg.mxu0
  %3537 = vmatpush.msra.mxu0 %v986
  %3538 = vmatpush.msra.mxu0 %v982
  %3539 = vmatpush.msra.mxu0 %v978
  %3540 = vmatpush.msra.mxu0 %v974
  %3541 = vmatpush.msra.mxu0 %v970
  %3542 = vmatpush.msra.mxu0 %v966
  %3543 = vmatpush.msra.mxu0 %v962
  %3544 = vmatpush.msra.mxu0 %v958
  %3545 = vmatpush.msra.mxu0 %v954
  %3546 = vmatpush.msra.mxu0 %v950
  %3547 = vmatpush.msra.mxu0 %v946
  %3548 = vmatpush.msra.mxu0 %v942
  %3549 = vmatpush.msra.mxu0 %v938
  %3550 = vmatpush.msra.mxu0 %v934
  %3551 = vmatpush.msra.mxu0 %v930
  %3552 = vmatpush.msra.mxu0 %v926
  %3553 = vmatmul.f32.gmra.mxu0 %v3496
  %v3554 = vpop.f32.mrf.mxu0
  %v3555 = vadd.f32 0.0, %v3554
  %3556 = vdwg.mxu0
  %3557 = vmatpush.msra.mxu0 %v1050
  %3558 = vmatpush.msra.mxu0 %v1046
  %3559 = vmatpush.msra.mxu0 %v1042
  %3560 = vmatpush.msra.mxu0 %v1038
  %3561 = vmatpush.msra.mxu0 %v1034
  %3562 = vmatpush.msra.mxu0 %v1030
  %3563 = vmatpush.msra.mxu0 %v1026
  %3564 = vmatpush.msra.mxu0 %v1022
  %3565 = vmatpush.msra.mxu0 %v1018
  %3566 = vmatpush.msra.mxu0 %v1014
  %3567 = vmatpush.msra.mxu0 %v1010
  %3568 = vmatpush.msra.mxu0 %v1006
  %3569 = vmatpush.msra.mxu0 %v1002
  %3570 = vmatpush.msra.mxu0 %v998
  %3571 = vmatpush.msra.mxu0 %v994
  %3572 = vmatpush.msra.mxu0 %v990
  %3573 = vmatmul.f32.gmra.mxu0 %v3342
  %v3574 = vpop.f32.mrf.mxu0
  %v3575 = vadd.f32 %v3555, %v3574
  %3576 = vdwg.mxu0
  %3577 = vmatpush.msra.mxu0 %v987
  %3578 = vmatpush.msra.mxu0 %v983
  %3579 = vmatpush.msra.mxu0 %v979
  %3580 = vmatpush.msra.mxu0 %v975
  %3581 = vmatpush.msra.mxu0 %v971
  %3582 = vmatpush.msra.mxu0 %v967
  %3583 = vmatpush.msra.mxu0 %v963
  %3584 = vmatpush.msra.mxu0 %v959
  %3585 = vmatpush.msra.mxu0 %v955
  %3586 = vmatpush.msra.mxu0 %v951
  %3587 = vmatpush.msra.mxu0 %v947
  %3588 = vmatpush.msra.mxu0 %v943
  %3589 = vmatpush.msra.mxu0 %v939
  %3590 = vmatpush.msra.mxu0 %v935
  %3591 = vmatpush.msra.mxu0 %v931
  %3592 = vmatpush.msra.mxu0 %v927
  %3593 = vmatmul.f32.gmra.mxu0 %v3496
  %v3594 = vpop.f32.mrf.mxu0
  %v3595 = vadd.f32 0.0, %v3594
  %3596 = vdwg.mxu0
  %3597 = vmatpush.msra.mxu0 %v1051
  %3598 = vmatpush.msra.mxu0 %v1047
  %3599 = vmatpush.msra.mxu0 %v1043
  %3600 = vmatpush.msra.mxu0 %v1039
  %3601 = vmatpush.msra.mxu0 %v1035
  %3602 = vmatpush.msra.mxu0 %v1031
  %3603 = vmatpush.msra.mxu0 %v1027
  %3604 = vmatpush.msra.mxu0 %v1023
  %3605 = vmatpush.msra.mxu0 %v1019
  %3606 = vmatpush.msra.mxu0 %v1015
  %3607 = vmatpush.msra.mxu0 %v1011
  %3608 = vmatpush.msra.mxu0 %v1007
  %3609 = vmatpush.msra.mxu0 %v1003
  %3610 = vmatpush.msra.mxu0 %v999
  %3611 = vmatpush.msra.mxu0 %v995
  %3612 = vmatpush.msra.mxu0 %v991
  %3613 = vmatmul.f32.gmra.mxu0 %v3342
  %v3614 = vpop.f32.mrf.mxu0
  %v3615 = vadd.f32 %v3595, %v3614
  %3616 = vdwg.mxu0
  %3617 = vmatpush.msra.mxu0 %v988
  %3618 = vmatpush.msra.mxu0 %v984
  %3619 = vmatpush.msra.mxu0 %v980
  %3620 = vmatpush.msra.mxu0 %v976
  %3621 = vmatpush.msra.mxu0 %v972
  %3622 = vmatpush.msra.mxu0 %v968
  %3623 = vmatpush.msra.mxu0 %v964
  %3624 = vmatpush.msra.mxu0 %v960
  %3625 = vmatpush.msra.mxu0 %v956
  %3626 = vmatpush.msra.mxu0 %v952
  %3627 = vmatpush.msra.mxu0 %v948
  %3628 = vmatpush.msra.mxu0 %v944
  %3629 = vmatpush.msra.mxu0 %v940
  %3630 = vmatpush.msra.mxu0 %v936
  %3631 = vmatpush.msra.mxu0 %v932
  %3632 = vmatpush.msra.mxu0 %v928
  %3633 = vmatmul.f32.gmra.mxu0 %v3496
  %v3634 = vpop.f32.mrf.mxu0
  %v3635 = vadd.f32 0.0, %v3634
  %3636 = vdwg.mxu0
  %3637 = vmatpush.msra.mxu0 %v1052
  %3638 = vmatpush.msra.mxu0 %v1048
  %3639 = vmatpush.msra.mxu0 %v1044
  %3640 = vmatpush.msra.mxu0 %v1040
  %3641 = vmatpush.msra.mxu0 %v1036
  %3642 = vmatpush.msra.mxu0 %v1032
  %3643 = vmatpush.msra.mxu0 %v1028
  %3644 = vmatpush.msra.mxu0 %v1024
  %3645 = vmatpush.msra.mxu0 %v1020
  %3646 = vmatpush.msra.mxu0 %v1016
  %3647 = vmatpush.msra.mxu0 %v1012
  %3648 = vmatpush.msra.mxu0 %v1008
  %3649 = vmatpush.msra.mxu0 %v1004
  %3650 = vmatpush.msra.mxu0 %v1000
  %3651 = vmatpush.msra.mxu0 %v996
  %3652 = vmatpush.msra.mxu0 %v992
  %3653 = vmatmul.f32.gmra.mxu0 %v3342
  %v3654 = vpop.f32.mrf.mxu0
  %v3655 = vadd.f32 %v3635, %v3654
  %3656 = vdwg.mxu0
  %v3657 = vadd.f32 %v1053, %v3535
  %v3658 = vadd.f32 %v1054, %v3575
  %v3659 = vadd.f32 %v1055, %v3615
  %v3660 = vadd.f32 %v1056, %v3655
  %v3661 = vxor.u32 %v3657, 2147483648
  %v3662 = vmul.f32 %v3661, 1.442695
  %v3663 = vpow.pop %v3662
  %v3664 = vadd.f32 %v3663, 1.0
  %v3665 = vrcp.pop %v3664
  %v3666 = vmul.f32 %v3664, %v3665
  %v3667 = vsub.f32 1.0, %v3666
  %v3668 = vmul.f32 %v3665, %v3667
  %v3669 = vadd.f32 %v3665, %v3668
  %vm3670 = vweird.f32 %v3664
  %vm3671 = vweird.f32 %v3665
  %vm3672 = vmor %vm3670, %vm3671
  %v3673 = vsel %vm3672, %v3665, %v3669
  %v3674 = vand.u32 2147483647, %v3664
  %vm3675 = vcmp.eq.f32.partialorder %v3674, 8.507059e+37
  %v3676 = vand.u32 %v3664, 2147483648
  %v3677 = vor.u32 1.1754944e-38, %v3676
  %v3678 = vsel %vm3675, %v3677, %v3673
  %v3679 = vmul.f32 1.0, %v3678
  %v3680 = vxor.u32 %v3658, 2147483648
  %v3681 = vmul.f32 %v3680, 1.442695
  %v3682 = vpow.pop %v3681
  %v3683 = vadd.f32 %v3682, 1.0
  %v3684 = vrcp.pop %v3683
  %v3685 = vmul.f32 %v3683, %v3684
  %v3686 = vsub.f32 1.0, %v3685
  %v3687 = vmul.f32 %v3684, %v3686
  %v3688 = vadd.f32 %v3684, %v3687
  %vm3689 = vweird.f32 %v3683
  %vm3690 = vweird.f32 %v3684
  %vm3691 = vmor %vm3689, %vm3690
  %v3692 = vsel %vm3691, %v3684, %v3688
  %v3693 = vand.u32 2147483647, %v3683
  %vm3694 = vcmp.eq.f32.partialorder %v3693, 8.507059e+37
  %v3695 = vand.u32 %v3683, 2147483648
  %v3696 = vor.u32 1.1754944e-38, %v3695
  %v3697 = vsel %vm3694, %v3696, %v3692
  %v3698 = vmul.f32 1.0, %v3697
  %v3699 = vtanh.pop %v3659
  %v3700 = vxor.u32 %v3660, 2147483648
  %v3701 = vmul.f32 %v3700, 1.442695
  %v3702 = vpow.pop %v3701
  %v3703 = vadd.f32 %v3702, 1.0
  %v3704 = vrcp.pop %v3703
  %v3705 = vmul.f32 %v3703, %v3704
  %v3706 = vsub.f32 1.0, %v3705
  %v3707 = vmul.f32 %v3704, %v3706
  %v3708 = vadd.f32 %v3704, %v3707
  %vm3709 = vweird.f32 %v3703
  %vm3710 = vweird.f32 %v3704
  %vm3711 = vmor %vm3709, %vm3710
  %v3712 = vsel %vm3711, %v3704, %v3708
  %v3713 = vand.u32 2147483647, %v3703
  %vm3714 = vcmp.eq.f32.partialorder %v3713, 8.507059e+37
  %v3715 = vand.u32 %v3703, 2147483648
  %v3716 = vor.u32 1.1754944e-38, %v3715
  %v3717 = vsel %vm3714, %v3716, %v3712
  %v3718 = vmul.f32 1.0, %v3717
  %v3719 = vmul.f32 %v3698, %v3340
  %v3720 = vmul.f32 %v3679, %v3699
  %v3721 = vadd.f32 %v3719, %v3720
  %v3722 = vtanh.pop %v3721
  %v3723 = vmul.f32 %v3718, %v3722
  %s3724 = smul.u32 7, 4
  %s3725 = smul.addr %s3724, 8
  %s3726 = scalar_lea.vmem [#allocation2], %s3725
  %v3727 = vld [vmem:[%s3726] sm:$0xff]
  %v3728 = vld [vmem:[%s3726 + $0x8] sm:$0xff]
  %v3729 = vld [vmem:[%s3726 + $0x10] sm:$0xff]
  %v3730 = vld [vmem:[%s3726 + $0x18] sm:$0xff]
  %3731 = vmatpush.msra.mxu0 %v921
  %3732 = vmatpush.msra.mxu0 %v917
  %3733 = vmatpush.msra.mxu0 %v913
  %3734 = vmatpush.msra.mxu0 %v909
  %3735 = vmatpush.msra.mxu0 %v905
  %3736 = vmatpush.msra.mxu0 %v901
  %3737 = vmatpush.msra.mxu0 %v897
  %3738 = vmatpush.msra.mxu0 %v893
  %3739 = vmatpush.msra.mxu0 %v889
  %3740 = vmatpush.msra.mxu0 %v885
  %3741 = vmatpush.msra.mxu0 %v881
  %3742 = vmatpush.msra.mxu0 %v877
  %3743 = vmatpush.msra.mxu0 %v873
  %3744 = vmatpush.msra.mxu0 %v869
  %3745 = vmatpush.msra.mxu0 %v865
  %3746 = vmatpush.msra.mxu0 %v861
  %3747 = vmatmul.f32.gmra.mxu0 %v3496
  %v3748 = vpop.f32.mrf.mxu0
  %v3749 = vadd.f32 0.0, %v3748
  %3750 = vdwg.mxu0
  %3751 = vmatpush.msra.mxu0 %v922
  %3752 = vmatpush.msra.mxu0 %v918
  %3753 = vmatpush.msra.mxu0 %v914
  %3754 = vmatpush.msra.mxu0 %v910
  %3755 = vmatpush.msra.mxu0 %v906
  %3756 = vmatpush.msra.mxu0 %v902
  %3757 = vmatpush.msra.mxu0 %v898
  %3758 = vmatpush.msra.mxu0 %v894
  %3759 = vmatpush.msra.mxu0 %v890
  %3760 = vmatpush.msra.mxu0 %v886
  %3761 = vmatpush.msra.mxu0 %v882
  %3762 = vmatpush.msra.mxu0 %v878
  %3763 = vmatpush.msra.mxu0 %v874
  %3764 = vmatpush.msra.mxu0 %v870
  %3765 = vmatpush.msra.mxu0 %v866
  %3766 = vmatpush.msra.mxu0 %v862
  %3767 = vmatmul.f32.gmra.mxu0 %v3496
  %v3768 = vpop.f32.mrf.mxu0
  %v3769 = vadd.f32 0.0, %v3768
  %3770 = vdwg.mxu0
  %3771 = vmatpush.msra.mxu0 %v923
  %3772 = vmatpush.msra.mxu0 %v919
  %3773 = vmatpush.msra.mxu0 %v915
  %3774 = vmatpush.msra.mxu0 %v911
  %3775 = vmatpush.msra.mxu0 %v907
  %3776 = vmatpush.msra.mxu0 %v903
  %3777 = vmatpush.msra.mxu0 %v899
  %3778 = vmatpush.msra.mxu0 %v895
  %3779 = vmatpush.msra.mxu0 %v891
  %3780 = vmatpush.msra.mxu0 %v887
  %3781 = vmatpush.msra.mxu0 %v883
  %3782 = vmatpush.msra.mxu0 %v879
  %3783 = vmatpush.msra.mxu0 %v875
  %3784 = vmatpush.msra.mxu0 %v871
  %3785 = vmatpush.msra.mxu0 %v867
  %3786 = vmatpush.msra.mxu0 %v863
  %3787 = vmatmul.f32.gmra.mxu0 %v3496
  %v3788 = vpop.f32.mrf.mxu0
  %v3789 = vadd.f32 0.0, %v3788
  %3790 = vdwg.mxu0
  %3791 = vmatpush.msra.mxu0 %v924
  %3792 = vmatpush.msra.mxu0 %v920
  %3793 = vmatpush.msra.mxu0 %v916
  %3794 = vmatpush.msra.mxu0 %v912
  %3795 = vmatpush.msra.mxu0 %v908
  %3796 = vmatpush.msra.mxu0 %v904
  %3797 = vmatpush.msra.mxu0 %v900
  %3798 = vmatpush.msra.mxu0 %v896
  %3799 = vmatpush.msra.mxu0 %v892
  %3800 = vmatpush.msra.mxu0 %v888
  %3801 = vmatpush.msra.mxu0 %v884
  %3802 = vmatpush.msra.mxu0 %v880
  %3803 = vmatpush.msra.mxu0 %v876
  %3804 = vmatpush.msra.mxu0 %v872
  %3805 = vmatpush.msra.mxu0 %v868
  %3806 = vmatpush.msra.mxu0 %v864
  %3807 = vmatmul.f32.gmra.mxu0 %v3496
  %v3808 = vpop.f32.mrf.mxu0
  %v3809 = vadd.f32 0.0, %v3808
  %3810 = vdwg.mxu0
  %v3811 = vadd.f32 %v3727, %v3749
  %v3812 = vadd.f32 %v3728, %v3769
  %v3813 = vadd.f32 %v3729, %v3789
  %v3814 = vadd.f32 %v3730, %v3809
  %v3815 = vxor.u32 %v3811, 2147483648
  %v3816 = vmul.f32 %v3815, 1.442695
  %v3817 = vpow.pop %v3816
  %v3818 = vadd.f32 %v3817, 1.0
  %v3819 = vrcp.pop %v3818
  %v3820 = vmul.f32 %v3818, %v3819
  %v3821 = vsub.f32 1.0, %v3820
  %v3822 = vmul.f32 %v3819, %v3821
  %v3823 = vadd.f32 %v3819, %v3822
  %vm3824 = vweird.f32 %v3818
  %vm3825 = vweird.f32 %v3819
  %vm3826 = vmor %vm3824, %vm3825
  %v3827 = vsel %vm3826, %v3819, %v3823
  %v3828 = vand.u32 2147483647, %v3818
  %vm3829 = vcmp.eq.f32.partialorder %v3828, 8.507059e+37
  %v3830 = vand.u32 %v3818, 2147483648
  %v3831 = vor.u32 1.1754944e-38, %v3830
  %v3832 = vsel %vm3829, %v3831, %v3827
  %v3833 = vmul.f32 1.0, %v3832
  %v3834 = vxor.u32 %v3812, 2147483648
  %v3835 = vmul.f32 %v3834, 1.442695
  %v3836 = vpow.pop %v3835
  %v3837 = vadd.f32 %v3836, 1.0
  %v3838 = vrcp.pop %v3837
  %v3839 = vmul.f32 %v3837, %v3838
  %v3840 = vsub.f32 1.0, %v3839
  %v3841 = vmul.f32 %v3838, %v3840
  %v3842 = vadd.f32 %v3838, %v3841
  %vm3843 = vweird.f32 %v3837
  %vm3844 = vweird.f32 %v3838
  %vm3845 = vmor %vm3843, %vm3844
  %v3846 = vsel %vm3845, %v3838, %v3842
  %v3847 = vand.u32 2147483647, %v3837
  %vm3848 = vcmp.eq.f32.partialorder %v3847, 8.507059e+37
  %v3849 = vand.u32 %v3837, 2147483648
  %v3850 = vor.u32 1.1754944e-38, %v3849
  %v3851 = vsel %vm3848, %v3850, %v3846
  %v3852 = vmul.f32 1.0, %v3851
  %v3853 = vtanh.pop %v3813
  %v3854 = vxor.u32 %v3814, 2147483648
  %v3855 = vmul.f32 %v3854, 1.442695
  %v3856 = vpow.pop %v3855
  %v3857 = vadd.f32 %v3856, 1.0
  %v3858 = vrcp.pop %v3857
  %v3859 = vmul.f32 %v3857, %v3858
  %v3860 = vsub.f32 1.0, %v3859
  %v3861 = vmul.f32 %v3858, %v3860
  %v3862 = vadd.f32 %v3858, %v3861
  %vm3863 = vweird.f32 %v3857
  %vm3864 = vweird.f32 %v3858
  %vm3865 = vmor %vm3863, %vm3864
  %v3866 = vsel %vm3865, %v3858, %v3862
  %v3867 = vand.u32 2147483647, %v3857
  %vm3868 = vcmp.eq.f32.partialorder %v3867, 8.507059e+37
  %v3869 = vand.u32 %v3857, 2147483648
  %v3870 = vor.u32 1.1754944e-38, %v3869
  %v3871 = vsel %vm3868, %v3870, %v3866
  %v3872 = vmul.f32 1.0, %v3871
  %v3873 = vmul.f32 %v3852, %v3494
  %v3874 = vmul.f32 %v3833, %v3853
  %v3875 = vadd.f32 %v3873, %v3874
  %v3876 = vtanh.pop %v3875
  %v3877 = vmul.f32 %v3872, %v3876
  %3878 = vmatpush.msra.mxu0 %v985
  %3879 = vmatpush.msra.mxu0 %v981
  %3880 = vmatpush.msra.mxu0 %v977
  %3881 = vmatpush.msra.mxu0 %v973
  %3882 = vmatpush.msra.mxu0 %v969
  %3883 = vmatpush.msra.mxu0 %v965
  %3884 = vmatpush.msra.mxu0 %v961
  %3885 = vmatpush.msra.mxu0 %v957
  %3886 = vmatpush.msra.mxu0 %v953
  %3887 = vmatpush.msra.mxu0 %v949
  %3888 = vmatpush.msra.mxu0 %v945
  %3889 = vmatpush.msra.mxu0 %v941
  %3890 = vmatpush.msra.mxu0 %v937
  %3891 = vmatpush.msra.mxu0 %v933
  %3892 = vmatpush.msra.mxu0 %v929
  %3893 = vmatpush.msra.mxu0 %v925
  %3894 = vmatmul.f32.gmra.mxu0 %v3877
  %v3895 = vpop.f32.mrf.mxu0
  %v3896 = vadd.f32 0.0, %v3895
  %3897 = vdwg.mxu0
  %3898 = vmatpush.msra.mxu0 %v1049
  %3899 = vmatpush.msra.mxu0 %v1045
  %3900 = vmatpush.msra.mxu0 %v1041
  %3901 = vmatpush.msra.mxu0 %v1037
  %3902 = vmatpush.msra.mxu0 %v1033
  %3903 = vmatpush.msra.mxu0 %v1029
  %3904 = vmatpush.msra.mxu0 %v1025
  %3905 = vmatpush.msra.mxu0 %v1021
  %3906 = vmatpush.msra.mxu0 %v1017
  %3907 = vmatpush.msra.mxu0 %v1013
  %3908 = vmatpush.msra.mxu0 %v1009
  %3909 = vmatpush.msra.mxu0 %v1005
  %3910 = vmatpush.msra.mxu0 %v1001
  %3911 = vmatpush.msra.mxu0 %v997
  %3912 = vmatpush.msra.mxu0 %v993
  %3913 = vmatpush.msra.mxu0 %v989
  %3914 = vmatmul.f32.gmra.mxu0 %v3723
  %v3915 = vpop.f32.mrf.mxu0
  %v3916 = vadd.f32 %v3896, %v3915
  %3917 = vdwg.mxu0
  %3918 = vmatpush.msra.mxu0 %v986
  %3919 = vmatpush.msra.mxu0 %v982
  %3920 = vmatpush.msra.mxu0 %v978
  %3921 = vmatpush.msra.mxu0 %v974
  %3922 = vmatpush.msra.mxu0 %v970
  %3923 = vmatpush.msra.mxu0 %v966
  %3924 = vmatpush.msra.mxu0 %v962
  %3925 = vmatpush.msra.mxu0 %v958
  %3926 = vmatpush.msra.mxu0 %v954
  %3927 = vmatpush.msra.mxu0 %v950
  %3928 = vmatpush.msra.mxu0 %v946
  %3929 = vmatpush.msra.mxu0 %v942
  %3930 = vmatpush.msra.mxu0 %v938
  %3931 = vmatpush.msra.mxu0 %v934
  %3932 = vmatpush.msra.mxu0 %v930
  %3933 = vmatpush.msra.mxu0 %v926
  %3934 = vmatmul.f32.gmra.mxu0 %v3877
  %v3935 = vpop.f32.mrf.mxu0
  %v3936 = vadd.f32 0.0, %v3935
  %3937 = vdwg.mxu0
  %3938 = vmatpush.msra.mxu0 %v1050
  %3939 = vmatpush.msra.mxu0 %v1046
  %3940 = vmatpush.msra.mxu0 %v1042
  %3941 = vmatpush.msra.mxu0 %v1038
  %3942 = vmatpush.msra.mxu0 %v1034
  %3943 = vmatpush.msra.mxu0 %v1030
  %3944 = vmatpush.msra.mxu0 %v1026
  %3945 = vmatpush.msra.mxu0 %v1022
  %3946 = vmatpush.msra.mxu0 %v1018
  %3947 = vmatpush.msra.mxu0 %v1014
  %3948 = vmatpush.msra.mxu0 %v1010
  %3949 = vmatpush.msra.mxu0 %v1006
  %3950 = vmatpush.msra.mxu0 %v1002
  %3951 = vmatpush.msra.mxu0 %v998
  %3952 = vmatpush.msra.mxu0 %v994
  %3953 = vmatpush.msra.mxu0 %v990
  %3954 = vmatmul.f32.gmra.mxu0 %v3723
  %v3955 = vpop.f32.mrf.mxu0
  %v3956 = vadd.f32 %v3936, %v3955
  %3957 = vdwg.mxu0
  %3958 = vmatpush.msra.mxu0 %v987
  %3959 = vmatpush.msra.mxu0 %v983
  %3960 = vmatpush.msra.mxu0 %v979
  %3961 = vmatpush.msra.mxu0 %v975
  %3962 = vmatpush.msra.mxu0 %v971
  %3963 = vmatpush.msra.mxu0 %v967
  %3964 = vmatpush.msra.mxu0 %v963
  %3965 = vmatpush.msra.mxu0 %v959
  %3966 = vmatpush.msra.mxu0 %v955
  %3967 = vmatpush.msra.mxu0 %v951
  %3968 = vmatpush.msra.mxu0 %v947
  %3969 = vmatpush.msra.mxu0 %v943
  %3970 = vmatpush.msra.mxu0 %v939
  %3971 = vmatpush.msra.mxu0 %v935
  %3972 = vmatpush.msra.mxu0 %v931
  %3973 = vmatpush.msra.mxu0 %v927
  %3974 = vmatmul.f32.gmra.mxu0 %v3877
  %v3975 = vpop.f32.mrf.mxu0
  %v3976 = vadd.f32 0.0, %v3975
  %3977 = vdwg.mxu0
  %3978 = vmatpush.msra.mxu0 %v1051
  %3979 = vmatpush.msra.mxu0 %v1047
  %3980 = vmatpush.msra.mxu0 %v1043
  %3981 = vmatpush.msra.mxu0 %v1039
  %3982 = vmatpush.msra.mxu0 %v1035
  %3983 = vmatpush.msra.mxu0 %v1031
  %3984 = vmatpush.msra.mxu0 %v1027
  %3985 = vmatpush.msra.mxu0 %v1023
  %3986 = vmatpush.msra.mxu0 %v1019
  %3987 = vmatpush.msra.mxu0 %v1015
  %3988 = vmatpush.msra.mxu0 %v1011
  %3989 = vmatpush.msra.mxu0 %v1007
  %3990 = vmatpush.msra.mxu0 %v1003
  %3991 = vmatpush.msra.mxu0 %v999
  %3992 = vmatpush.msra.mxu0 %v995
  %3993 = vmatpush.msra.mxu0 %v991
  %3994 = vmatmul.f32.gmra.mxu0 %v3723
  %v3995 = vpop.f32.mrf.mxu0
  %v3996 = vadd.f32 %v3976, %v3995
  %3997 = vdwg.mxu0
  %3998 = vmatpush.msra.mxu0 %v988
  %3999 = vmatpush.msra.mxu0 %v984
  %4000 = vmatpush.msra.mxu0 %v980
  %4001 = vmatpush.msra.mxu0 %v976
  %4002 = vmatpush.msra.mxu0 %v972
  %4003 = vmatpush.msra.mxu0 %v968
  %4004 = vmatpush.msra.mxu0 %v964
  %4005 = vmatpush.msra.mxu0 %v960
  %4006 = vmatpush.msra.mxu0 %v956
  %4007 = vmatpush.msra.mxu0 %v952
  %4008 = vmatpush.msra.mxu0 %v948
  %4009 = vmatpush.msra.mxu0 %v944
  %4010 = vmatpush.msra.mxu0 %v940
  %4011 = vmatpush.msra.mxu0 %v936
  %4012 = vmatpush.msra.mxu0 %v932
  %4013 = vmatpush.msra.mxu0 %v928
  %4014 = vmatmul.f32.gmra.mxu0 %v3877
  %v4015 = vpop.f32.mrf.mxu0
  %v4016 = vadd.f32 0.0, %v4015
  %4017 = vdwg.mxu0
  %4018 = vmatpush.msra.mxu0 %v1052
  %4019 = vmatpush.msra.mxu0 %v1048
  %4020 = vmatpush.msra.mxu0 %v1044
  %4021 = vmatpush.msra.mxu0 %v1040
  %4022 = vmatpush.msra.mxu0 %v1036
  %4023 = vmatpush.msra.mxu0 %v1032
  %4024 = vmatpush.msra.mxu0 %v1028
  %4025 = vmatpush.msra.mxu0 %v1024
  %4026 = vmatpush.msra.mxu0 %v1020
  %4027 = vmatpush.msra.mxu0 %v1016
  %4028 = vmatpush.msra.mxu0 %v1012
  %4029 = vmatpush.msra.mxu0 %v1008
  %4030 = vmatpush.msra.mxu0 %v1004
  %4031 = vmatpush.msra.mxu0 %v1000
  %4032 = vmatpush.msra.mxu0 %v996
  %4033 = vmatpush.msra.mxu0 %v992
  %4034 = vmatmul.f32.gmra.mxu0 %v3723
  %v4035 = vpop.f32.mrf.mxu0
  %v4036 = vadd.f32 %v4016, %v4035
  %4037 = vdwg.mxu0
  %v4038 = vadd.f32 %v1053, %v3916
  %v4039 = vadd.f32 %v1054, %v3956
  %v4040 = vadd.f32 %v1055, %v3996
  %v4041 = vadd.f32 %v1056, %v4036
  %v4042 = vxor.u32 %v4038, 2147483648
  %v4043 = vmul.f32 %v4042, 1.442695
  %v4044 = vpow.pop %v4043
  %v4045 = vadd.f32 %v4044, 1.0
  %v4046 = vrcp.pop %v4045
  %v4047 = vmul.f32 %v4045, %v4046
  %v4048 = vsub.f32 1.0, %v4047
  %v4049 = vmul.f32 %v4046, %v4048
  %v4050 = vadd.f32 %v4046, %v4049
  %vm4051 = vweird.f32 %v4045
  %vm4052 = vweird.f32 %v4046
  %vm4053 = vmor %vm4051, %vm4052
  %v4054 = vsel %vm4053, %v4046, %v4050
  %v4055 = vand.u32 2147483647, %v4045
  %vm4056 = vcmp.eq.f32.partialorder %v4055, 8.507059e+37
  %v4057 = vand.u32 %v4045, 2147483648
  %v4058 = vor.u32 1.1754944e-38, %v4057
  %v4059 = vsel %vm4056, %v4058, %v4054
  %v4060 = vmul.f32 1.0, %v4059
  %v4061 = vxor.u32 %v4039, 2147483648
  %v4062 = vmul.f32 %v4061, 1.442695
  %v4063 = vpow.pop %v4062
  %v4064 = vadd.f32 %v4063, 1.0
  %v4065 = vrcp.pop %v4064
  %v4066 = vmul.f32 %v4064, %v4065
  %v4067 = vsub.f32 1.0, %v4066
  %v4068 = vmul.f32 %v4065, %v4067
  %v4069 = vadd.f32 %v4065, %v4068
  %vm4070 = vweird.f32 %v4064
  %vm4071 = vweird.f32 %v4065
  %vm4072 = vmor %vm4070, %vm4071
  %v4073 = vsel %vm4072, %v4065, %v4069
  %v4074 = vand.u32 2147483647, %v4064
  %vm4075 = vcmp.eq.f32.partialorder %v4074, 8.507059e+37
  %v4076 = vand.u32 %v4064, 2147483648
  %v4077 = vor.u32 1.1754944e-38, %v4076
  %v4078 = vsel %vm4075, %v4077, %v4073
  %v4079 = vmul.f32 1.0, %v4078
  %v4080 = vtanh.pop %v4040
  %v4081 = vxor.u32 %v4041, 2147483648
  %v4082 = vmul.f32 %v4081, 1.442695
  %v4083 = vpow.pop %v4082
  %v4084 = vadd.f32 %v4083, 1.0
  %v4085 = vrcp.pop %v4084
  %v4086 = vmul.f32 %v4084, %v4085
  %v4087 = vsub.f32 1.0, %v4086
  %v4088 = vmul.f32 %v4085, %v4087
  %v4089 = vadd.f32 %v4085, %v4088
  %vm4090 = vweird.f32 %v4084
  %vm4091 = vweird.f32 %v4085
  %vm4092 = vmor %vm4090, %vm4091
  %v4093 = vsel %vm4092, %v4085, %v4089
  %v4094 = vand.u32 2147483647, %v4084
  %vm4095 = vcmp.eq.f32.partialorder %v4094, 8.507059e+37
  %v4096 = vand.u32 %v4084, 2147483648
  %v4097 = vor.u32 1.1754944e-38, %v4096
  %v4098 = vsel %vm4095, %v4097, %v4093
  %v4099 = vmul.f32 1.0, %v4098
  %v4100 = vmul.f32 %v4079, %v3721
  %v4101 = vmul.f32 %v4060, %v4080
  %v4102 = vadd.f32 %v4100, %v4101
  %v4103 = vtanh.pop %v4102
  %v4104 = vmul.f32 %v4099, %v4103
  %4105 = vst [vmem:[%s5] sm:$0xff] %v4104
  // Predicated region
  $region18: #{lstm_shakespeare_client_forward.1} parent=0 // pred_check
    _
  $region19: #{lstm_shakespeare_client_forward.1} parent=0 // pred_check_branch
    %4107 = sbr.rel (0) target = $region21
  $region20: #{lstm_shakespeare_client_forward.1} parent=0 // pred_region
    _
  $region21: #{lstm_shakespeare_client_forward.1} parent=0 // pred_fallthru
    _
  // Predicated region
  $region22: #{lstm_shakespeare_client_forward.1} parent=0 // pred_check
    _
  $region23: #{lstm_shakespeare_client_forward.1} parent=0 // pred_check_branch
    %4109 = sbr.rel (0) target = $region25
  $region24: #{lstm_shakespeare_client_forward.1} parent=0 // pred_region
    _
  $region25: #{lstm_shakespeare_client_forward.1} parent=0 // pred_fallthru
    _

</llo_original>
